<compile_context>
chip_gen: v7x
topology: tpu7x:2x2x1
jax: 0.10.0
libtpu: 0.0.40
codegen_flags: <defaults>
</compile_context>

<pallas_src>
import jax
import jax.numpy as jnp
from jax import lax
from jax.experimental import pallas as pl
from jax.experimental.pallas import tpu as pltpu

# ---------------- model sizes (small, consistent with the module) -----------
VOCAB = 1000          # stand-in for max_features=120000 (synthetic table)
E_RAW = 300           # embed_size in the PyTorch module
E_PAD = 384           # lane-aligned, zero-padded embedding width used on-chip
HIDDEN = 64           # self.hidden_size
LIN = 64              # self.linear out features
BATCH = 8
SEQ = 8


# ---------------------------- Pallas kernel ---------------------------------
def _bilstm_kernel(ids_ref,              # (S*B,) int32 token ids, SMEM
                   emb_hbm,              # (VOCAB, E_PAD) f32, HBM (pl.ANY)
                   wih_ref, bih_ref,     # (E_PAD, 8H), (1, 8H)  gate-interleaved
                   whh_ref,              # (2H, 8H)  block-diagonal, interleaved
                   wlin_ref, blin_ref,   # (4H, LIN), (1, LIN)
                   wout_ref, bout_ref,   # (1, LIN), (1, 1)
                   out_ref,              # (B, 1)
                   emb_scr,              # scratch (S*B, E_PAD)
                   xg_scr,               # scratch (S, B, 8H)
                   dma_sem):             # scalar DMA semaphore
    S, B, G8 = xg_scr.shape              # G8 = 8*H
    H2 = whh_ref.shape[0]                # 2*H
    H = H2 // 2
    n_tok = ids_ref.shape[0]             # S*B

    # ---- in-kernel embedding gather: HBM rows -> VMEM scratch via DMA ------
    @pl.loop(0, n_tok)
    def _(k):
        pltpu.make_async_copy(emb_hbm.at[ids_ref[k]], emb_scr.at[k],
                              dma_sem).start()

    @pl.loop(0, n_tok)
    def _(k):
        pltpu.make_async_copy(emb_hbm.at[ids_ref[k]], emb_scr.at[k],
                              dma_sem).wait()

    # ---- fused input projection: both directions, all timesteps, 1 matmul --
    xg = jnp.dot(emb_scr[...], wih_ref[...],
                 preferred_element_type=jnp.float32)           # (S*B, 8H)
    xg_scr[...] = (xg + bih_ref[...]).reshape(S, B, G8)

    whh = whh_ref[...]                                         # (2H, 8H)

    # Within every 2H-wide gate group, lanes 0:H are forward, H:2H backward.
    fwd_mask = (lax.broadcasted_iota(jnp.int32, (B, G8), 1) % H2) < H

    # ---- fused bidirectional recurrence: one (B,2H)x(2H,8H) matmul / step --
    # Carry lanes 0:H are the forward direction (time s), lanes H:2H are the
    # backward direction (time S-1-s).  Mean/max pooling commutes with the
    # per-direction time order, so it is accumulated on the fly.
    def step(s, carry):
        h, c, acc_sum, acc_max = carry                         # all (B, 2H)
        hg = jnp.dot(h, whh, preferred_element_type=jnp.float32)   # (B, 8H)
        gates = hg + jnp.where(fwd_mask, xg_scr[s], xg_scr[S - 1 - s])
        i = jax.nn.sigmoid(gates[:, 0 * H2:1 * H2])            # (B, 2H) each
        f = jax.nn.sigmoid(gates[:, 1 * H2:2 * H2])
        g = jnp.tanh(gates[:, 2 * H2:3 * H2])
        o = jax.nn.sigmoid(gates[:, 3 * H2:4 * H2])
        c = f * c + i * g
        h = o * jnp.tanh(c)
        return (h, c, acc_sum + h, jnp.maximum(acc_max, h))

    zeros = jnp.zeros((B, H2), jnp.float32)
    init = (zeros, zeros, zeros, jnp.full((B, H2), -jnp.inf, jnp.float32))
    _, _, acc_sum, acc_max = lax.fori_loop(0, S, step, init, unroll=True)

    # conc = cat(avg_pool, max_pool) = [avg_f | avg_b | max_f | max_b] (B, 4H)
    avg = acc_sum * (1.0 / S)                                  # (B, 2H)
    conc = jnp.concatenate([avg, acc_max], axis=1)             # (B, 4H)

    hid = jnp.dot(conc, wlin_ref[...],
                  preferred_element_type=jnp.float32) + blin_ref[...]
    hid = jnp.maximum(hid, 0.0)                  # ReLU (dropout = identity)
    # final (LIN -> 1) layer as broadcast-mul + lane reduction
    out_ref[...] = (jnp.sum(hid * wout_ref[...], axis=1, keepdims=True)
                    + bout_ref[...])


def bilstm_forward(x_ids, params):
    """x_ids: (B, S) int32 token ids  ->  (B, 1) float32 logits."""
    B, S = x_ids.shape
    H = HIDDEN
    # Flatten ids time-major; embedding rows are gathered inside the kernel.
    ids_t = x_ids.T.reshape(S * B).astype(jnp.int32)           # (S*B,)

    smem = pl.BlockSpec(memory_space=pltpu.MemorySpace.SMEM)
    vmem = pl.BlockSpec(memory_space=pltpu.MemorySpace.VMEM)
    hbm = pl.BlockSpec(memory_space=pl.ANY)

    return pl.pallas_call(
        _bilstm_kernel,
        out_shape=jax.ShapeDtypeStruct((B, 1), jnp.float32),
        in_specs=[smem, hbm, vmem, vmem, vmem, vmem, vmem, vmem, vmem],
        out_specs=vmem,
        scratch_shapes=[
            pltpu.VMEM((S * B, E_PAD), jnp.float32),   # gathered embeddings
            pltpu.VMEM((S, B, 8 * H), jnp.float32),    # input-gate projections
            pltpu.SemaphoreType.DMA(()),
        ],
    )(ids_t, params["embedding"],
      params["wih_il"], params["b_il"], params["whh_blk"],
      params["wlin"], params["blin"], params["wout"].T, params["bout"])


# ------------------------ pure-JAX reference (for checking) -----------------
def bilstm_reference(x_ids, p):
    emb = jnp.take(p["embedding"], x_ids, axis=0)              # (B, S, E_PAD)
    B, S, _ = emb.shape
    H = HIDDEN

    def run_dir(wih, whh, b, reverse):
        seq = emb[:, ::-1, :] if reverse else emb

        def step(carry, x_t):
            h, c = carry
            gates = x_t @ wih + h @ whh + b[0]
            i, f, g, o = jnp.split(gates, 4, axis=1)
            i, f, o = jax.nn.sigmoid(i), jax.nn.sigmoid(f), jax.nn.sigmoid(o)
            g = jnp.tanh(g)
            c = f * c + i * g
            h = o * jnp.tanh(c)
            return (h, c), h

        init = (jnp.zeros((B, H), jnp.float32), jnp.zeros((B, H), jnp.float32))
        _, hs = lax.scan(step, init, jnp.swapaxes(seq, 0, 1))
        hs = jnp.swapaxes(hs, 0, 1)                            # (B, S, H)
        return hs[:, ::-1, :] if reverse else hs

    h_f = run_dir(p["wih_f"], p["whh_f"], p["b_f"], False)
    h_b = run_dir(p["wih_b"], p["whh_b"], p["b_b"], True)
    h_lstm = jnp.concatenate([h_f, h_b], axis=-1)              # (B, S, 2H)
    avg = jnp.mean(h_lstm, axis=1)
    mx = jnp.max(h_lstm, axis=1)
    conc = jnp.concatenate([avg, mx], axis=1)                  # (B, 4H)
    hid = jax.nn.relu(conc @ p["wlin"] + p["blin"][0])
    return hid @ p["wout"] + p["bout"][0]


# ------------------------------ params --------------------------------------
def _interleave_cols(wf, wb, H):
    """Per-direction (in, 4H) gate columns -> (in, 8H) interleaved per gate:
    [i_f i_b | f_f f_b | g_f g_b | o_f o_b], each block H wide."""
    cols = []
    for k in range(4):
        cols.append(wf[:, k * H:(k + 1) * H])
        cols.append(wb[:, k * H:(k + 1) * H])
    return jnp.concatenate(cols, axis=1)


def _block_diag_whh(whh_f, whh_b, H):
    """(H,4H)+(H,4H) -> block-diagonal (2H, 8H) with interleaved gate cols:
    forward rows drive only forward gate columns and vice versa."""
    blk = jnp.zeros((2 * H, 8 * H), jnp.float32)
    for k in range(4):
        blk = blk.at[:H, k * 2 * H:k * 2 * H + H].set(whh_f[:, k * H:(k + 1) * H])
        blk = blk.at[H:, k * 2 * H + H:(k + 1) * 2 * H].set(whh_b[:, k * H:(k + 1) * H])
    return blk


def init_params(key):
    H = HIDDEN
    ks = jax.random.split(key, 12)
    s = 1.0 / jnp.sqrt(H)

    def u(k, shape, scale):
        return jax.random.uniform(k, shape, jnp.float32, -scale, scale)

    def pad_rows(w):                     # (E_RAW, n) -> (E_PAD, n), zero rows
        return jnp.concatenate(
            [w, jnp.zeros((E_PAD - E_RAW, w.shape[1]), jnp.float32)], axis=0)

    emb = jax.random.normal(ks[0], (VOCAB, E_RAW), jnp.float32) * 0.1
    emb = jnp.concatenate(
        [emb, jnp.zeros((VOCAB, E_PAD - E_RAW), jnp.float32)], axis=1)

    # per-direction weights stored as (in, 4H); PyTorch stores (4H, in)
    wih_f = pad_rows(u(ks[1], (E_RAW, 4 * H), s))
    whh_f = u(ks[2], (H, 4 * H), s)
    b_f = u(ks[3], (1, 4 * H), s) + u(ks[4], (1, 4 * H), s)    # b_ih + b_hh
    wih_b = pad_rows(u(ks[5], (E_RAW, 4 * H), s))
    whh_b = u(ks[6], (H, 4 * H), s)
    b_b = u(ks[7], (1, 4 * H), s) + u(ks[8], (1, 4 * H), s)

    return {
        "embedding": emb,                                      # (VOCAB, E_PAD)
        # raw per-direction weights (reference layout)
        "wih_f": wih_f, "whh_f": whh_f, "b_f": b_f,
        "wih_b": wih_b, "whh_b": whh_b, "b_b": b_b,
        # kernel layout: gate-interleaved columns, block-diagonal recurrent
        "wih_il": _interleave_cols(wih_f, wih_b, H),           # (E_PAD, 8H)
        "b_il": _interleave_cols(b_f, b_b, H),                 # (1, 8H)
        "whh_blk": _block_diag_whh(whh_f, whh_b, H),           # (2H, 8H)
        "wlin": u(ks[9], (4 * H, LIN), 1.0 / jnp.sqrt(4 * H)),
        "blin": jnp.zeros((1, LIN), jnp.float32),
        "wout": u(ks[10], (LIN, 1), 1.0 / jnp.sqrt(LIN)),
        "bout": jnp.zeros((1, 1), jnp.float32),
    }


if __name__ == "__main__":
    key = jax.random.PRNGKey(0)
    pkey, xkey = jax.random.split(key)
    params = init_params(pkey)
    x = jax.random.randint(xkey, (BATCH, SEQ), 0, VOCAB, dtype=jnp.int32)

    out = jax.block_until_ready(bilstm_forward(x, params))
    ref = jax.block_until_ready(bilstm_reference(x, params))

    assert out.shape == (BATCH, 1), out.shape
    assert jnp.max(jnp.abs(out - ref)) < 1e-4, (out, ref)
    print("KERNEL_OK")
</pallas_src>

<mosaic_0001>
module attributes {stable_mosaic.version = 11 : i64} {
  func.func @_bilstm_kernel(%arg0: memref<64xi32, #tpu.memory_space<smem>>, %arg1: memref<1000x384xf32, #tpu.memory_space<any>>, %arg2: memref<384x512xf32, #tpu.memory_space<vmem>>, %arg3: memref<1x512xf32, #tpu.memory_space<vmem>>, %arg4: memref<128x512xf32, #tpu.memory_space<vmem>>, %arg5: memref<256x64xf32, #tpu.memory_space<vmem>>, %arg6: memref<1x64xf32, #tpu.memory_space<vmem>>, %arg7: memref<1x64xf32, #tpu.memory_space<vmem>>, %arg8: memref<1x1xf32, #tpu.memory_space<vmem>>, %arg9: memref<8x1xf32, #tpu.memory_space<vmem>>, %arg10: memref<64x384xf32, #tpu.memory_space<vmem>>, %arg11: memref<8x8x512xf32, #tpu.memory_space<vmem>>, %arg12: memref<!tpu.dma_semaphore, #tpu.memory_space<semaphore_mem>>) attributes {dimension_semantics = [], scalar_prefetch = 0 : i64, scratch_operands = 3 : i64, tpu.core_type = #tpu.core_type<tc>} {
    %c0_i32 = arith.constant 0 : i32
    %c64_i32 = arith.constant 64 : i32
    %0 = arith.addi %c0_i32, %c64_i32 : i32
    %c1_i32 = arith.constant 1 : i32
    scf.for %arg13 = %c0_i32 to %0 step %c1_i32  : i32 {
      %c1_i32_111 = arith.constant 1 : i32
      %347 = arith.muli %arg13, %c1_i32_111 : i32
      %c0_i32_112 = arith.constant 0 : i32
      %348 = arith.addi %c0_i32_112, %347 : i32
      %349 = arith.index_cast %348 : i32 to index
      %350 = memref.load %arg0[%349] : memref<64xi32, #tpu.memory_space<smem>>
      %c0_i32_113 = arith.constant 0 : i32
      %351 = tpu.memref_slice %arg1[%350, %c0_i32_113] : memref<1000x384xf32, #tpu.memory_space<any>> -> memref<1x384xf32, #tpu.memory_space<any>>
      %352 = tpu.memref_squeeze %351 : memref<1x384xf32, #tpu.memory_space<any>> -> memref<384xf32, #tpu.memory_space<any>>
      %c0_i32_114 = arith.constant 0 : i32
      %353 = tpu.memref_slice %arg10[%348, %c0_i32_114] : memref<64x384xf32, #tpu.memory_space<vmem>> -> memref<1x384xf32, #tpu.memory_space<vmem>>
      %354 = tpu.memref_squeeze %353 : memref<1x384xf32, #tpu.memory_space<vmem>> -> memref<384xf32, #tpu.memory_space<vmem>>
      tpu.enqueue_dma source(%352 : memref<384xf32, #tpu.memory_space<any>>) target(%354 : memref<384xf32, #tpu.memory_space<vmem>>) target_semaphore(%arg12 : memref<!tpu.dma_semaphore, #tpu.memory_space<semaphore_mem>>)
    }
    %c64_i32_0 = arith.constant 64 : i32
    %c0_i32_1 = arith.constant 0 : i32
    %c64_i32_2 = arith.constant 64 : i32
    %1 = arith.addi %c0_i32_1, %c64_i32_2 : i32
    %c1_i32_3 = arith.constant 1 : i32
    scf.for %arg13 = %c0_i32_1 to %1 step %c1_i32_3  : i32 {
      %c1_i32_111 = arith.constant 1 : i32
      %347 = arith.muli %arg13, %c1_i32_111 : i32
      %c0_i32_112 = arith.constant 0 : i32
      %348 = arith.addi %c0_i32_112, %347 : i32
      %349 = arith.index_cast %348 : i32 to index
      %350 = memref.load %arg0[%349] : memref<64xi32, #tpu.memory_space<smem>>
      %c0_i32_113 = arith.constant 0 : i32
      %351 = tpu.memref_slice %arg1[%350, %c0_i32_113] : memref<1000x384xf32, #tpu.memory_space<any>> -> memref<1x384xf32, #tpu.memory_space<any>>
      %352 = tpu.memref_squeeze %351 : memref<1x384xf32, #tpu.memory_space<any>> -> memref<384xf32, #tpu.memory_space<any>>
      %c0_i32_114 = arith.constant 0 : i32
      %353 = tpu.memref_slice %arg10[%348, %c0_i32_114] : memref<64x384xf32, #tpu.memory_space<vmem>> -> memref<1x384xf32, #tpu.memory_space<vmem>>
      %354 = tpu.memref_squeeze %353 : memref<1x384xf32, #tpu.memory_space<vmem>> -> memref<384xf32, #tpu.memory_space<vmem>>
      tpu.wait_dma2 semaphore(%arg12 : memref<!tpu.dma_semaphore, #tpu.memory_space<semaphore_mem>>) src(%352 : memref<384xf32, #tpu.memory_space<any>>) dst(%354 : memref<384xf32, #tpu.memory_space<vmem>>)
    }
    %c64_i32_4 = arith.constant 64 : i32
    %c0 = arith.constant 0 : index
    %c0_5 = arith.constant 0 : index
    %2 = vector.load %arg10[%c0, %c0_5] : memref<64x384xf32, #tpu.memory_space<vmem>>, vector<64x384xf32>
    %c0_6 = arith.constant 0 : index
    %c0_7 = arith.constant 0 : index
    %3 = vector.load %arg2[%c0_6, %c0_7] : memref<384x512xf32, #tpu.memory_space<vmem>>, vector<384x512xf32>
    %cst = arith.constant dense<0.000000e+00> : vector<64x512xf32>
    %4 = tpu.matmul %2, %3, %cst {dimension_numbers = #tpu.dot_dimension_numbers<[1], [0], [0], [1], [0, 0, 1, 1], [], []>} : vector<64x384xf32>, vector<384x512xf32>, vector<64x512xf32> -> vector<64x512xf32>
    %c0_8 = arith.constant 0 : index
    %c0_9 = arith.constant 0 : index
    %5 = vector.load %arg3[%c0_8, %c0_9] : memref<1x512xf32, #tpu.memory_space<vmem>>, vector<1x512xf32>
    %6 = vector.broadcast %5 : vector<1x512xf32> to vector<64x512xf32>
    %7 = arith.addf %4, %6 : vector<64x512xf32>
    %8 = vector.shape_cast %7 : vector<64x512xf32> to vector<8x8x512xf32>
    %c0_10 = arith.constant 0 : index
    %c0_11 = arith.constant 0 : index
    %c0_12 = arith.constant 0 : index
    %9 = vector.load %arg11[%c0_10, %c0_11, %c0_12] : memref<8x8x512xf32, #tpu.memory_space<vmem>>, vector<8x8x512xf32>
    tpu.vector_store %arg11[%c0_10, %c0_11, %c0_12], %8 {strides = array<i32>} : memref<8x8x512xf32, #tpu.memory_space<vmem>>, vector<8x8x512xf32>,
    %c0_13 = arith.constant 0 : index
    %c0_14 = arith.constant 0 : index
    %10 = vector.load %arg4[%c0_13, %c0_14] : memref<128x512xf32, #tpu.memory_space<vmem>>, vector<128x512xf32>
    %11 = tpu.iota {dimensions = array<i32: 1>} : vector<8x512xi32>
    %c128_i32 = arith.constant 128 : i32
    %c0_i32_15 = arith.constant 0 : i32
    %12 = arith.cmpi eq, %c128_i32, %c0_i32_15 : i32
    %c1_i32_16 = arith.constant 1 : i32
    %13 = arith.select %12, %c1_i32_16, %c128_i32 : i32
    %14 = vector.broadcast %13 : i32 to vector<8x512xi32>
    %15 = arith.remsi %11, %14 : vector<8x512xi32>
    %c0_i32_17 = arith.constant 0 : i32
    %16 = vector.broadcast %c0_i32_17 : i32 to vector<8x512xi32>
    %17 = arith.cmpi ne, %15, %16 : vector<8x512xi32>
    %c0_i32_18 = arith.constant 0 : i32
    %18 = vector.broadcast %c0_i32_18 : i32 to vector<8x512xi32>
    %19 = arith.cmpi slt, %15, %18 : vector<8x512xi32>
    %c0_i32_19 = arith.constant 0 : i32
    %20 = arith.cmpi slt, %13, %c0_i32_19 : i32
    %21 = vector.broadcast %20 : i1 to vector<8x512xi1>
    %22 = vector.broadcast %21 : vector<8x512xi1> to vector<8x512xi1>
    %23 = arith.xori %19, %22 : vector<8x512xi1>
    %24 = arith.andi %23, %17 : vector<8x512xi1>
    %25 = vector.broadcast %13 : i32 to vector<8x512xi32>
    %26 = arith.addi %15, %25 : vector<8x512xi32>
    %27 = arith.select %24, %26, %15 : vector<8x512xi1>, vector<8x512xi32>
    %c64_i32_20 = arith.constant 64 : i32
    %28 = vector.broadcast %c64_i32_20 : i32 to vector<8x512xi32>
    %29 = arith.cmpi slt, %27, %28 : vector<8x512xi32>
    %cst_21 = arith.constant 0.000000e+00 : f32
    %30 = vector.broadcast %cst_21 : f32 to vector<8x128xf32>
    %cst_22 = arith.constant 0xFF800000 : f32
    %31 = vector.broadcast %cst_22 : f32 to vector<8x128xf32>
    %c0_i32_23 = arith.constant 0 : i32
    %cst_24 = arith.constant dense<0.000000e+00> : vector<8x512xf32>
    %32 = tpu.matmul %30, %10, %cst_24 {dimension_numbers = #tpu.dot_dimension_numbers<[1], [0], [0], [1], [0, 0, 1, 1], [], []>} : vector<8x128xf32>, vector<128x512xf32>, vector<8x512xf32> -> vector<8x512xf32>
    %33 = arith.index_cast %c0_i32_23 : i32 to index
    %c0_25 = arith.constant 0 : index
    %c0_26 = arith.constant 0 : index
    %34 = vector.load %arg11[%33, %c0_25, %c0_26] : memref<8x8x512xf32, #tpu.memory_space<vmem>>, vector<1x8x512xf32>
    %35 = vector.shape_cast %34 : vector<1x8x512xf32> to vector<8x512xf32>
    %c7_i32 = arith.constant 7 : i32
    %36 = arith.subi %c7_i32, %c0_i32_23 : i32
    %37 = arith.index_cast %36 : i32 to index
    %c0_27 = arith.constant 0 : index
    %c0_28 = arith.constant 0 : index
    %38 = vector.load %arg11[%37, %c0_27, %c0_28] : memref<8x8x512xf32, #tpu.memory_space<vmem>>, vector<1x8x512xf32>
    %39 = vector.shape_cast %38 : vector<1x8x512xf32> to vector<8x512xf32>
    %40 = arith.select %29, %35, %39 : vector<8x512xi1>, vector<8x512xf32>
    %41 = arith.addf %32, %40 : vector<8x512xf32>
    %42 = vector.extract_strided_slice %41 {offsets = [0, 0], sizes = [8, 128], strides = [1, 1]} : vector<8x512xf32> to vector<8x128xf32>
    %43 = arith.negf %42 : vector<8x128xf32>
    %44 = math.exp %43 : vector<8x128xf32>
    %cst_29 = arith.constant 1.000000e+00 : f32
    %45 = vector.broadcast %cst_29 : f32 to vector<8x128xf32>
    %46 = arith.addf %45, %44 : vector<8x128xf32>
    %47 = arith.divf %45, %46 : vector<8x128xf32>
    %48 = vector.extract_strided_slice %41 {offsets = [0, 128], sizes = [8, 128], strides = [1, 1]} : vector<8x512xf32> to vector<8x128xf32>
    %49 = arith.negf %48 : vector<8x128xf32>
    %50 = math.exp %49 : vector<8x128xf32>
    %cst_30 = arith.constant 1.000000e+00 : f32
    %51 = vector.broadcast %cst_30 : f32 to vector<8x128xf32>
    %52 = arith.addf %51, %50 : vector<8x128xf32>
    %53 = arith.divf %51, %52 : vector<8x128xf32>
    %54 = vector.extract_strided_slice %41 {offsets = [0, 256], sizes = [8, 128], strides = [1, 1]} : vector<8x512xf32> to vector<8x128xf32>
    %55 = math.tanh %54 : vector<8x128xf32>
    %56 = vector.extract_strided_slice %41 {offsets = [0, 384], sizes = [8, 128], strides = [1, 1]} : vector<8x512xf32> to vector<8x128xf32>
    %57 = arith.negf %56 : vector<8x128xf32>
    %58 = math.exp %57 : vector<8x128xf32>
    %cst_31 = arith.constant 1.000000e+00 : f32
    %59 = vector.broadcast %cst_31 : f32 to vector<8x128xf32>
    %60 = arith.addf %59, %58 : vector<8x128xf32>
    %61 = arith.divf %59, %60 : vector<8x128xf32>
    %62 = arith.mulf %53, %30 : vector<8x128xf32>
    %63 = arith.mulf %47, %55 : vector<8x128xf32>
    %64 = arith.addf %62, %63 : vector<8x128xf32>
    %65 = math.tanh %64 : vector<8x128xf32>
    %66 = arith.mulf %61, %65 : vector<8x128xf32>
    %67 = arith.addf %30, %66 : vector<8x128xf32>
    %68 = arith.maximumf %31, %66 : vector<8x128xf32>
    %c1_i32_32 = arith.constant 1 : i32
    %cst_33 = arith.constant dense<0.000000e+00> : vector<8x512xf32>
    %69 = tpu.matmul %66, %10, %cst_33 {dimension_numbers = #tpu.dot_dimension_numbers<[1], [0], [0], [1], [0, 0, 1, 1], [], []>} : vector<8x128xf32>, vector<128x512xf32>, vector<8x512xf32> -> vector<8x512xf32>
    %70 = arith.index_cast %c1_i32_32 : i32 to index
    %c0_34 = arith.constant 0 : index
    %c0_35 = arith.constant 0 : index
    %71 = vector.load %arg11[%70, %c0_34, %c0_35] : memref<8x8x512xf32, #tpu.memory_space<vmem>>, vector<1x8x512xf32>
    %72 = vector.shape_cast %71 : vector<1x8x512xf32> to vector<8x512xf32>
    %c7_i32_36 = arith.constant 7 : i32
    %73 = arith.subi %c7_i32_36, %c1_i32_32 : i32
    %74 = arith.index_cast %73 : i32 to index
    %c0_37 = arith.constant 0 : index
    %c0_38 = arith.constant 0 : index
    %75 = vector.load %arg11[%74, %c0_37, %c0_38] : memref<8x8x512xf32, #tpu.memory_space<vmem>>, vector<1x8x512xf32>
    %76 = vector.shape_cast %75 : vector<1x8x512xf32> to vector<8x512xf32>
    %77 = arith.select %29, %72, %76 : vector<8x512xi1>, vector<8x512xf32>
    %78 = arith.addf %69, %77 : vector<8x512xf32>
    %79 = vector.extract_strided_slice %78 {offsets = [0, 0], sizes = [8, 128], strides = [1, 1]} : vector<8x512xf32> to vector<8x128xf32>
    %80 = arith.negf %79 : vector<8x128xf32>
    %81 = math.exp %80 : vector<8x128xf32>
    %cst_39 = arith.constant 1.000000e+00 : f32
    %82 = vector.broadcast %cst_39 : f32 to vector<8x128xf32>
    %83 = arith.addf %82, %81 : vector<8x128xf32>
    %84 = arith.divf %82, %83 : vector<8x128xf32>
    %85 = vector.extract_strided_slice %78 {offsets = [0, 128], sizes = [8, 128], strides = [1, 1]} : vector<8x512xf32> to vector<8x128xf32>
    %86 = arith.negf %85 : vector<8x128xf32>
    %87 = math.exp %86 : vector<8x128xf32>
    %cst_40 = arith.constant 1.000000e+00 : f32
    %88 = vector.broadcast %cst_40 : f32 to vector<8x128xf32>
    %89 = arith.addf %88, %87 : vector<8x128xf32>
    %90 = arith.divf %88, %89 : vector<8x128xf32>
    %91 = vector.extract_strided_slice %78 {offsets = [0, 256], sizes = [8, 128], strides = [1, 1]} : vector<8x512xf32> to vector<8x128xf32>
    %92 = math.tanh %91 : vector<8x128xf32>
    %93 = vector.extract_strided_slice %78 {offsets = [0, 384], sizes = [8, 128], strides = [1, 1]} : vector<8x512xf32> to vector<8x128xf32>
    %94 = arith.negf %93 : vector<8x128xf32>
    %95 = math.exp %94 : vector<8x128xf32>
    %cst_41 = arith.constant 1.000000e+00 : f32
    %96 = vector.broadcast %cst_41 : f32 to vector<8x128xf32>
    %97 = arith.addf %96, %95 : vector<8x128xf32>
    %98 = arith.divf %96, %97 : vector<8x128xf32>
    %99 = arith.mulf %90, %64 : vector<8x128xf32>
    %100 = arith.mulf %84, %92 : vector<8x128xf32>
    %101 = arith.addf %99, %100 : vector<8x128xf32>
    %102 = math.tanh %101 : vector<8x128xf32>
    %103 = arith.mulf %98, %102 : vector<8x128xf32>
    %104 = arith.addf %67, %103 : vector<8x128xf32>
    %105 = arith.maximumf %68, %103 : vector<8x128xf32>
    %c2_i32 = arith.constant 2 : i32
    %cst_42 = arith.constant dense<0.000000e+00> : vector<8x512xf32>
    %106 = tpu.matmul %103, %10, %cst_42 {dimension_numbers = #tpu.dot_dimension_numbers<[1], [0], [0], [1], [0, 0, 1, 1], [], []>} : vector<8x128xf32>, vector<128x512xf32>, vector<8x512xf32> -> vector<8x512xf32>
    %107 = arith.index_cast %c2_i32 : i32 to index
    %c0_43 = arith.constant 0 : index
    %c0_44 = arith.constant 0 : index
    %108 = vector.load %arg11[%107, %c0_43, %c0_44] : memref<8x8x512xf32, #tpu.memory_space<vmem>>, vector<1x8x512xf32>
    %109 = vector.shape_cast %108 : vector<1x8x512xf32> to vector<8x512xf32>
    %c7_i32_45 = arith.constant 7 : i32
    %110 = arith.subi %c7_i32_45, %c2_i32 : i32
    %111 = arith.index_cast %110 : i32 to index
    %c0_46 = arith.constant 0 : index
    %c0_47 = arith.constant 0 : index
    %112 = vector.load %arg11[%111, %c0_46, %c0_47] : memref<8x8x512xf32, #tpu.memory_space<vmem>>, vector<1x8x512xf32>
    %113 = vector.shape_cast %112 : vector<1x8x512xf32> to vector<8x512xf32>
    %114 = arith.select %29, %109, %113 : vector<8x512xi1>, vector<8x512xf32>
    %115 = arith.addf %106, %114 : vector<8x512xf32>
    %116 = vector.extract_strided_slice %115 {offsets = [0, 0], sizes = [8, 128], strides = [1, 1]} : vector<8x512xf32> to vector<8x128xf32>
    %117 = arith.negf %116 : vector<8x128xf32>
    %118 = math.exp %117 : vector<8x128xf32>
    %cst_48 = arith.constant 1.000000e+00 : f32
    %119 = vector.broadcast %cst_48 : f32 to vector<8x128xf32>
    %120 = arith.addf %119, %118 : vector<8x128xf32>
    %121 = arith.divf %119, %120 : vector<8x128xf32>
    %122 = vector.extract_strided_slice %115 {offsets = [0, 128], sizes = [8, 128], strides = [1, 1]} : vector<8x512xf32> to vector<8x128xf32>
    %123 = arith.negf %122 : vector<8x128xf32>
    %124 = math.exp %123 : vector<8x128xf32>
    %cst_49 = arith.constant 1.000000e+00 : f32
    %125 = vector.broadcast %cst_49 : f32 to vector<8x128xf32>
    %126 = arith.addf %125, %124 : vector<8x128xf32>
    %127 = arith.divf %125, %126 : vector<8x128xf32>
    %128 = vector.extract_strided_slice %115 {offsets = [0, 256], sizes = [8, 128], strides = [1, 1]} : vector<8x512xf32> to vector<8x128xf32>
    %129 = math.tanh %128 : vector<8x128xf32>
    %130 = vector.extract_strided_slice %115 {offsets = [0, 384], sizes = [8, 128], strides = [1, 1]} : vector<8x512xf32> to vector<8x128xf32>
    %131 = arith.negf %130 : vector<8x128xf32>
    %132 = math.exp %131 : vector<8x128xf32>
    %cst_50 = arith.constant 1.000000e+00 : f32
    %133 = vector.broadcast %cst_50 : f32 to vector<8x128xf32>
    %134 = arith.addf %133, %132 : vector<8x128xf32>
    %135 = arith.divf %133, %134 : vector<8x128xf32>
    %136 = arith.mulf %127, %101 : vector<8x128xf32>
    %137 = arith.mulf %121, %129 : vector<8x128xf32>
    %138 = arith.addf %136, %137 : vector<8x128xf32>
    %139 = math.tanh %138 : vector<8x128xf32>
    %140 = arith.mulf %135, %139 : vector<8x128xf32>
    %141 = arith.addf %104, %140 : vector<8x128xf32>
    %142 = arith.maximumf %105, %140 : vector<8x128xf32>
    %c3_i32 = arith.constant 3 : i32
    %cst_51 = arith.constant dense<0.000000e+00> : vector<8x512xf32>
    %143 = tpu.matmul %140, %10, %cst_51 {dimension_numbers = #tpu.dot_dimension_numbers<[1], [0], [0], [1], [0, 0, 1, 1], [], []>} : vector<8x128xf32>, vector<128x512xf32>, vector<8x512xf32> -> vector<8x512xf32>
    %144 = arith.index_cast %c3_i32 : i32 to index
    %c0_52 = arith.constant 0 : index
    %c0_53 = arith.constant 0 : index
    %145 = vector.load %arg11[%144, %c0_52, %c0_53] : memref<8x8x512xf32, #tpu.memory_space<vmem>>, vector<1x8x512xf32>
    %146 = vector.shape_cast %145 : vector<1x8x512xf32> to vector<8x512xf32>
    %c7_i32_54 = arith.constant 7 : i32
    %147 = arith.subi %c7_i32_54, %c3_i32 : i32
    %148 = arith.index_cast %147 : i32 to index
    %c0_55 = arith.constant 0 : index
    %c0_56 = arith.constant 0 : index
    %149 = vector.load %arg11[%148, %c0_55, %c0_56] : memref<8x8x512xf32, #tpu.memory_space<vmem>>, vector<1x8x512xf32>
    %150 = vector.shape_cast %149 : vector<1x8x512xf32> to vector<8x512xf32>
    %151 = arith.select %29, %146, %150 : vector<8x512xi1>, vector<8x512xf32>
    %152 = arith.addf %143, %151 : vector<8x512xf32>
    %153 = vector.extract_strided_slice %152 {offsets = [0, 0], sizes = [8, 128], strides = [1, 1]} : vector<8x512xf32> to vector<8x128xf32>
    %154 = arith.negf %153 : vector<8x128xf32>
    %155 = math.exp %154 : vector<8x128xf32>
    %cst_57 = arith.constant 1.000000e+00 : f32
    %156 = vector.broadcast %cst_57 : f32 to vector<8x128xf32>
    %157 = arith.addf %156, %155 : vector<8x128xf32>
    %158 = arith.divf %156, %157 : vector<8x128xf32>
    %159 = vector.extract_strided_slice %152 {offsets = [0, 128], sizes = [8, 128], strides = [1, 1]} : vector<8x512xf32> to vector<8x128xf32>
    %160 = arith.negf %159 : vector<8x128xf32>
    %161 = math.exp %160 : vector<8x128xf32>
    %cst_58 = arith.constant 1.000000e+00 : f32
    %162 = vector.broadcast %cst_58 : f32 to vector<8x128xf32>
    %163 = arith.addf %162, %161 : vector<8x128xf32>
    %164 = arith.divf %162, %163 : vector<8x128xf32>
    %165 = vector.extract_strided_slice %152 {offsets = [0, 256], sizes = [8, 128], strides = [1, 1]} : vector<8x512xf32> to vector<8x128xf32>
    %166 = math.tanh %165 : vector<8x128xf32>
    %167 = vector.extract_strided_slice %152 {offsets = [0, 384], sizes = [8, 128], strides = [1, 1]} : vector<8x512xf32> to vector<8x128xf32>
    %168 = arith.negf %167 : vector<8x128xf32>
    %169 = math.exp %168 : vector<8x128xf32>
    %cst_59 = arith.constant 1.000000e+00 : f32
    %170 = vector.broadcast %cst_59 : f32 to vector<8x128xf32>
    %171 = arith.addf %170, %169 : vector<8x128xf32>
    %172 = arith.divf %170, %171 : vector<8x128xf32>
    %173 = arith.mulf %164, %138 : vector<8x128xf32>
    %174 = arith.mulf %158, %166 : vector<8x128xf32>
    %175 = arith.addf %173, %174 : vector<8x128xf32>
    %176 = math.tanh %175 : vector<8x128xf32>
    %177 = arith.mulf %172, %176 : vector<8x128xf32>
    %178 = arith.addf %141, %177 : vector<8x128xf32>
    %179 = arith.maximumf %142, %177 : vector<8x128xf32>
    %c4_i32 = arith.constant 4 : i32
    %cst_60 = arith.constant dense<0.000000e+00> : vector<8x512xf32>
    %180 = tpu.matmul %177, %10, %cst_60 {dimension_numbers = #tpu.dot_dimension_numbers<[1], [0], [0], [1], [0, 0, 1, 1], [], []>} : vector<8x128xf32>, vector<128x512xf32>, vector<8x512xf32> -> vector<8x512xf32>
    %181 = arith.index_cast %c4_i32 : i32 to index
    %c0_61 = arith.constant 0 : index
    %c0_62 = arith.constant 0 : index
    %182 = vector.load %arg11[%181, %c0_61, %c0_62] : memref<8x8x512xf32, #tpu.memory_space<vmem>>, vector<1x8x512xf32>
    %183 = vector.shape_cast %182 : vector<1x8x512xf32> to vector<8x512xf32>
    %c7_i32_63 = arith.constant 7 : i32
    %184 = arith.subi %c7_i32_63, %c4_i32 : i32
    %185 = arith.index_cast %184 : i32 to index
    %c0_64 = arith.constant 0 : index
    %c0_65 = arith.constant 0 : index
    %186 = vector.load %arg11[%185, %c0_64, %c0_65] : memref<8x8x512xf32, #tpu.memory_space<vmem>>, vector<1x8x512xf32>
    %187 = vector.shape_cast %186 : vector<1x8x512xf32> to vector<8x512xf32>
    %188 = arith.select %29, %183, %187 : vector<8x512xi1>, vector<8x512xf32>
    %189 = arith.addf %180, %188 : vector<8x512xf32>
    %190 = vector.extract_strided_slice %189 {offsets = [0, 0], sizes = [8, 128], strides = [1, 1]} : vector<8x512xf32> to vector<8x128xf32>
    %191 = arith.negf %190 : vector<8x128xf32>
    %192 = math.exp %191 : vector<8x128xf32>
    %cst_66 = arith.constant 1.000000e+00 : f32
    %193 = vector.broadcast %cst_66 : f32 to vector<8x128xf32>
    %194 = arith.addf %193, %192 : vector<8x128xf32>
    %195 = arith.divf %193, %194 : vector<8x128xf32>
    %196 = vector.extract_strided_slice %189 {offsets = [0, 128], sizes = [8, 128], strides = [1, 1]} : vector<8x512xf32> to vector<8x128xf32>
    %197 = arith.negf %196 : vector<8x128xf32>
    %198 = math.exp %197 : vector<8x128xf32>
    %cst_67 = arith.constant 1.000000e+00 : f32
    %199 = vector.broadcast %cst_67 : f32 to vector<8x128xf32>
    %200 = arith.addf %199, %198 : vector<8x128xf32>
    %201 = arith.divf %199, %200 : vector<8x128xf32>
    %202 = vector.extract_strided_slice %189 {offsets = [0, 256], sizes = [8, 128], strides = [1, 1]} : vector<8x512xf32> to vector<8x128xf32>
    %203 = math.tanh %202 : vector<8x128xf32>
    %204 = vector.extract_strided_slice %189 {offsets = [0, 384], sizes = [8, 128], strides = [1, 1]} : vector<8x512xf32> to vector<8x128xf32>
    %205 = arith.negf %204 : vector<8x128xf32>
    %206 = math.exp %205 : vector<8x128xf32>
    %cst_68 = arith.constant 1.000000e+00 : f32
    %207 = vector.broadcast %cst_68 : f32 to vector<8x128xf32>
    %208 = arith.addf %207, %206 : vector<8x128xf32>
    %209 = arith.divf %207, %208 : vector<8x128xf32>
    %210 = arith.mulf %201, %175 : vector<8x128xf32>
    %211 = arith.mulf %195, %203 : vector<8x128xf32>
    %212 = arith.addf %210, %211 : vector<8x128xf32>
    %213 = math.tanh %212 : vector<8x128xf32>
    %214 = arith.mulf %209, %213 : vector<8x128xf32>
    %215 = arith.addf %178, %214 : vector<8x128xf32>
    %216 = arith.maximumf %179, %214 : vector<8x128xf32>
    %c5_i32 = arith.constant 5 : i32
    %cst_69 = arith.constant dense<0.000000e+00> : vector<8x512xf32>
    %217 = tpu.matmul %214, %10, %cst_69 {dimension_numbers = #tpu.dot_dimension_numbers<[1], [0], [0], [1], [0, 0, 1, 1], [], []>} : vector<8x128xf32>, vector<128x512xf32>, vector<8x512xf32> -> vector<8x512xf32>
    %218 = arith.index_cast %c5_i32 : i32 to index
    %c0_70 = arith.constant 0 : index
    %c0_71 = arith.constant 0 : index
    %219 = vector.load %arg11[%218, %c0_70, %c0_71] : memref<8x8x512xf32, #tpu.memory_space<vmem>>, vector<1x8x512xf32>
    %220 = vector.shape_cast %219 : vector<1x8x512xf32> to vector<8x512xf32>
    %c7_i32_72 = arith.constant 7 : i32
    %221 = arith.subi %c7_i32_72, %c5_i32 : i32
    %222 = arith.index_cast %221 : i32 to index
    %c0_73 = arith.constant 0 : index
    %c0_74 = arith.constant 0 : index
    %223 = vector.load %arg11[%222, %c0_73, %c0_74] : memref<8x8x512xf32, #tpu.memory_space<vmem>>, vector<1x8x512xf32>
    %224 = vector.shape_cast %223 : vector<1x8x512xf32> to vector<8x512xf32>
    %225 = arith.select %29, %220, %224 : vector<8x512xi1>, vector<8x512xf32>
    %226 = arith.addf %217, %225 : vector<8x512xf32>
    %227 = vector.extract_strided_slice %226 {offsets = [0, 0], sizes = [8, 128], strides = [1, 1]} : vector<8x512xf32> to vector<8x128xf32>
    %228 = arith.negf %227 : vector<8x128xf32>
    %229 = math.exp %228 : vector<8x128xf32>
    %cst_75 = arith.constant 1.000000e+00 : f32
    %230 = vector.broadcast %cst_75 : f32 to vector<8x128xf32>
    %231 = arith.addf %230, %229 : vector<8x128xf32>
    %232 = arith.divf %230, %231 : vector<8x128xf32>
    %233 = vector.extract_strided_slice %226 {offsets = [0, 128], sizes = [8, 128], strides = [1, 1]} : vector<8x512xf32> to vector<8x128xf32>
    %234 = arith.negf %233 : vector<8x128xf32>
    %235 = math.exp %234 : vector<8x128xf32>
    %cst_76 = arith.constant 1.000000e+00 : f32
    %236 = vector.broadcast %cst_76 : f32 to vector<8x128xf32>
    %237 = arith.addf %236, %235 : vector<8x128xf32>
    %238 = arith.divf %236, %237 : vector<8x128xf32>
    %239 = vector.extract_strided_slice %226 {offsets = [0, 256], sizes = [8, 128], strides = [1, 1]} : vector<8x512xf32> to vector<8x128xf32>
    %240 = math.tanh %239 : vector<8x128xf32>
    %241 = vector.extract_strided_slice %226 {offsets = [0, 384], sizes = [8, 128], strides = [1, 1]} : vector<8x512xf32> to vector<8x128xf32>
    %242 = arith.negf %241 : vector<8x128xf32>
    %243 = math.exp %242 : vector<8x128xf32>
    %cst_77 = arith.constant 1.000000e+00 : f32
    %244 = vector.broadcast %cst_77 : f32 to vector<8x128xf32>
    %245 = arith.addf %244, %243 : vector<8x128xf32>
    %246 = arith.divf %244, %245 : vector<8x128xf32>
    %247 = arith.mulf %238, %212 : vector<8x128xf32>
    %248 = arith.mulf %232, %240 : vector<8x128xf32>
    %249 = arith.addf %247, %248 : vector<8x128xf32>
    %250 = math.tanh %249 : vector<8x128xf32>
    %251 = arith.mulf %246, %250 : vector<8x128xf32>
    %252 = arith.addf %215, %251 : vector<8x128xf32>
    %253 = arith.maximumf %216, %251 : vector<8x128xf32>
    %c6_i32 = arith.constant 6 : i32
    %cst_78 = arith.constant dense<0.000000e+00> : vector<8x512xf32>
    %254 = tpu.matmul %251, %10, %cst_78 {dimension_numbers = #tpu.dot_dimension_numbers<[1], [0], [0], [1], [0, 0, 1, 1], [], []>} : vector<8x128xf32>, vector<128x512xf32>, vector<8x512xf32> -> vector<8x512xf32>
    %255 = arith.index_cast %c6_i32 : i32 to index
    %c0_79 = arith.constant 0 : index
    %c0_80 = arith.constant 0 : index
    %256 = vector.load %arg11[%255, %c0_79, %c0_80] : memref<8x8x512xf32, #tpu.memory_space<vmem>>, vector<1x8x512xf32>
    %257 = vector.shape_cast %256 : vector<1x8x512xf32> to vector<8x512xf32>
    %c7_i32_81 = arith.constant 7 : i32
    %258 = arith.subi %c7_i32_81, %c6_i32 : i32
    %259 = arith.index_cast %258 : i32 to index
    %c0_82 = arith.constant 0 : index
    %c0_83 = arith.constant 0 : index
    %260 = vector.load %arg11[%259, %c0_82, %c0_83] : memref<8x8x512xf32, #tpu.memory_space<vmem>>, vector<1x8x512xf32>
    %261 = vector.shape_cast %260 : vector<1x8x512xf32> to vector<8x512xf32>
    %262 = arith.select %29, %257, %261 : vector<8x512xi1>, vector<8x512xf32>
    %263 = arith.addf %254, %262 : vector<8x512xf32>
    %264 = vector.extract_strided_slice %263 {offsets = [0, 0], sizes = [8, 128], strides = [1, 1]} : vector<8x512xf32> to vector<8x128xf32>
    %265 = arith.negf %264 : vector<8x128xf32>
    %266 = math.exp %265 : vector<8x128xf32>
    %cst_84 = arith.constant 1.000000e+00 : f32
    %267 = vector.broadcast %cst_84 : f32 to vector<8x128xf32>
    %268 = arith.addf %267, %266 : vector<8x128xf32>
    %269 = arith.divf %267, %268 : vector<8x128xf32>
    %270 = vector.extract_strided_slice %263 {offsets = [0, 128], sizes = [8, 128], strides = [1, 1]} : vector<8x512xf32> to vector<8x128xf32>
    %271 = arith.negf %270 : vector<8x128xf32>
    %272 = math.exp %271 : vector<8x128xf32>
    %cst_85 = arith.constant 1.000000e+00 : f32
    %273 = vector.broadcast %cst_85 : f32 to vector<8x128xf32>
    %274 = arith.addf %273, %272 : vector<8x128xf32>
    %275 = arith.divf %273, %274 : vector<8x128xf32>
    %276 = vector.extract_strided_slice %263 {offsets = [0, 256], sizes = [8, 128], strides = [1, 1]} : vector<8x512xf32> to vector<8x128xf32>
    %277 = math.tanh %276 : vector<8x128xf32>
    %278 = vector.extract_strided_slice %263 {offsets = [0, 384], sizes = [8, 128], strides = [1, 1]} : vector<8x512xf32> to vector<8x128xf32>
    %279 = arith.negf %278 : vector<8x128xf32>
    %280 = math.exp %279 : vector<8x128xf32>
    %cst_86 = arith.constant 1.000000e+00 : f32
    %281 = vector.broadcast %cst_86 : f32 to vector<8x128xf32>
    %282 = arith.addf %281, %280 : vector<8x128xf32>
    %283 = arith.divf %281, %282 : vector<8x128xf32>
    %284 = arith.mulf %275, %249 : vector<8x128xf32>
    %285 = arith.mulf %269, %277 : vector<8x128xf32>
    %286 = arith.addf %284, %285 : vector<8x128xf32>
    %287 = math.tanh %286 : vector<8x128xf32>
    %288 = arith.mulf %283, %287 : vector<8x128xf32>
    %289 = arith.addf %252, %288 : vector<8x128xf32>
    %290 = arith.maximumf %253, %288 : vector<8x128xf32>
    %c7_i32_87 = arith.constant 7 : i32
    %cst_88 = arith.constant dense<0.000000e+00> : vector<8x512xf32>
    %291 = tpu.matmul %288, %10, %cst_88 {dimension_numbers = #tpu.dot_dimension_numbers<[1], [0], [0], [1], [0, 0, 1, 1], [], []>} : vector<8x128xf32>, vector<128x512xf32>, vector<8x512xf32> -> vector<8x512xf32>
    %292 = arith.index_cast %c7_i32_87 : i32 to index
    %c0_89 = arith.constant 0 : index
    %c0_90 = arith.constant 0 : index
    %293 = vector.load %arg11[%292, %c0_89, %c0_90] : memref<8x8x512xf32, #tpu.memory_space<vmem>>, vector<1x8x512xf32>
    %294 = vector.shape_cast %293 : vector<1x8x512xf32> to vector<8x512xf32>
    %c7_i32_91 = arith.constant 7 : i32
    %295 = arith.subi %c7_i32_91, %c7_i32_87 : i32
    %296 = arith.index_cast %295 : i32 to index
    %c0_92 = arith.constant 0 : index
    %c0_93 = arith.constant 0 : index
    %297 = vector.load %arg11[%296, %c0_92, %c0_93] : memref<8x8x512xf32, #tpu.memory_space<vmem>>, vector<1x8x512xf32>
    %298 = vector.shape_cast %297 : vector<1x8x512xf32> to vector<8x512xf32>
    %299 = arith.select %29, %294, %298 : vector<8x512xi1>, vector<8x512xf32>
    %300 = arith.addf %291, %299 : vector<8x512xf32>
    %301 = vector.extract_strided_slice %300 {offsets = [0, 0], sizes = [8, 128], strides = [1, 1]} : vector<8x512xf32> to vector<8x128xf32>
    %302 = arith.negf %301 : vector<8x128xf32>
    %303 = math.exp %302 : vector<8x128xf32>
    %cst_94 = arith.constant 1.000000e+00 : f32
    %304 = vector.broadcast %cst_94 : f32 to vector<8x128xf32>
    %305 = arith.addf %304, %303 : vector<8x128xf32>
    %306 = arith.divf %304, %305 : vector<8x128xf32>
    %307 = vector.extract_strided_slice %300 {offsets = [0, 128], sizes = [8, 128], strides = [1, 1]} : vector<8x512xf32> to vector<8x128xf32>
    %308 = arith.negf %307 : vector<8x128xf32>
    %309 = math.exp %308 : vector<8x128xf32>
    %cst_95 = arith.constant 1.000000e+00 : f32
    %310 = vector.broadcast %cst_95 : f32 to vector<8x128xf32>
    %311 = arith.addf %310, %309 : vector<8x128xf32>
    %312 = arith.divf %310, %311 : vector<8x128xf32>
    %313 = vector.extract_strided_slice %300 {offsets = [0, 256], sizes = [8, 128], strides = [1, 1]} : vector<8x512xf32> to vector<8x128xf32>
    %314 = math.tanh %313 : vector<8x128xf32>
    %315 = vector.extract_strided_slice %300 {offsets = [0, 384], sizes = [8, 128], strides = [1, 1]} : vector<8x512xf32> to vector<8x128xf32>
    %316 = arith.negf %315 : vector<8x128xf32>
    %317 = math.exp %316 : vector<8x128xf32>
    %cst_96 = arith.constant 1.000000e+00 : f32
    %318 = vector.broadcast %cst_96 : f32 to vector<8x128xf32>
    %319 = arith.addf %318, %317 : vector<8x128xf32>
    %320 = arith.divf %318, %319 : vector<8x128xf32>
    %321 = arith.mulf %312, %286 : vector<8x128xf32>
    %322 = arith.mulf %306, %314 : vector<8x128xf32>
    %323 = arith.addf %321, %322 : vector<8x128xf32>
    %324 = math.tanh %323 : vector<8x128xf32>
    %325 = arith.mulf %320, %324 : vector<8x128xf32>
    %326 = arith.addf %289, %325 : vector<8x128xf32>
    %327 = arith.maximumf %290, %325 : vector<8x128xf32>
    %c8_i32 = arith.constant 8 : i32
    %cst_97 = arith.constant 1.250000e-01 : f32
    %328 = vector.broadcast %cst_97 : f32 to vector<8x128xf32>
    %329 = arith.mulf %326, %328 : vector<8x128xf32>
    %330 = tpu.concatenate %329, %327 in 1 : vector<8x128xf32>, vector<8x128xf32> -> vector<8x256xf32>
    %c0_98 = arith.constant 0 : index
    %c0_99 = arith.constant 0 : index
    %331 = vector.load %arg5[%c0_98, %c0_99] : memref<256x64xf32, #tpu.memory_space<vmem>>, vector<256x64xf32>
    %cst_100 = arith.constant dense<0.000000e+00> : vector<8x64xf32>
    %332 = tpu.matmul %330, %331, %cst_100 {dimension_numbers = #tpu.dot_dimension_numbers<[1], [0], [0], [1], [0, 0, 1, 1], [], []>} : vector<8x256xf32>, vector<256x64xf32>, vector<8x64xf32> -> vector<8x64xf32>
    %c0_101 = arith.constant 0 : index
    %c0_102 = arith.constant 0 : index
    %333 = vector.load %arg6[%c0_101, %c0_102] : memref<1x64xf32, #tpu.memory_space<vmem>>, vector<1x64xf32>
    %334 = vector.broadcast %333 : vector<1x64xf32> to vector<8x64xf32>
    %335 = arith.addf %332, %334 : vector<8x64xf32>
    %cst_103 = arith.constant 0.000000e+00 : f32
    %336 = vector.broadcast %cst_103 : f32 to vector<8x64xf32>
    %337 = arith.maximumf %335, %336 : vector<8x64xf32>
    %c0_104 = arith.constant 0 : index
    %c0_105 = arith.constant 0 : index
    %338 = vector.load %arg7[%c0_104, %c0_105] : memref<1x64xf32, #tpu.memory_space<vmem>>, vector<1x64xf32>
    %339 = vector.broadcast %338 : vector<1x64xf32> to vector<8x64xf32>
    %340 = arith.mulf %337, %339 : vector<8x64xf32>
    %cst_106 = arith.constant dense<0.000000e+00> : vector<8xf32>
    %341 = vector.multi_reduction <add>, %340, %cst_106 [1] : vector<8x64xf32> to vector<8xf32>
    %342 = vector.shape_cast %341 : vector<8xf32> to vector<8x1xf32>
    %c0_107 = arith.constant 0 : index
    %c0_108 = arith.constant 0 : index
    %343 = vector.load %arg8[%c0_107, %c0_108] : memref<1x1xf32, #tpu.memory_space<vmem>>, vector<1x1xf32>
    %344 = vector.broadcast %343 : vector<1x1xf32> to vector<8x1xf32>
    %345 = arith.addf %342, %344 : vector<8x1xf32>
    %c0_109 = arith.constant 0 : index
    %c0_110 = arith.constant 0 : index
    %346 = vector.load %arg9[%c0_109, %c0_110] : memref<8x1xf32, #tpu.memory_space<vmem>>, vector<8x1xf32>
    tpu.vector_store %arg9[%c0_109, %c0_110], %345 {strides = array<i32>} : memref<8x1xf32, #tpu.memory_space<vmem>>, vector<8x1xf32>,
    return
  }
}

</mosaic_0001>

<llo_original>
// kernel: tpu_custom_call.1
$region0: #{tpu_custom_call.1}
  #allocation0 [shape = 'u32[]', space=smem, size = 0x4, offset = 0x4, fixed_abs, tag = 'smem constant byte address 0x4 - core index']
  #allocation1 [shape = 'u32[144,128]{1,0:T(1,128)}', space=vmem, size = 0x12000, scoped, tag = 'internal scratch']
  #allocation2 [shape = 'f32[64,384]{1,0:T(8,128)}', space=vmem, size = 0x18000, scoped, tag = 'scratch operand']
  #allocation3 [shape = 'f32[8,8,512]{2,1,0:T(8,128)}', space=vmem, size = 0x20000, scoped, tag = 'scratch operand']
  #allocation4 [shape = 's32[1]{0}', space=sflag, size = 0x4, scoped, tag = 'scratch operand']
  #allocation5 [shape = 'f32[1,1]{1,0:T(1,128)S(1)}', space=vmem, size = 0x200, scoped, tag = 'scoped memory for tpu_custom_call.1']
  #allocation16 [shape = 's32[]', space=sflag, size = 0x4, offset = 0, fixed_abs, tag = 'sflag constant byte address 0x0 - dummy sync flag']
  %s0 = inlined_call_operand.hbm [shape: s32[64], index: 0, kind: input, shape index: {}]
  %s1 = inlined_call_operand.hbm [shape: f32[1000,384], index: 1, kind: input, shape index: {}]
  %s2 = inlined_call_operand.hbm [shape: f32[384,512], index: 2, kind: input, shape index: {}]
  %s3 = inlined_call_operand.hbm [shape: f32[1,512], index: 3, kind: input, shape index: {}]
  %s4 = inlined_call_operand.hbm [shape: f32[128,512], index: 4, kind: input, shape index: {}]
  %s5 = inlined_call_operand.vmem [shape: f32[256,64], index: 5, kind: input, shape index: {}]
  %s6 = inlined_call_operand.hbm [shape: f32[1,64], index: 6, kind: input, shape index: {}]
  %s7 = inlined_call_operand.hbm [shape: f32[1,64], index: 7, kind: input, shape index: {}]
  %s8 = inlined_call_operand.<no memory space> [shape: f32[1,1], index: 8, kind: input, shape index: {}]
  %s9 = inlined_call_operand.vmem [shape: f32[8,1], index: 9, kind: output, shape index: {}]
  %s10 = sld [smem:[#allocation0]]
  $region80: #{tpu_custom_call.1} parent=0
    _
  %s12 = ssub.s32 1, %s10
  %s13 = scalar_select 0, %s12, %s10
  %v14 = vstv %s8
  %15 = vst [vmem:[#allocation5] sm:$0x1] %v14
  $region1: #{tpu_custom_call.1} parent=0
    #allocation6 [shape = 'u8[512]{0}', space=smem, size = 0x200, scoped, tag = 'input window, operand 0, single buffered']
    #allocation7 [shape = 's32[1]{0}', space=sflag, size = 0x4, scoped, tag = 'scoped memory for tpu_custom_call.1']
    #allocation8 [shape = 's32[1]{0}', space=sflag, size = 0x4, scoped, tag = 'scoped memory for tpu_custom_call.1']
    #allocation9 [shape = 'u8[786432]{0}', space=vmem, size = 0xc0000, scoped, tag = 'input window, operand 2, single buffered']
    #allocation10 [shape = 'u8[2048]{0}', space=vmem, size = 0x800, scoped, tag = 'input window, operand 3, single buffered']
    #allocation11 [shape = 's32[1]{0}', space=sflag, size = 0x4, scoped, tag = 'scoped memory for tpu_custom_call.1']
    #allocation12 [shape = 'u8[262144]{0}', space=vmem, size = 0x40000, scoped, tag = 'input window, operand 4, single buffered']
    #allocation13 [shape = 'u8[512]{0}', space=vmem, size = 0x400, scoped, tag = 'input window, operand 6, single buffered']
    #allocation14 [shape = 's32[1]{0}', space=sflag, size = 0x4, scoped, tag = 'scoped memory for tpu_custom_call.1']
    #allocation15 [shape = 'u8[512]{0}', space=vmem, size = 0x400, scoped, tag = 'input window, operand 7, single buffered']
    %16 = vsyncpa [#allocation8], 0
    %17 = vsyncpa [#allocation7], 0
    %18 = vsyncpa [#allocation11], 0
    %19 = vsyncpa [#allocation14], 0
    // Predicated region
    $region2: #{tpu_custom_call.1} parent=1 // pred_check
      _
    $region3: #{tpu_custom_call.1} parent=1 // pred_check_branch
      %21 = sbr.rel (0) target = $region5
    $region4: #{tpu_custom_call.1} parent=1 // pred_region
      %s23 = ssub.s32 16, 16
      %24 = vsyncadd [#allocation8], %s23
      %27 = dma.hbm_to_smem %s0, 16, [#allocation6], [#allocation8]
    $region5: #{tpu_custom_call.1} parent=1 // pred_fallthru
      _
    // Predicated region
    $region6: #{tpu_custom_call.1} parent=1 // pred_check
      _
    $region7: #{tpu_custom_call.1} parent=1 // pred_check_branch
      %29 = sbr.rel (0) target = $region9
    $region8: #{tpu_custom_call.1} parent=1 // pred_region
      %s31 = ssub.s32 24576, 24576
      %32 = vsyncadd [#allocation7], %s31
      %s33 = sshll.u32 [#allocation9], 4
      %s34 = int_to_ptr.vmem [resolvable:$true] %s33
      %39 = dma.hbm_to_vmem [thread:$0]  %s2, 24576, %s34, [#allocation7], 512, 512, 32
    $region9: #{tpu_custom_call.1} parent=1 // pred_fallthru
      _
    // Predicated region
    $region10: #{tpu_custom_call.1} parent=1 // pred_check
      _
    $region11: #{tpu_custom_call.1} parent=1 // pred_check_branch
      %41 = sbr.rel (0) target = $region13
    $region12: #{tpu_custom_call.1} parent=1 // pred_region
      %s43 = ssub.s32 64, 64
      %44 = vsyncadd [#allocation11], %s43
      %s46 = sshll.u32 [#allocation10], 4
      %s47 = int_to_ptr.vmem [resolvable:$true] %s46
      %49 = dma.hbm_to_vmem [thread:$0]  %s3, 64, %s47, [#allocation11]
    $region13: #{tpu_custom_call.1} parent=1 // pred_fallthru
      _
    // Predicated region
    $region14: #{tpu_custom_call.1} parent=1 // pred_check
      _
    $region15: #{tpu_custom_call.1} parent=1 // pred_check_branch
      %51 = sbr.rel (0) target = $region17
    $region16: #{tpu_custom_call.1} parent=1 // pred_region
      %s53 = ssub.s32 8192, 8192
      %54 = vsyncadd [#allocation11], %s53
      %s55 = sshll.u32 [#allocation12], 4
      %s56 = int_to_ptr.vmem [resolvable:$true] %s55
      %61 = dma.hbm_to_vmem [thread:$0]  %s4, 8192, %s56, [#allocation11], 512, 512, 32
    $region17: #{tpu_custom_call.1} parent=1 // pred_fallthru
      _
    // Predicated region
    $region18: #{tpu_custom_call.1} parent=1 // pred_check
      _
    $region19: #{tpu_custom_call.1} parent=1 // pred_check_branch
      %63 = sbr.rel (0) target = $region21
    $region20: #{tpu_custom_call.1} parent=1 // pred_region
      _
    $region21: #{tpu_custom_call.1} parent=1 // pred_fallthru
      _
    // Predicated region
    $region22: #{tpu_custom_call.1} parent=1 // pred_check
      _
    $region23: #{tpu_custom_call.1} parent=1 // pred_check_branch
      %65 = sbr.rel (0) target = $region25
    $region24: #{tpu_custom_call.1} parent=1 // pred_region
      %s67 = ssub.s32 16, 16
      %68 = vsyncadd [#allocation14], %s67
      %s70 = sshll.u32 [#allocation13], 4
      %s71 = int_to_ptr.vmem [resolvable:$true] %s70
      %73 = dma.hbm_to_vmem [thread:$0]  %s6, 16, %s71, [#allocation14]
    $region25: #{tpu_custom_call.1} parent=1 // pred_fallthru
      _
    // Predicated region
    $region26: #{tpu_custom_call.1} parent=1 // pred_check
      _
    $region27: #{tpu_custom_call.1} parent=1 // pred_check_branch
      %75 = sbr.rel (0) target = $region29
    $region28: #{tpu_custom_call.1} parent=1 // pred_region
      %s77 = ssub.s32 16, 16
      %78 = vsyncadd [#allocation14], %s77
      %s80 = sshll.u32 [#allocation15], 4
      %s81 = int_to_ptr.vmem [resolvable:$true] %s80
      %83 = dma.hbm_to_vmem [thread:$0]  %s7, 16, %s81, [#allocation14]
    $region29: #{tpu_custom_call.1} parent=1 // pred_fallthru
      _
    // Predicated region
    $region30: #{tpu_custom_call.1} parent=1 // pred_check
      _
    $region31: #{tpu_custom_call.1} parent=1 // pred_check_branch
      %85 = sbr.rel (0) target = $region33
    $region32: #{tpu_custom_call.1} parent=1 // pred_region
      _
    $region33: #{tpu_custom_call.1} parent=1 // pred_fallthru
      _
    // Predicated region
    $region34: #{tpu_custom_call.1} parent=1 // pred_check
      _
    $region35: #{tpu_custom_call.1} parent=1 // pred_check_branch
      %87 = sbr.rel (0) target = $region37
    $region36: #{tpu_custom_call.1} parent=1 // pred_region
      %88 = dma.done [#allocation8], 16
    $region37: #{tpu_custom_call.1} parent=1 // pred_fallthru
      _
    // Predicated region
    $region38: #{tpu_custom_call.1} parent=1 // pred_check
      _
    $region39: #{tpu_custom_call.1} parent=1 // pred_check_branch
      %90 = sbr.rel (0) target = $region41
    $region40: #{tpu_custom_call.1} parent=1 // pred_region
      %91 = dma.done [#allocation7], 24576
    $region41: #{tpu_custom_call.1} parent=1 // pred_fallthru
      _
    // Predicated region
    $region42: #{tpu_custom_call.1} parent=1 // pred_check
      _
    $region43: #{tpu_custom_call.1} parent=1 // pred_check_branch
      %93 = sbr.rel (0) target = $region45
    $region44: #{tpu_custom_call.1} parent=1 // pred_region
      %94 = dma.done [#allocation11], 64
    $region45: #{tpu_custom_call.1} parent=1 // pred_fallthru
      _
    // Predicated region
    $region46: #{tpu_custom_call.1} parent=1 // pred_check
      _
    $region47: #{tpu_custom_call.1} parent=1 // pred_check_branch
      %96 = sbr.rel (0) target = $region49
    $region48: #{tpu_custom_call.1} parent=1 // pred_region
      %97 = dma.done [#allocation11], 8192
    $region49: #{tpu_custom_call.1} parent=1 // pred_fallthru
      _
    // Predicated region
    $region50: #{tpu_custom_call.1} parent=1 // pred_check
      _
    $region51: #{tpu_custom_call.1} parent=1 // pred_check_branch
      %99 = sbr.rel (0) target = $region53
    $region52: #{tpu_custom_call.1} parent=1 // pred_region
      %100 = dma.done [#allocation14], 16
    $region53: #{tpu_custom_call.1} parent=1 // pred_fallthru
      _
    // Predicated region
    $region54: #{tpu_custom_call.1} parent=1 // pred_check
      _
    $region55: #{tpu_custom_call.1} parent=1 // pred_check_branch
      %102 = sbr.rel (0) target = $region57
    $region56: #{tpu_custom_call.1} parent=1 // pred_region
      %103 = dma.done [#allocation14], 16
    $region57: #{tpu_custom_call.1} parent=1 // pred_fallthru
      _
    %104 = sfence
    loop: start=0, step=1, limit=64
    $region58: #{tpu_custom_call.1} parent=1 // loop_pre_header
      _
    $region59: #{tpu_custom_call.1} parent=1 // loop_header
      %s106 = sphi 0, %s110
      %p107 = scmp.ge.s32.totalorder %s106, 64
    $region60: #{tpu_custom_call.1} parent=1 // loop_header_branch
      %109 = sbr.rel (%p107) target = $region64
    $region61: #{tpu_custom_call.1} parent=1 // loop_body
      %s111 = sld [smem:[#allocation6 + %s106]]
      %s112 = sshrl.u32 %s111, 3
      %s113 = sand.u32 %s111, 7
      %s114 = smul.u32 %s112, 24
      %s115 = sadd.s32 %s113, %s114
      %s116 = smul.addr %s115, 16
      %s117 = scalar_lea.hbm %s1, %s116
      %s118 = sshrl.u32 %s106, 3
      %s119 = sand.u32 %s106, 7
      %s120 = smul.u32 %s118, 24
      %s121 = sadd.s32 %s119, %s120
      %s122 = scalar_lea.vmem [#allocation2], %s121
      %s124 = sshll.u32 %s122, 4
      %s125 = int_to_ptr.vmem [resolvable:$true] %s124
      %127 = dma.hbm_to_vmem [thread:$0]  %s117, 48, %s125, [#allocation4], 128, 128, 1
    $region62: #{tpu_custom_call.1} parent=1 // loop_footer
      %s110 = sadd.s32 1, %s106
    $region63: #{tpu_custom_call.1} parent=1 // loop_footer_branch
      %105 = sbr.rel target = $region59
    $region64: #{tpu_custom_call.1} parent=1 // loop_exit
      _
    loop: start=0, step=1, limit=64
    $region65: #{tpu_custom_call.1} parent=1 // loop_pre_header
      _
    $region66: #{tpu_custom_call.1} parent=1 // loop_header
      %s129 = sphi 0, %s133
      %p130 = scmp.ge.s32.totalorder %s129, 64
    $region67: #{tpu_custom_call.1} parent=1 // loop_header_branch
      %132 = sbr.rel (%p130) target = $region71
    $region68: #{tpu_custom_call.1} parent=1 // loop_body
      %s134 = sld [smem:[#allocation6 + %s129]]
      %136 = dma.done [#allocation4], 48
    $region69: #{tpu_custom_call.1} parent=1 // loop_footer
      %s133 = sadd.s32 1, %s129
    $region70: #{tpu_custom_call.1} parent=1 // loop_footer_branch
      %128 = sbr.rel target = $region66
    $region71: #{tpu_custom_call.1} parent=1 // loop_exit
      _
    %v137 = vld [vmem:[#allocation2] sm:$0xff]
    %v138 = vld [vmem:[#allocation2 + $0x8] sm:$0xff]
    %v139 = vld [vmem:[#allocation2 + $0x10] sm:$0xff]
    %v140 = vld [vmem:[#allocation2 + $0x18] sm:$0xff]
    %v141 = vld [vmem:[#allocation2 + $0x20] sm:$0xff]
    %v142 = vld [vmem:[#allocation2 + $0x28] sm:$0xff]
    %v143 = vld [vmem:[#allocation2 + $0x30] sm:$0xff]
    %v144 = vld [vmem:[#allocation2 + $0x38] sm:$0xff]
    %v145 = vld [vmem:[#allocation2 + $0x40] sm:$0xff]
    %v146 = vld [vmem:[#allocation2 + $0x48] sm:$0xff]
    %v147 = vld [vmem:[#allocation2 + $0x50] sm:$0xff]
    %v148 = vld [vmem:[#allocation2 + $0x58] sm:$0xff]
    %v149 = vld [vmem:[#allocation2 + $0x60] sm:$0xff]
    %v150 = vld [vmem:[#allocation2 + $0x68] sm:$0xff]
    %v151 = vld [vmem:[#allocation2 + $0x70] sm:$0xff]
    %v152 = vld [vmem:[#allocation2 + $0x78] sm:$0xff]
    %v153 = vld [vmem:[#allocation2 + $0x80] sm:$0xff]
    %v154 = vld [vmem:[#allocation2 + $0x88] sm:$0xff]
    %v155 = vld [vmem:[#allocation2 + $0x90] sm:$0xff]
    %v156 = vld [vmem:[#allocation2 + $0x98] sm:$0xff]
    %v157 = vld [vmem:[#allocation2 + $0xa0] sm:$0xff]
    %v158 = vld [vmem:[#allocation2 + $0xa8] sm:$0xff]
    %v159 = vld [vmem:[#allocation2 + $0xb0] sm:$0xff]
    %v160 = vld [vmem:[#allocation2 + $0xb8] sm:$0xff]
    %v161 = vld [vmem:[#allocation9] sm:$0xff]
    %v162 = vld [vmem:[#allocation9 + $0x8] sm:$0xff]
    %v163 = vld [vmem:[#allocation9 + $0x10] sm:$0xff]
    %v164 = vld [vmem:[#allocation9 + $0x18] sm:$0xff]
    %v165 = vld [vmem:[#allocation9 + $0x20] sm:$0xff]
    %v166 = vld [vmem:[#allocation9 + $0x28] sm:$0xff]
    %v167 = vld [vmem:[#allocation9 + $0x30] sm:$0xff]
    %v168 = vld [vmem:[#allocation9 + $0x38] sm:$0xff]
    %v169 = vld [vmem:[#allocation9 + $0x40] sm:$0xff]
    %v170 = vld [vmem:[#allocation9 + $0x48] sm:$0xff]
    %v171 = vld [vmem:[#allocation9 + $0x50] sm:$0xff]
    %v172 = vld [vmem:[#allocation9 + $0x58] sm:$0xff]
    %v173 = vld [vmem:[#allocation9 + $0x60] sm:$0xff]
    %v174 = vld [vmem:[#allocation9 + $0x68] sm:$0xff]
    %v175 = vld [vmem:[#allocation9 + $0x70] sm:$0xff]
    %v176 = vld [vmem:[#allocation9 + $0x78] sm:$0xff]
    %v177 = vld [vmem:[#allocation9 + $0x80] sm:$0xff]
    %v178 = vld [vmem:[#allocation9 + $0x88] sm:$0xff]
    %v179 = vld [vmem:[#allocation9 + $0x90] sm:$0xff]
    %v180 = vld [vmem:[#allocation9 + $0x98] sm:$0xff]
    %v181 = vld [vmem:[#allocation9 + $0xa0] sm:$0xff]
    %v182 = vld [vmem:[#allocation9 + $0xa8] sm:$0xff]
    %v183 = vld [vmem:[#allocation9 + $0xb0] sm:$0xff]
    %v184 = vld [vmem:[#allocation9 + $0xb8] sm:$0xff]
    %v185 = vld [vmem:[#allocation9 + $0xc0] sm:$0xff]
    %v186 = vld [vmem:[#allocation9 + $0xc8] sm:$0xff]
    %v187 = vld [vmem:[#allocation9 + $0xd0] sm:$0xff]
    %v188 = vld [vmem:[#allocation9 + $0xd8] sm:$0xff]
    %v189 = vld [vmem:[#allocation9 + $0xe0] sm:$0xff]
    %v190 = vld [vmem:[#allocation9 + $0xe8] sm:$0xff]
    %v191 = vld [vmem:[#allocation9 + $0xf0] sm:$0xff]
    %v192 = vld [vmem:[#allocation9 + $0xf8] sm:$0xff]
    %v193 = vld [vmem:[#allocation9 + $0x100] sm:$0xff]
    %v194 = vld [vmem:[#allocation9 + $0x108] sm:$0xff]
    %v195 = vld [vmem:[#allocation9 + $0x110] sm:$0xff]
    %v196 = vld [vmem:[#allocation9 + $0x118] sm:$0xff]
    %v197 = vld [vmem:[#allocation9 + $0x120] sm:$0xff]
    %v198 = vld [vmem:[#allocation9 + $0x128] sm:$0xff]
    %v199 = vld [vmem:[#allocation9 + $0x130] sm:$0xff]
    %v200 = vld [vmem:[#allocation9 + $0x138] sm:$0xff]
    %v201 = vld [vmem:[#allocation9 + $0x140] sm:$0xff]
    %v202 = vld [vmem:[#allocation9 + $0x148] sm:$0xff]
    %v203 = vld [vmem:[#allocation9 + $0x150] sm:$0xff]
    %v204 = vld [vmem:[#allocation9 + $0x158] sm:$0xff]
    %v205 = vld [vmem:[#allocation9 + $0x160] sm:$0xff]
    %v206 = vld [vmem:[#allocation9 + $0x168] sm:$0xff]
    %v207 = vld [vmem:[#allocation9 + $0x170] sm:$0xff]
    %v208 = vld [vmem:[#allocation9 + $0x178] sm:$0xff]
    %v209 = vld [vmem:[#allocation9 + $0x180] sm:$0xff]
    %v210 = vld [vmem:[#allocation9 + $0x188] sm:$0xff]
    %v211 = vld [vmem:[#allocation9 + $0x190] sm:$0xff]
    %v212 = vld [vmem:[#allocation9 + $0x198] sm:$0xff]
    %v213 = vld [vmem:[#allocation9 + $0x1a0] sm:$0xff]
    %v214 = vld [vmem:[#allocation9 + $0x1a8] sm:$0xff]
    %v215 = vld [vmem:[#allocation9 + $0x1b0] sm:$0xff]
    %v216 = vld [vmem:[#allocation9 + $0x1b8] sm:$0xff]
    %v217 = vld [vmem:[#allocation9 + $0x1c0] sm:$0xff]
    %v218 = vld [vmem:[#allocation9 + $0x1c8] sm:$0xff]
    %v219 = vld [vmem:[#allocation9 + $0x1d0] sm:$0xff]
    %v220 = vld [vmem:[#allocation9 + $0x1d8] sm:$0xff]
    %v221 = vld [vmem:[#allocation9 + $0x1e0] sm:$0xff]
    %v222 = vld [vmem:[#allocation9 + $0x1e8] sm:$0xff]
    %v223 = vld [vmem:[#allocation9 + $0x1f0] sm:$0xff]
    %v224 = vld [vmem:[#allocation9 + $0x1f8] sm:$0xff]
    %v225 = vld [vmem:[#allocation9 + $0x200] sm:$0xff]
    %v226 = vld [vmem:[#allocation9 + $0x208] sm:$0xff]
    %v227 = vld [vmem:[#allocation9 + $0x210] sm:$0xff]
    %v228 = vld [vmem:[#allocation9 + $0x218] sm:$0xff]
    %v229 = vld [vmem:[#allocation9 + $0x220] sm:$0xff]
    %v230 = vld [vmem:[#allocation9 + $0x228] sm:$0xff]
    %v231 = vld [vmem:[#allocation9 + $0x230] sm:$0xff]
    %v232 = vld [vmem:[#allocation9 + $0x238] sm:$0xff]
    %v233 = vld [vmem:[#allocation9 + $0x240] sm:$0xff]
    %v234 = vld [vmem:[#allocation9 + $0x248] sm:$0xff]
    %v235 = vld [vmem:[#allocation9 + $0x250] sm:$0xff]
    %v236 = vld [vmem:[#allocation9 + $0x258] sm:$0xff]
    %v237 = vld [vmem:[#allocation9 + $0x260] sm:$0xff]
    %v238 = vld [vmem:[#allocation9 + $0x268] sm:$0xff]
    %v239 = vld [vmem:[#allocation9 + $0x270] sm:$0xff]
    %v240 = vld [vmem:[#allocation9 + $0x278] sm:$0xff]
    %v241 = vld [vmem:[#allocation9 + $0x280] sm:$0xff]
    %v242 = vld [vmem:[#allocation9 + $0x288] sm:$0xff]
    %v243 = vld [vmem:[#allocation9 + $0x290] sm:$0xff]
    %v244 = vld [vmem:[#allocation9 + $0x298] sm:$0xff]
    %v245 = vld [vmem:[#allocation9 + $0x2a0] sm:$0xff]
    %v246 = vld [vmem:[#allocation9 + $0x2a8] sm:$0xff]
    %v247 = vld [vmem:[#allocation9 + $0x2b0] sm:$0xff]
    %v248 = vld [vmem:[#allocation9 + $0x2b8] sm:$0xff]
    %v249 = vld [vmem:[#allocation9 + $0x2c0] sm:$0xff]
    %v250 = vld [vmem:[#allocation9 + $0x2c8] sm:$0xff]
    %v251 = vld [vmem:[#allocation9 + $0x2d0] sm:$0xff]
    %v252 = vld [vmem:[#allocation9 + $0x2d8] sm:$0xff]
    %v253 = vld [vmem:[#allocation9 + $0x2e0] sm:$0xff]
    %v254 = vld [vmem:[#allocation9 + $0x2e8] sm:$0xff]
    %v255 = vld [vmem:[#allocation9 + $0x2f0] sm:$0xff]
    %v256 = vld [vmem:[#allocation9 + $0x2f8] sm:$0xff]
    %v257 = vld [vmem:[#allocation9 + $0x300] sm:$0xff]
    %v258 = vld [vmem:[#allocation9 + $0x308] sm:$0xff]
    %v259 = vld [vmem:[#allocation9 + $0x310] sm:$0xff]
    %v260 = vld [vmem:[#allocation9 + $0x318] sm:$0xff]
    %v261 = vld [vmem:[#allocation9 + $0x320] sm:$0xff]
    %v262 = vld [vmem:[#allocation9 + $0x328] sm:$0xff]
    %v263 = vld [vmem:[#allocation9 + $0x330] sm:$0xff]
    %v264 = vld [vmem:[#allocation9 + $0x338] sm:$0xff]
    %v265 = vld [vmem:[#allocation9 + $0x340] sm:$0xff]
    %v266 = vld [vmem:[#allocation9 + $0x348] sm:$0xff]
    %v267 = vld [vmem:[#allocation9 + $0x350] sm:$0xff]
    %v268 = vld [vmem:[#allocation9 + $0x358] sm:$0xff]
    %v269 = vld [vmem:[#allocation9 + $0x360] sm:$0xff]
    %v270 = vld [vmem:[#allocation9 + $0x368] sm:$0xff]
    %v271 = vld [vmem:[#allocation9 + $0x370] sm:$0xff]
    %v272 = vld [vmem:[#allocation9 + $0x378] sm:$0xff]
    %v273 = vld [vmem:[#allocation9 + $0x380] sm:$0xff]
    %v274 = vld [vmem:[#allocation9 + $0x388] sm:$0xff]
    %v275 = vld [vmem:[#allocation9 + $0x390] sm:$0xff]
    %v276 = vld [vmem:[#allocation9 + $0x398] sm:$0xff]
    %v277 = vld [vmem:[#allocation9 + $0x3a0] sm:$0xff]
    %v278 = vld [vmem:[#allocation9 + $0x3a8] sm:$0xff]
    %v279 = vld [vmem:[#allocation9 + $0x3b0] sm:$0xff]
    %v280 = vld [vmem:[#allocation9 + $0x3b8] sm:$0xff]
    %v281 = vld [vmem:[#allocation9 + $0x3c0] sm:$0xff]
    %v282 = vld [vmem:[#allocation9 + $0x3c8] sm:$0xff]
    %v283 = vld [vmem:[#allocation9 + $0x3d0] sm:$0xff]
    %v284 = vld [vmem:[#allocation9 + $0x3d8] sm:$0xff]
    %v285 = vld [vmem:[#allocation9 + $0x3e0] sm:$0xff]
    %v286 = vld [vmem:[#allocation9 + $0x3e8] sm:$0xff]
    %v287 = vld [vmem:[#allocation9 + $0x3f0] sm:$0xff]
    %v288 = vld [vmem:[#allocation9 + $0x3f8] sm:$0xff]
    %v289 = vld [vmem:[#allocation9 + $0x400] sm:$0xff]
    %v290 = vld [vmem:[#allocation9 + $0x408] sm:$0xff]
    %v291 = vld [vmem:[#allocation9 + $0x410] sm:$0xff]
    %v292 = vld [vmem:[#allocation9 + $0x418] sm:$0xff]
    %v293 = vld [vmem:[#allocation9 + $0x420] sm:$0xff]
    %v294 = vld [vmem:[#allocation9 + $0x428] sm:$0xff]
    %v295 = vld [vmem:[#allocation9 + $0x430] sm:$0xff]
    %v296 = vld [vmem:[#allocation9 + $0x438] sm:$0xff]
    %v297 = vld [vmem:[#allocation9 + $0x440] sm:$0xff]
    %v298 = vld [vmem:[#allocation9 + $0x448] sm:$0xff]
    %v299 = vld [vmem:[#allocation9 + $0x450] sm:$0xff]
    %v300 = vld [vmem:[#allocation9 + $0x458] sm:$0xff]
    %v301 = vld [vmem:[#allocation9 + $0x460] sm:$0xff]
    %v302 = vld [vmem:[#allocation9 + $0x468] sm:$0xff]
    %v303 = vld [vmem:[#allocation9 + $0x470] sm:$0xff]
    %v304 = vld [vmem:[#allocation9 + $0x478] sm:$0xff]
    %v305 = vld [vmem:[#allocation9 + $0x480] sm:$0xff]
    %v306 = vld [vmem:[#allocation9 + $0x488] sm:$0xff]
    %v307 = vld [vmem:[#allocation9 + $0x490] sm:$0xff]
    %v308 = vld [vmem:[#allocation9 + $0x498] sm:$0xff]
    %v309 = vld [vmem:[#allocation9 + $0x4a0] sm:$0xff]
    %v310 = vld [vmem:[#allocation9 + $0x4a8] sm:$0xff]
    %v311 = vld [vmem:[#allocation9 + $0x4b0] sm:$0xff]
    %v312 = vld [vmem:[#allocation9 + $0x4b8] sm:$0xff]
    %v313 = vld [vmem:[#allocation9 + $0x4c0] sm:$0xff]
    %v314 = vld [vmem:[#allocation9 + $0x4c8] sm:$0xff]
    %v315 = vld [vmem:[#allocation9 + $0x4d0] sm:$0xff]
    %v316 = vld [vmem:[#allocation9 + $0x4d8] sm:$0xff]
    %v317 = vld [vmem:[#allocation9 + $0x4e0] sm:$0xff]
    %v318 = vld [vmem:[#allocation9 + $0x4e8] sm:$0xff]
    %v319 = vld [vmem:[#allocation9 + $0x4f0] sm:$0xff]
    %v320 = vld [vmem:[#allocation9 + $0x4f8] sm:$0xff]
    %v321 = vld [vmem:[#allocation9 + $0x500] sm:$0xff]
    %v322 = vld [vmem:[#allocation9 + $0x508] sm:$0xff]
    %v323 = vld [vmem:[#allocation9 + $0x510] sm:$0xff]
    %v324 = vld [vmem:[#allocation9 + $0x518] sm:$0xff]
    %v325 = vld [vmem:[#allocation9 + $0x520] sm:$0xff]
    %v326 = vld [vmem:[#allocation9 + $0x528] sm:$0xff]
    %v327 = vld [vmem:[#allocation9 + $0x530] sm:$0xff]
    %v328 = vld [vmem:[#allocation9 + $0x538] sm:$0xff]
    %v329 = vld [vmem:[#allocation9 + $0x540] sm:$0xff]
    %v330 = vld [vmem:[#allocation9 + $0x548] sm:$0xff]
    %v331 = vld [vmem:[#allocation9 + $0x550] sm:$0xff]
    %v332 = vld [vmem:[#allocation9 + $0x558] sm:$0xff]
    %v333 = vld [vmem:[#allocation9 + $0x560] sm:$0xff]
    %v334 = vld [vmem:[#allocation9 + $0x568] sm:$0xff]
    %v335 = vld [vmem:[#allocation9 + $0x570] sm:$0xff]
    %v336 = vld [vmem:[#allocation9 + $0x578] sm:$0xff]
    %v337 = vld [vmem:[#allocation9 + $0x580] sm:$0xff]
    %v338 = vld [vmem:[#allocation9 + $0x588] sm:$0xff]
    %v339 = vld [vmem:[#allocation9 + $0x590] sm:$0xff]
    %v340 = vld [vmem:[#allocation9 + $0x598] sm:$0xff]
    %v341 = vld [vmem:[#allocation9 + $0x5a0] sm:$0xff]
    %v342 = vld [vmem:[#allocation9 + $0x5a8] sm:$0xff]
    %v343 = vld [vmem:[#allocation9 + $0x5b0] sm:$0xff]
    %v344 = vld [vmem:[#allocation9 + $0x5b8] sm:$0xff]
    %v345 = vld [vmem:[#allocation9 + $0x5c0] sm:$0xff]
    %v346 = vld [vmem:[#allocation9 + $0x5c8] sm:$0xff]
    %v347 = vld [vmem:[#allocation9 + $0x5d0] sm:$0xff]
    %v348 = vld [vmem:[#allocation9 + $0x5d8] sm:$0xff]
    %v349 = vld [vmem:[#allocation9 + $0x5e0] sm:$0xff]
    %v350 = vld [vmem:[#allocation9 + $0x5e8] sm:$0xff]
    %v351 = vld [vmem:[#allocation9 + $0x5f0] sm:$0xff]
    %v352 = vld [vmem:[#allocation9 + $0x5f8] sm:$0xff]
    %v353 = vld [vmem:[#allocation10] sm:$0xf]
    %v355 = vlaneseq
    %v356 = vshrl.u32 %v355, 7
    %v357 = vsub.s32 0, %v356
    %v358 = vrot.slane %v353, %v357
    %v359 = vlaneseq
    %v360 = vshrl.u32 %v359, 7
    %v361 = vsub.s32 1, %v360
    %v362 = vrot.slane %v353, %v361
    %v363 = vlaneseq
    %v364 = vshrl.u32 %v363, 7
    %v365 = vsub.s32 2, %v364
    %v366 = vrot.slane %v353, %v365
    %v367 = vlaneseq
    %v368 = vshrl.u32 %v367, 7
    %v369 = vsub.s32 3, %v368
    %v370 = vrot.slane %v353, %v369
    %375 = vmatprep.subr.mxu0 %v162
    %376 = vmatpush1.msra.mxu0 %v161
    %377 = vmatprep.subr.mxu0 %v166
    %378 = vmatpush1.msra.mxu0 %v165
    %379 = vmatprep.subr.mxu0 %v170
    %380 = vmatpush1.msra.mxu0 %v169
    %381 = vmatprep.subr.mxu0 %v174
    %382 = vmatpush1.msra.mxu0 %v173
    %383 = vmatprep.subr.mxu0 %v178
    %384 = vmatpush1.msra.mxu0 %v177
    %385 = vmatprep.subr.mxu0 %v182
    %386 = vmatpush1.msra.mxu0 %v181
    %387 = vmatprep.subr.mxu0 %v186
    %388 = vmatpush1.msra.mxu0 %v185
    %389 = vmatprep.subr.mxu0 %v190
    %390 = vmatpush1.msra.mxu0 %v189
    %391 = vmatprep.subr.mxu0 %v194
    %392 = vmatpush1.msra.mxu0 %v193
    %393 = vmatprep.subr.mxu0 %v198
    %394 = vmatpush1.msra.mxu0 %v197
    %395 = vmatprep.subr.mxu0 %v202
    %396 = vmatpush1.msra.mxu0 %v201
    %397 = vmatprep.subr.mxu0 %v206
    %398 = vmatpush1.msra.mxu0 %v205
    %399 = vmatprep.subr.mxu0 %v210
    %400 = vmatpush1.msra.mxu0 %v209
    %401 = vmatprep.subr.mxu0 %v214
    %402 = vmatpush1.msra.mxu0 %v213
    %403 = vmatprep.subr.mxu0 %v218
    %404 = vmatpush1.msra.mxu0 %v217
    %405 = vmatprep.subr.mxu0 %v222
    %406 = vmatpush1.msra.mxu0 %v221
    %407 = vmatprep.subr.mxu0 %v226
    %408 = vmatpush1.msra.mxu0 %v225
    %409 = vmatprep.subr.mxu0 %v230
    %410 = vmatpush1.msra.mxu0 %v229
    %411 = vmatprep.subr.mxu0 %v234
    %412 = vmatpush1.msra.mxu0 %v233
    %413 = vmatprep.subr.mxu0 %v238
    %414 = vmatpush1.msra.mxu0 %v237
    %415 = vmatprep.subr.mxu0 %v242
    %416 = vmatpush1.msra.mxu0 %v241
    %417 = vmatprep.subr.mxu0 %v246
    %418 = vmatpush1.msra.mxu0 %v245
    %419 = vmatprep.subr.mxu0 %v250
    %420 = vmatpush1.msra.mxu0 %v249
    %421 = vmatprep.subr.mxu0 %v254
    %422 = vmatpush1.msra.mxu0 %v253
    %423 = vmatprep.subr.mxu0 %v258
    %424 = vmatpush1.msra.mxu0 %v257
    %425 = vmatprep.subr.mxu0 %v262
    %426 = vmatpush1.msra.mxu0 %v261
    %427 = vmatprep.subr.mxu0 %v266
    %428 = vmatpush1.msra.mxu0 %v265
    %429 = vmatprep.subr.mxu0 %v270
    %430 = vmatpush1.msra.mxu0 %v269
    %431 = vmatprep.subr.mxu0 %v274
    %432 = vmatpush1.msra.mxu0 %v273
    %433 = vmatprep.subr.mxu0 %v278
    %434 = vmatpush1.msra.mxu0 %v277
    %435 = vmatprep.subr.mxu0 %v282
    %436 = vmatpush1.msra.mxu0 %v281
    %437 = vmatprep.subr.mxu0 %v286
    %438 = vmatpush1.msra.mxu0 %v285
    %439 = vmatprep.mubr.f32.mxu0 %v138
    %440 = vmatmul.mubr.f32.gmra.mrb[0].mxu0 %v137
    %v441 = vpop.f32.mrb[0].mxu0
    %v442 = vadd.f32 %v358, %v441
    %v443 = vpop.f32.mrb[0].mxu0
    %v444 = vadd.f32 %v362, %v443
    %445 = vmatprep.mubr.f32.mxu0 %v141
    %446 = vmatmul.mubr.f32.gmra.mrb[0].mxu0 %v140
    %v447 = vpop.f32.mrb[0].mxu0
    %v448 = vadd.f32 %v358, %v447
    %v449 = vpop.f32.mrb[0].mxu0
    %v450 = vadd.f32 %v362, %v449
    %451 = vmatprep.mubr.f32.mxu0 %v144
    %452 = vmatmul.mubr.f32.gmra.mrb[0].mxu0 %v143
    %v453 = vpop.f32.mrb[0].mxu0
    %v454 = vadd.f32 %v358, %v453
    %v455 = vpop.f32.mrb[0].mxu0
    %v456 = vadd.f32 %v362, %v455
    %457 = vmatprep.mubr.f32.mxu0 %v147
    %458 = vmatmul.mubr.f32.gmra.mrb[0].mxu0 %v146
    %v459 = vpop.f32.mrb[0].mxu0
    %v460 = vadd.f32 %v358, %v459
    %v461 = vpop.f32.mrb[0].mxu0
    %v462 = vadd.f32 %v362, %v461
    %463 = vmatprep.mubr.f32.mxu0 %v150
    %464 = vmatmul.mubr.f32.gmra.mrb[0].mxu0 %v149
    %v465 = vpop.f32.mrb[0].mxu0
    %v466 = vadd.f32 %v358, %v465
    %v467 = vpop.f32.mrb[0].mxu0
    %v468 = vadd.f32 %v362, %v467
    %469 = vmatprep.mubr.f32.mxu0 %v153
    %470 = vmatmul.mubr.f32.gmra.mrb[0].mxu0 %v152
    %v471 = vpop.f32.mrb[0].mxu0
    %v472 = vadd.f32 %v358, %v471
    %v473 = vpop.f32.mrb[0].mxu0
    %v474 = vadd.f32 %v362, %v473
    %475 = vmatprep.mubr.f32.mxu0 %v156
    %476 = vmatmul.mubr.f32.gmra.mrb[0].mxu0 %v155
    %v477 = vpop.f32.mrb[0].mxu0
    %v478 = vadd.f32 %v358, %v477
    %v479 = vpop.f32.mrb[0].mxu0
    %v480 = vadd.f32 %v362, %v479
    %481 = vmatprep.mubr.f32.mxu0 %v159
    %482 = vmatmul.mubr.f32.gmra.mrb[0].mxu0 %v158
    %v483 = vpop.f32.mrb[0].mxu0
    %v484 = vadd.f32 %v358, %v483
    %v485 = vpop.f32.mrb[0].mxu0
    %v486 = vadd.f32 %v362, %v485
    %487 = vdwg.mxu0
    %488 = vmatprep.subr.mxu0 %v290
    %489 = vmatpush1.msra.mxu0 %v289
    %490 = vmatprep.subr.mxu0 %v294
    %491 = vmatpush1.msra.mxu0 %v293
    %492 = vmatprep.subr.mxu0 %v298
    %493 = vmatpush1.msra.mxu0 %v297
    %494 = vmatprep.subr.mxu0 %v302
    %495 = vmatpush1.msra.mxu0 %v301
    %496 = vmatprep.subr.mxu0 %v306
    %497 = vmatpush1.msra.mxu0 %v305
    %498 = vmatprep.subr.mxu0 %v310
    %499 = vmatpush1.msra.mxu0 %v309
    %500 = vmatprep.subr.mxu0 %v314
    %501 = vmatpush1.msra.mxu0 %v313
    %502 = vmatprep.subr.mxu0 %v318
    %503 = vmatpush1.msra.mxu0 %v317
    %504 = vmatprep.subr.mxu0 %v322
    %505 = vmatpush1.msra.mxu0 %v321
    %506 = vmatprep.subr.mxu0 %v326
    %507 = vmatpush1.msra.mxu0 %v325
    %508 = vmatprep.subr.mxu0 %v330
    %509 = vmatpush1.msra.mxu0 %v329
    %510 = vmatprep.subr.mxu0 %v334
    %511 = vmatpush1.msra.mxu0 %v333
    %512 = vmatprep.subr.mxu0 %v338
    %513 = vmatpush1.msra.mxu0 %v337
    %514 = vmatprep.subr.mxu0 %v342
    %515 = vmatpush1.msra.mxu0 %v341
    %516 = vmatprep.subr.mxu0 %v346
    %517 = vmatpush1.msra.mxu0 %v345
    %518 = vmatprep.subr.mxu0 %v350
    %519 = vmatpush1.msra.mxu0 %v349
    %520 = vmatprep.subr.mxu0 0.0
    %521 = vmatpush1.msra.mxu0 0.0
    %522 = vmatprep.subr.mxu0 0.0
    %523 = vmatpush1.msra.mxu0 0.0
    %524 = vmatprep.subr.mxu0 0.0
    %525 = vmatpush1.msra.mxu0 0.0
    %526 = vmatprep.subr.mxu0 0.0
    %527 = vmatpush1.msra.mxu0 0.0
    %528 = vmatprep.subr.mxu0 0.0
    %529 = vmatpush1.msra.mxu0 0.0
    %530 = vmatprep.subr.mxu0 0.0
    %531 = vmatpush1.msra.mxu0 0.0
    %532 = vmatprep.subr.mxu0 0.0
    %533 = vmatpush1.msra.mxu0 0.0
    %534 = vmatprep.subr.mxu0 0.0
    %535 = vmatpush1.msra.mxu0 0.0
    %536 = vmatprep.subr.mxu0 0.0
    %537 = vmatpush1.msra.mxu0 0.0
    %538 = vmatprep.subr.mxu0 0.0
    %539 = vmatpush1.msra.mxu0 0.0
    %540 = vmatprep.subr.mxu0 0.0
    %541 = vmatpush1.msra.mxu0 0.0
    %542 = vmatprep.subr.mxu0 0.0
    %543 = vmatpush1.msra.mxu0 0.0
    %544 = vmatprep.subr.mxu0 0.0
    %545 = vmatpush1.msra.mxu0 0.0
    %546 = vmatprep.subr.mxu0 0.0
    %547 = vmatpush1.msra.mxu0 0.0
    %548 = vmatprep.subr.mxu0 0.0
    %549 = vmatpush1.msra.mxu0 0.0
    %550 = vmatprep.subr.mxu0 0.0
    %551 = vmatpush1.msra.mxu0 0.0
    %552 = vmatprep.mubr.f32.mxu0 0.0
    %553 = vmatmul.mubr.f32.gmra.mrb[0].mxu0 %v139
    %v554 = vpop.f32.mrb[0].mxu0
    %v555 = vadd.f32 %v442, %v554
    %v556 = vpop.f32.mrb[0].mxu0
    %v557 = vadd.f32 %v444, %v556
    %558 = vmatprep.mubr.f32.mxu0 0.0
    %559 = vmatmul.mubr.f32.gmra.mrb[0].mxu0 %v142
    %v560 = vpop.f32.mrb[0].mxu0
    %v561 = vadd.f32 %v448, %v560
    %v562 = vpop.f32.mrb[0].mxu0
    %v563 = vadd.f32 %v450, %v562
    %564 = vmatprep.mubr.f32.mxu0 0.0
    %565 = vmatmul.mubr.f32.gmra.mrb[0].mxu0 %v145
    %v566 = vpop.f32.mrb[0].mxu0
    %v567 = vadd.f32 %v454, %v566
    %v568 = vpop.f32.mrb[0].mxu0
    %v569 = vadd.f32 %v456, %v568
    %570 = vmatprep.mubr.f32.mxu0 0.0
    %571 = vmatmul.mubr.f32.gmra.mrb[0].mxu0 %v148
    %v572 = vpop.f32.mrb[0].mxu0
    %v573 = vadd.f32 %v460, %v572
    %v574 = vpop.f32.mrb[0].mxu0
    %v575 = vadd.f32 %v462, %v574
    %576 = vmatprep.mubr.f32.mxu0 0.0
    %577 = vmatmul.mubr.f32.gmra.mrb[0].mxu0 %v151
    %v578 = vpop.f32.mrb[0].mxu0
    %v579 = vadd.f32 %v466, %v578
    %v580 = vpop.f32.mrb[0].mxu0
    %v581 = vadd.f32 %v468, %v580
    %582 = vmatprep.mubr.f32.mxu0 0.0
    %583 = vmatmul.mubr.f32.gmra.mrb[0].mxu0 %v154
    %v584 = vpop.f32.mrb[0].mxu0
    %v585 = vadd.f32 %v472, %v584
    %v586 = vpop.f32.mrb[0].mxu0
    %v587 = vadd.f32 %v474, %v586
    %588 = vmatprep.mubr.f32.mxu0 0.0
    %589 = vmatmul.mubr.f32.gmra.mrb[0].mxu0 %v157
    %v590 = vpop.f32.mrb[0].mxu0
    %v591 = vadd.f32 %v478, %v590
    %v592 = vpop.f32.mrb[0].mxu0
    %v593 = vadd.f32 %v480, %v592
    %594 = vmatprep.mubr.f32.mxu0 0.0
    %595 = vmatmul.mubr.f32.gmra.mrb[0].mxu0 %v160
    %v596 = vpop.f32.mrb[0].mxu0
    %v597 = vadd.f32 %v484, %v596
    %v598 = vpop.f32.mrb[0].mxu0
    %v599 = vadd.f32 %v486, %v598
    %600 = vdwg.mxu0
    %601 = vmatprep.subr.mxu0 %v164
    %602 = vmatpush1.msra.mxu0 %v163
    %603 = vmatprep.subr.mxu0 %v168
    %604 = vmatpush1.msra.mxu0 %v167
    %605 = vmatprep.subr.mxu0 %v172
    %606 = vmatpush1.msra.mxu0 %v171
    %607 = vmatprep.subr.mxu0 %v176
    %608 = vmatpush1.msra.mxu0 %v175
    %609 = vmatprep.subr.mxu0 %v180
    %610 = vmatpush1.msra.mxu0 %v179
    %611 = vmatprep.subr.mxu0 %v184
    %612 = vmatpush1.msra.mxu0 %v183
    %613 = vmatprep.subr.mxu0 %v188
    %614 = vmatpush1.msra.mxu0 %v187
    %615 = vmatprep.subr.mxu0 %v192
    %616 = vmatpush1.msra.mxu0 %v191
    %617 = vmatprep.subr.mxu0 %v196
    %618 = vmatpush1.msra.mxu0 %v195
    %619 = vmatprep.subr.mxu0 %v200
    %620 = vmatpush1.msra.mxu0 %v199
    %621 = vmatprep.subr.mxu0 %v204
    %622 = vmatpush1.msra.mxu0 %v203
    %623 = vmatprep.subr.mxu0 %v208
    %624 = vmatpush1.msra.mxu0 %v207
    %625 = vmatprep.subr.mxu0 %v212
    %626 = vmatpush1.msra.mxu0 %v211
    %627 = vmatprep.subr.mxu0 %v216
    %628 = vmatpush1.msra.mxu0 %v215
    %629 = vmatprep.subr.mxu0 %v220
    %630 = vmatpush1.msra.mxu0 %v219
    %631 = vmatprep.subr.mxu0 %v224
    %632 = vmatpush1.msra.mxu0 %v223
    %633 = vmatprep.subr.mxu0 %v228
    %634 = vmatpush1.msra.mxu0 %v227
    %635 = vmatprep.subr.mxu0 %v232
    %636 = vmatpush1.msra.mxu0 %v231
    %637 = vmatprep.subr.mxu0 %v236
    %638 = vmatpush1.msra.mxu0 %v235
    %639 = vmatprep.subr.mxu0 %v240
    %640 = vmatpush1.msra.mxu0 %v239
    %641 = vmatprep.subr.mxu0 %v244
    %642 = vmatpush1.msra.mxu0 %v243
    %643 = vmatprep.subr.mxu0 %v248
    %644 = vmatpush1.msra.mxu0 %v247
    %645 = vmatprep.subr.mxu0 %v252
    %646 = vmatpush1.msra.mxu0 %v251
    %647 = vmatprep.subr.mxu0 %v256
    %648 = vmatpush1.msra.mxu0 %v255
    %649 = vmatprep.subr.mxu0 %v260
    %650 = vmatpush1.msra.mxu0 %v259
    %651 = vmatprep.subr.mxu0 %v264
    %652 = vmatpush1.msra.mxu0 %v263
    %653 = vmatprep.subr.mxu0 %v268
    %654 = vmatpush1.msra.mxu0 %v267
    %655 = vmatprep.subr.mxu0 %v272
    %656 = vmatpush1.msra.mxu0 %v271
    %657 = vmatprep.subr.mxu0 %v276
    %658 = vmatpush1.msra.mxu0 %v275
    %659 = vmatprep.subr.mxu0 %v280
    %660 = vmatpush1.msra.mxu0 %v279
    %661 = vmatprep.subr.mxu0 %v284
    %662 = vmatpush1.msra.mxu0 %v283
    %663 = vmatprep.subr.mxu0 %v288
    %664 = vmatpush1.msra.mxu0 %v287
    %665 = vmatprep.mubr.f32.mxu0 %v138
    %666 = vmatmul.mubr.f32.gmra.mrb[0].mxu0 %v137
    %v667 = vpop.f32.mrb[0].mxu0
    %v668 = vadd.f32 %v366, %v667
    %v669 = vpop.f32.mrb[0].mxu0
    %v670 = vadd.f32 %v370, %v669
    %671 = vmatprep.mubr.f32.mxu0 %v141
    %672 = vmatmul.mubr.f32.gmra.mrb[0].mxu0 %v140
    %v673 = vpop.f32.mrb[0].mxu0
    %v674 = vadd.f32 %v366, %v673
    %v675 = vpop.f32.mrb[0].mxu0
    %v676 = vadd.f32 %v370, %v675
    %677 = vmatprep.mubr.f32.mxu0 %v144
    %678 = vmatmul.mubr.f32.gmra.mrb[0].mxu0 %v143
    %v679 = vpop.f32.mrb[0].mxu0
    %v680 = vadd.f32 %v366, %v679
    %v681 = vpop.f32.mrb[0].mxu0
    %v682 = vadd.f32 %v370, %v681
    %683 = vmatprep.mubr.f32.mxu0 %v147
    %684 = vmatmul.mubr.f32.gmra.mrb[0].mxu0 %v146
    %v685 = vpop.f32.mrb[0].mxu0
    %v686 = vadd.f32 %v366, %v685
    %v687 = vpop.f32.mrb[0].mxu0
    %v688 = vadd.f32 %v370, %v687
    %689 = vmatprep.mubr.f32.mxu0 %v150
    %690 = vmatmul.mubr.f32.gmra.mrb[0].mxu0 %v149
    %v691 = vpop.f32.mrb[0].mxu0
    %v692 = vadd.f32 %v366, %v691
    %v693 = vpop.f32.mrb[0].mxu0
    %v694 = vadd.f32 %v370, %v693
    %695 = vmatprep.mubr.f32.mxu0 %v153
    %696 = vmatmul.mubr.f32.gmra.mrb[0].mxu0 %v152
    %v697 = vpop.f32.mrb[0].mxu0
    %v698 = vadd.f32 %v366, %v697
    %v699 = vpop.f32.mrb[0].mxu0
    %v700 = vadd.f32 %v370, %v699
    %701 = vmatprep.mubr.f32.mxu0 %v156
    %702 = vmatmul.mubr.f32.gmra.mrb[0].mxu0 %v155
    %v703 = vpop.f32.mrb[0].mxu0
    %v704 = vadd.f32 %v366, %v703
    %v705 = vpop.f32.mrb[0].mxu0
    %v706 = vadd.f32 %v370, %v705
    %707 = vmatprep.mubr.f32.mxu0 %v159
    %708 = vmatmul.mubr.f32.gmra.mrb[0].mxu0 %v158
    %v709 = vpop.f32.mrb[0].mxu0
    %v710 = vadd.f32 %v366, %v709
    %v711 = vpop.f32.mrb[0].mxu0
    %v712 = vadd.f32 %v370, %v711
    %713 = vdwg.mxu0
    %714 = vmatprep.subr.mxu0 %v292
    %715 = vmatpush1.msra.mxu0 %v291
    %716 = vmatprep.subr.mxu0 %v296
    %717 = vmatpush1.msra.mxu0 %v295
    %718 = vmatprep.subr.mxu0 %v300
    %719 = vmatpush1.msra.mxu0 %v299
    %720 = vmatprep.subr.mxu0 %v304
    %721 = vmatpush1.msra.mxu0 %v303
    %722 = vmatprep.subr.mxu0 %v308
    %723 = vmatpush1.msra.mxu0 %v307
    %724 = vmatprep.subr.mxu0 %v312
    %725 = vmatpush1.msra.mxu0 %v311
    %726 = vmatprep.subr.mxu0 %v316
    %727 = vmatpush1.msra.mxu0 %v315
    %728 = vmatprep.subr.mxu0 %v320
    %729 = vmatpush1.msra.mxu0 %v319
    %730 = vmatprep.subr.mxu0 %v324
    %731 = vmatpush1.msra.mxu0 %v323
    %732 = vmatprep.subr.mxu0 %v328
    %733 = vmatpush1.msra.mxu0 %v327
    %734 = vmatprep.subr.mxu0 %v332
    %735 = vmatpush1.msra.mxu0 %v331
    %736 = vmatprep.subr.mxu0 %v336
    %737 = vmatpush1.msra.mxu0 %v335
    %738 = vmatprep.subr.mxu0 %v340
    %739 = vmatpush1.msra.mxu0 %v339
    %740 = vmatprep.subr.mxu0 %v344
    %741 = vmatpush1.msra.mxu0 %v343
    %742 = vmatprep.subr.mxu0 %v348
    %743 = vmatpush1.msra.mxu0 %v347
    %744 = vmatprep.subr.mxu0 %v352
    %745 = vmatpush1.msra.mxu0 %v351
    %746 = vmatprep.subr.mxu0 0.0
    %747 = vmatpush1.msra.mxu0 0.0
    %748 = vmatprep.subr.mxu0 0.0
    %749 = vmatpush1.msra.mxu0 0.0
    %750 = vmatprep.subr.mxu0 0.0
    %751 = vmatpush1.msra.mxu0 0.0
    %752 = vmatprep.subr.mxu0 0.0
    %753 = vmatpush1.msra.mxu0 0.0
    %754 = vmatprep.subr.mxu0 0.0
    %755 = vmatpush1.msra.mxu0 0.0
    %756 = vmatprep.subr.mxu0 0.0
    %757 = vmatpush1.msra.mxu0 0.0
    %758 = vmatprep.subr.mxu0 0.0
    %759 = vmatpush1.msra.mxu0 0.0
    %760 = vmatprep.subr.mxu0 0.0
    %761 = vmatpush1.msra.mxu0 0.0
    %762 = vmatprep.subr.mxu0 0.0
    %763 = vmatpush1.msra.mxu0 0.0
    %764 = vmatprep.subr.mxu0 0.0
    %765 = vmatpush1.msra.mxu0 0.0
    %766 = vmatprep.subr.mxu0 0.0
    %767 = vmatpush1.msra.mxu0 0.0
    %768 = vmatprep.subr.mxu0 0.0
    %769 = vmatpush1.msra.mxu0 0.0
    %770 = vmatprep.subr.mxu0 0.0
    %771 = vmatpush1.msra.mxu0 0.0
    %772 = vmatprep.subr.mxu0 0.0
    %773 = vmatpush1.msra.mxu0 0.0
    %774 = vmatprep.subr.mxu0 0.0
    %775 = vmatpush1.msra.mxu0 0.0
    %776 = vmatprep.subr.mxu0 0.0
    %777 = vmatpush1.msra.mxu0 0.0
    %778 = vmatprep.mubr.f32.mxu0 0.0
    %779 = vmatmul.mubr.f32.gmra.mrb[0].mxu0 %v139
    %v780 = vpop.f32.mrb[0].mxu0
    %v781 = vadd.f32 %v668, %v780
    %v782 = vpop.f32.mrb[0].mxu0
    %v783 = vadd.f32 %v670, %v782
    %784 = vmatprep.mubr.f32.mxu0 0.0
    %785 = vmatmul.mubr.f32.gmra.mrb[0].mxu0 %v142
    %v786 = vpop.f32.mrb[0].mxu0
    %v787 = vadd.f32 %v674, %v786
    %v788 = vpop.f32.mrb[0].mxu0
    %v789 = vadd.f32 %v676, %v788
    %790 = vmatprep.mubr.f32.mxu0 0.0
    %791 = vmatmul.mubr.f32.gmra.mrb[0].mxu0 %v145
    %v792 = vpop.f32.mrb[0].mxu0
    %v793 = vadd.f32 %v680, %v792
    %v794 = vpop.f32.mrb[0].mxu0
    %v795 = vadd.f32 %v682, %v794
    %796 = vmatprep.mubr.f32.mxu0 0.0
    %797 = vmatmul.mubr.f32.gmra.mrb[0].mxu0 %v148
    %v798 = vpop.f32.mrb[0].mxu0
    %v799 = vadd.f32 %v686, %v798
    %v800 = vpop.f32.mrb[0].mxu0
    %v801 = vadd.f32 %v688, %v800
    %802 = vmatprep.mubr.f32.mxu0 0.0
    %803 = vmatmul.mubr.f32.gmra.mrb[0].mxu0 %v151
    %v804 = vpop.f32.mrb[0].mxu0
    %v805 = vadd.f32 %v692, %v804
    %v806 = vpop.f32.mrb[0].mxu0
    %v807 = vadd.f32 %v694, %v806
    %808 = vmatprep.mubr.f32.mxu0 0.0
    %809 = vmatmul.mubr.f32.gmra.mrb[0].mxu0 %v154
    %v810 = vpop.f32.mrb[0].mxu0
    %v811 = vadd.f32 %v698, %v810
    %v812 = vpop.f32.mrb[0].mxu0
    %v813 = vadd.f32 %v700, %v812
    %814 = vmatprep.mubr.f32.mxu0 0.0
    %815 = vmatmul.mubr.f32.gmra.mrb[0].mxu0 %v157
    %v816 = vpop.f32.mrb[0].mxu0
    %v817 = vadd.f32 %v704, %v816
    %v818 = vpop.f32.mrb[0].mxu0
    %v819 = vadd.f32 %v706, %v818
    %820 = vmatprep.mubr.f32.mxu0 0.0
    %821 = vmatmul.mubr.f32.gmra.mrb[0].mxu0 %v160
    %v822 = vpop.f32.mrb[0].mxu0
    %v823 = vadd.f32 %v710, %v822
    %v824 = vpop.f32.mrb[0].mxu0
    %v825 = vadd.f32 %v712, %v824
    %826 = vdwg.mxu0
    %827 = vst [vmem:[#allocation3] sm:$0xff] %v555
    %828 = vst [vmem:[#allocation3 + $0x8] sm:$0xff] %v557
    %829 = vst [vmem:[#allocation3 + $0x10] sm:$0xff] %v781
    %830 = vst [vmem:[#allocation3 + $0x18] sm:$0xff] %v783
    %831 = vst [vmem:[#allocation3 + $0x20] sm:$0xff] %v561
    %832 = vst [vmem:[#allocation3 + $0x28] sm:$0xff] %v563
    %833 = vst [vmem:[#allocation3 + $0x30] sm:$0xff] %v787
    %834 = vst [vmem:[#allocation3 + $0x38] sm:$0xff] %v789
    %835 = vst [vmem:[#allocation3 + $0x40] sm:$0xff] %v567
    %836 = vst [vmem:[#allocation3 + $0x48] sm:$0xff] %v569
    %837 = vst [vmem:[#allocation3 + $0x50] sm:$0xff] %v793
    %838 = vst [vmem:[#allocation3 + $0x58] sm:$0xff] %v795
    %839 = vst [vmem:[#allocation3 + $0x60] sm:$0xff] %v573
    %840 = vst [vmem:[#allocation3 + $0x68] sm:$0xff] %v575
    %841 = vst [vmem:[#allocation3 + $0x70] sm:$0xff] %v799
    %842 = vst [vmem:[#allocation3 + $0x78] sm:$0xff] %v801
    %843 = vst [vmem:[#allocation3 + $0x80] sm:$0xff] %v579
    %844 = vst [vmem:[#allocation3 + $0x88] sm:$0xff] %v581
    %845 = vst [vmem:[#allocation3 + $0x90] sm:$0xff] %v805
    %846 = vst [vmem:[#allocation3 + $0x98] sm:$0xff] %v807
    %847 = vst [vmem:[#allocation3 + $0xa0] sm:$0xff] %v585
    %848 = vst [vmem:[#allocation3 + $0xa8] sm:$0xff] %v587
    %849 = vst [vmem:[#allocation3 + $0xb0] sm:$0xff] %v811
    %850 = vst [vmem:[#allocation3 + $0xb8] sm:$0xff] %v813
    %851 = vst [vmem:[#allocation3 + $0xc0] sm:$0xff] %v591
    %852 = vst [vmem:[#allocation3 + $0xc8] sm:$0xff] %v593
    %853 = vst [vmem:[#allocation3 + $0xd0] sm:$0xff] %v817
    %854 = vst [vmem:[#allocation3 + $0xd8] sm:$0xff] %v819
    %855 = vst [vmem:[#allocation3 + $0xe0] sm:$0xff] %v597
    %856 = vst [vmem:[#allocation3 + $0xe8] sm:$0xff] %v599
    %857 = vst [vmem:[#allocation3 + $0xf0] sm:$0xff] %v823
    %858 = vst [vmem:[#allocation3 + $0xf8] sm:$0xff] %v825
    %v859 = vld [vmem:[#allocation12] sm:$0xff]
    %v860 = vld [vmem:[#allocation12 + $0x8] sm:$0xff]
    %v861 = vld [vmem:[#allocation12 + $0x10] sm:$0xff]
    %v862 = vld [vmem:[#allocation12 + $0x18] sm:$0xff]
    %v863 = vld [vmem:[#allocation12 + $0x20] sm:$0xff]
    %v864 = vld [vmem:[#allocation12 + $0x28] sm:$0xff]
    %v865 = vld [vmem:[#allocation12 + $0x30] sm:$0xff]
    %v866 = vld [vmem:[#allocation12 + $0x38] sm:$0xff]
    %v867 = vld [vmem:[#allocation12 + $0x40] sm:$0xff]
    %v868 = vld [vmem:[#allocation12 + $0x48] sm:$0xff]
    %v869 = vld [vmem:[#allocation12 + $0x50] sm:$0xff]
    %v870 = vld [vmem:[#allocation12 + $0x58] sm:$0xff]
    %v871 = vld [vmem:[#allocation12 + $0x60] sm:$0xff]
    %v872 = vld [vmem:[#allocation12 + $0x68] sm:$0xff]
    %v873 = vld [vmem:[#allocation12 + $0x70] sm:$0xff]
    %v874 = vld [vmem:[#allocation12 + $0x78] sm:$0xff]
    %v875 = vld [vmem:[#allocation12 + $0x80] sm:$0xff]
    %v876 = vld [vmem:[#allocation12 + $0x88] sm:$0xff]
    %v877 = vld [vmem:[#allocation12 + $0x90] sm:$0xff]
    %v878 = vld [vmem:[#allocation12 + $0x98] sm:$0xff]
    %v879 = vld [vmem:[#allocation12 + $0xa0] sm:$0xff]
    %v880 = vld [vmem:[#allocation12 + $0xa8] sm:$0xff]
    %v881 = vld [vmem:[#allocation12 + $0xb0] sm:$0xff]
    %v882 = vld [vmem:[#allocation12 + $0xb8] sm:$0xff]
    %v883 = vld [vmem:[#allocation12 + $0xc0] sm:$0xff]
    %v884 = vld [vmem:[#allocation12 + $0xc8] sm:$0xff]
    %v885 = vld [vmem:[#allocation12 + $0xd0] sm:$0xff]
    %v886 = vld [vmem:[#allocation12 + $0xd8] sm:$0xff]
    %v887 = vld [vmem:[#allocation12 + $0xe0] sm:$0xff]
    %v888 = vld [vmem:[#allocation12 + $0xe8] sm:$0xff]
    %v889 = vld [vmem:[#allocation12 + $0xf0] sm:$0xff]
    %v890 = vld [vmem:[#allocation12 + $0xf8] sm:$0xff]
    %v891 = vld [vmem:[#allocation12 + $0x100] sm:$0xff]
    %v892 = vld [vmem:[#allocation12 + $0x108] sm:$0xff]
    %v893 = vld [vmem:[#allocation12 + $0x110] sm:$0xff]
    %v894 = vld [vmem:[#allocation12 + $0x118] sm:$0xff]
    %v895 = vld [vmem:[#allocation12 + $0x120] sm:$0xff]
    %v896 = vld [vmem:[#allocation12 + $0x128] sm:$0xff]
    %v897 = vld [vmem:[#allocation12 + $0x130] sm:$0xff]
    %v898 = vld [vmem:[#allocation12 + $0x138] sm:$0xff]
    %v899 = vld [vmem:[#allocation12 + $0x140] sm:$0xff]
    %v900 = vld [vmem:[#allocation12 + $0x148] sm:$0xff]
    %v901 = vld [vmem:[#allocation12 + $0x150] sm:$0xff]
    %v902 = vld [vmem:[#allocation12 + $0x158] sm:$0xff]
    %v903 = vld [vmem:[#allocation12 + $0x160] sm:$0xff]
    %v904 = vld [vmem:[#allocation12 + $0x168] sm:$0xff]
    %v905 = vld [vmem:[#allocation12 + $0x170] sm:$0xff]
    %v906 = vld [vmem:[#allocation12 + $0x178] sm:$0xff]
    %v907 = vld [vmem:[#allocation12 + $0x180] sm:$0xff]
    %v908 = vld [vmem:[#allocation12 + $0x188] sm:$0xff]
    %v909 = vld [vmem:[#allocation12 + $0x190] sm:$0xff]
    %v910 = vld [vmem:[#allocation12 + $0x198] sm:$0xff]
    %v911 = vld [vmem:[#allocation12 + $0x1a0] sm:$0xff]
    %v912 = vld [vmem:[#allocation12 + $0x1a8] sm:$0xff]
    %v913 = vld [vmem:[#allocation12 + $0x1b0] sm:$0xff]
    %v914 = vld [vmem:[#allocation12 + $0x1b8] sm:$0xff]
    %v915 = vld [vmem:[#allocation12 + $0x1c0] sm:$0xff]
    %v916 = vld [vmem:[#allocation12 + $0x1c8] sm:$0xff]
    %v917 = vld [vmem:[#allocation12 + $0x1d0] sm:$0xff]
    %v918 = vld [vmem:[#allocation12 + $0x1d8] sm:$0xff]
    %v919 = vld [vmem:[#allocation12 + $0x1e0] sm:$0xff]
    %v920 = vld [vmem:[#allocation12 + $0x1e8] sm:$0xff]
    %v921 = vld [vmem:[#allocation12 + $0x1f0] sm:$0xff]
    %v922 = vld [vmem:[#allocation12 + $0x1f8] sm:$0xff]
    %v923 = vlaneseq
    %v924 = vand.u32 %v923, 127
    %v925 = vadd.s32 %v924, 128
    %v926 = vadd.s32 %v924, 256
    %v927 = vadd.s32 %v924, 384
    %vm928 = vcmp.lt.s32.totalorder %v924, 0
    %v929 = vsub.s32 0, %v924
    %v930 = vsel %vm928, %v929, %v924
    %v931 = vshrl.u32 %v930, 7
    %v932 = vand.u32 %v930, 127
    %v933 = vsub.s32 0, %v932
    %v934 = vsel %vm928, %v933, %v932
    %vm935 = vcmp.lt.s32.totalorder %v925, 0
    %v936 = vsub.s32 0, %v925
    %v937 = vsel %vm935, %v936, %v925
    %v938 = vshrl.u32 %v937, 7
    %v939 = vand.u32 %v937, 127
    %v940 = vsub.s32 0, %v939
    %v941 = vsel %vm935, %v940, %v939
    %vm942 = vcmp.lt.s32.totalorder %v926, 0
    %v943 = vsub.s32 0, %v926
    %v944 = vsel %vm942, %v943, %v926
    %v945 = vshrl.u32 %v944, 7
    %v946 = vand.u32 %v944, 127
    %v947 = vsub.s32 0, %v946
    %v948 = vsel %vm942, %v947, %v946
    %vm949 = vcmp.lt.s32.totalorder %v927, 0
    %v950 = vsub.s32 0, %v927
    %v951 = vsel %vm949, %v950, %v927
    %v952 = vshrl.u32 %v951, 7
    %v953 = vand.u32 %v951, 127
    %v954 = vsub.s32 0, %v953
    %v955 = vsel %vm949, %v954, %v953
    %vm956 = vcmp.ne.s32.totalorder %v934, 0
    %vm957 = vcmp.ne.s32.totalorder %v941, 0
    %vm958 = vcmp.ne.s32.totalorder %v948, 0
    %vm959 = vcmp.ne.s32.totalorder %v955, 0
    %vm960 = vcmp.lt.s32.totalorder %v934, 0
    %vm961 = vcmp.lt.s32.totalorder %v941, 0
    %vm962 = vcmp.lt.s32.totalorder %v948, 0
    %vm963 = vcmp.lt.s32.totalorder %v955, 0
    %vm964 = vmand %vm960, %vm956
    %vm965 = vmand %vm961, %vm957
    %vm966 = vmand %vm962, %vm958
    %vm967 = vmand %vm963, %vm959
    %v968 = vadd.s32 %v934, 128
    %v969 = vadd.s32 %v941, 128
    %v970 = vadd.s32 %v948, 128
    %v971 = vadd.s32 %v955, 128
    %v972 = vsel %vm964, %v968, %v934
    %v973 = vsel %vm965, %v969, %v941
    %v974 = vsel %vm966, %v970, %v948
    %v975 = vsel %vm967, %v971, %v955
    %vm976 = vcmp.lt.s32.totalorder %v972, 64
    %vm977 = vcmp.lt.s32.totalorder %v973, 64
    %vm978 = vcmp.lt.s32.totalorder %v974, 64
    %vm979 = vcmp.lt.s32.totalorder %v975, 64
    %v980 = vld [vmem:[#allocation3] sm:$0xff]
    %v981 = vld [vmem:[#allocation3 + $0x8] sm:$0xff]
    %v982 = vld [vmem:[#allocation3 + $0x10] sm:$0xff]
    %v983 = vld [vmem:[#allocation3 + $0x18] sm:$0xff]
    %s984 = scalar_lea.vmem [#allocation3], 224
    %v985 = vld [vmem:[%s984] sm:$0xff]
    %v986 = vld [vmem:[%s984 + $0x8] sm:$0xff]
    %v987 = vld [vmem:[%s984 + $0x10] sm:$0xff]
    %v988 = vld [vmem:[%s984 + $0x18] sm:$0xff]
    %v989 = vsel %vm976, %v980, %v985
    %v990 = vsel %vm977, %v981, %v986
    %v991 = vsel %vm978, %v982, %v987
    %v992 = vsel %vm979, %v983, %v988
    %993 = vmatprep.subr.mxu0 %v860
    %994 = vmatpush1.msra.mxu0 %v859
    %995 = vmatprep.subr.mxu0 %v864
    %996 = vmatpush1.msra.mxu0 %v863
    %997 = vmatprep.subr.mxu0 %v868
    %998 = vmatpush1.msra.mxu0 %v867
    %999 = vmatprep.subr.mxu0 %v872
    %1000 = vmatpush1.msra.mxu0 %v871
    %1001 = vmatprep.subr.mxu0 %v876
    %1002 = vmatpush1.msra.mxu0 %v875
    %1003 = vmatprep.subr.mxu0 %v880
    %1004 = vmatpush1.msra.mxu0 %v879
    %1005 = vmatprep.subr.mxu0 %v884
    %1006 = vmatpush1.msra.mxu0 %v883
    %1007 = vmatprep.subr.mxu0 %v888
    %1008 = vmatpush1.msra.mxu0 %v887
    %1009 = vmatprep.subr.mxu0 %v892
    %1010 = vmatpush1.msra.mxu0 %v891
    %1011 = vmatprep.subr.mxu0 %v896
    %1012 = vmatpush1.msra.mxu0 %v895
    %1013 = vmatprep.subr.mxu0 %v900
    %1014 = vmatpush1.msra.mxu0 %v899
    %1015 = vmatprep.subr.mxu0 %v904
    %1016 = vmatpush1.msra.mxu0 %v903
    %1017 = vmatprep.subr.mxu0 %v908
    %1018 = vmatpush1.msra.mxu0 %v907
    %1019 = vmatprep.subr.mxu0 %v912
    %1020 = vmatpush1.msra.mxu0 %v911
    %1021 = vmatprep.subr.mxu0 %v916
    %1022 = vmatpush1.msra.mxu0 %v915
    %1023 = vmatprep.subr.mxu0 %v920
    %1024 = vmatpush1.msra.mxu0 %v919
    %1025 = vmatprep.subr.mxu0 0.0
    %1026 = vmatpush1.msra.mxu0 0.0
    %1027 = vmatprep.subr.mxu0 0.0
    %1028 = vmatpush1.msra.mxu0 0.0
    %1029 = vmatprep.subr.mxu0 0.0
    %1030 = vmatpush1.msra.mxu0 0.0
    %1031 = vmatprep.subr.mxu0 0.0
    %1032 = vmatpush1.msra.mxu0 0.0
    %1033 = vmatprep.subr.mxu0 0.0
    %1034 = vmatpush1.msra.mxu0 0.0
    %1035 = vmatprep.subr.mxu0 0.0
    %1036 = vmatpush1.msra.mxu0 0.0
    %1037 = vmatprep.subr.mxu0 0.0
    %1038 = vmatpush1.msra.mxu0 0.0
    %1039 = vmatprep.subr.mxu0 0.0
    %1040 = vmatpush1.msra.mxu0 0.0
    %1041 = vmatprep.subr.mxu0 0.0
    %1042 = vmatpush1.msra.mxu0 0.0
    %1043 = vmatprep.subr.mxu0 0.0
    %1044 = vmatpush1.msra.mxu0 0.0
    %1045 = vmatprep.subr.mxu0 0.0
    %1046 = vmatpush1.msra.mxu0 0.0
    %1047 = vmatprep.subr.mxu0 0.0
    %1048 = vmatpush1.msra.mxu0 0.0
    %1049 = vmatprep.subr.mxu0 0.0
    %1050 = vmatpush1.msra.mxu0 0.0
    %1051 = vmatprep.subr.mxu0 0.0
    %1052 = vmatpush1.msra.mxu0 0.0
    %1053 = vmatprep.subr.mxu0 0.0
    %1054 = vmatpush1.msra.mxu0 0.0
    %1055 = vmatprep.subr.mxu0 0.0
    %1056 = vmatpush1.msra.mxu0 0.0
    %1057 = vmatprep.mubr.f32.mxu0 0.0
    %1058 = vmatmul.mubr.f32.gmra.mrb[0].mxu0 0.0
    %v1059 = vpop.f32.mrb[0].mxu0
    %v1060 = vadd.f32 %v989, %v1059
    %v1061 = vpop.f32.mrb[0].mxu0
    %v1062 = vadd.f32 %v990, %v1061
    %1063 = vdwg.mxu0
    %1064 = vmatprep.subr.mxu0 %v862
    %1065 = vmatpush1.msra.mxu0 %v861
    %1066 = vmatprep.subr.mxu0 %v866
    %1067 = vmatpush1.msra.mxu0 %v865
    %1068 = vmatprep.subr.mxu0 %v870
    %1069 = vmatpush1.msra.mxu0 %v869
    %1070 = vmatprep.subr.mxu0 %v874
    %1071 = vmatpush1.msra.mxu0 %v873
    %1072 = vmatprep.subr.mxu0 %v878
    %1073 = vmatpush1.msra.mxu0 %v877
    %1074 = vmatprep.subr.mxu0 %v882
    %1075 = vmatpush1.msra.mxu0 %v881
    %1076 = vmatprep.subr.mxu0 %v886
    %1077 = vmatpush1.msra.mxu0 %v885
    %1078 = vmatprep.subr.mxu0 %v890
    %1079 = vmatpush1.msra.mxu0 %v889
    %1080 = vmatprep.subr.mxu0 %v894
    %1081 = vmatpush1.msra.mxu0 %v893
    %1082 = vmatprep.subr.mxu0 %v898
    %1083 = vmatpush1.msra.mxu0 %v897
    %1084 = vmatprep.subr.mxu0 %v902
    %1085 = vmatpush1.msra.mxu0 %v901
    %1086 = vmatprep.subr.mxu0 %v906
    %1087 = vmatpush1.msra.mxu0 %v905
    %1088 = vmatprep.subr.mxu0 %v910
    %1089 = vmatpush1.msra.mxu0 %v909
    %1090 = vmatprep.subr.mxu0 %v914
    %1091 = vmatpush1.msra.mxu0 %v913
    %1092 = vmatprep.subr.mxu0 %v918
    %1093 = vmatpush1.msra.mxu0 %v917
    %1094 = vmatprep.subr.mxu0 %v922
    %1095 = vmatpush1.msra.mxu0 %v921
    %1096 = vmatprep.subr.mxu0 0.0
    %1097 = vmatpush1.msra.mxu0 0.0
    %1098 = vmatprep.subr.mxu0 0.0
    %1099 = vmatpush1.msra.mxu0 0.0
    %1100 = vmatprep.subr.mxu0 0.0
    %1101 = vmatpush1.msra.mxu0 0.0
    %1102 = vmatprep.subr.mxu0 0.0
    %1103 = vmatpush1.msra.mxu0 0.0
    %1104 = vmatprep.subr.mxu0 0.0
    %1105 = vmatpush1.msra.mxu0 0.0
    %1106 = vmatprep.subr.mxu0 0.0
    %1107 = vmatpush1.msra.mxu0 0.0
    %1108 = vmatprep.subr.mxu0 0.0
    %1109 = vmatpush1.msra.mxu0 0.0
    %1110 = vmatprep.subr.mxu0 0.0
    %1111 = vmatpush1.msra.mxu0 0.0
    %1112 = vmatprep.subr.mxu0 0.0
    %1113 = vmatpush1.msra.mxu0 0.0
    %1114 = vmatprep.subr.mxu0 0.0
    %1115 = vmatpush1.msra.mxu0 0.0
    %1116 = vmatprep.subr.mxu0 0.0
    %1117 = vmatpush1.msra.mxu0 0.0
    %1118 = vmatprep.subr.mxu0 0.0
    %1119 = vmatpush1.msra.mxu0 0.0
    %1120 = vmatprep.subr.mxu0 0.0
    %1121 = vmatpush1.msra.mxu0 0.0
    %1122 = vmatprep.subr.mxu0 0.0
    %1123 = vmatpush1.msra.mxu0 0.0
    %1124 = vmatprep.subr.mxu0 0.0
    %1125 = vmatpush1.msra.mxu0 0.0
    %1126 = vmatprep.subr.mxu0 0.0
    %1127 = vmatpush1.msra.mxu0 0.0
    %1128 = vmatprep.mubr.f32.mxu0 0.0
    %1129 = vmatmul.mubr.f32.gmra.mrb[0].mxu0 0.0
    %v1130 = vpop.f32.mrb[0].mxu0
    %v1131 = vadd.f32 %v991, %v1130
    %v1132 = vpop.f32.mrb[0].mxu0
    %v1133 = vadd.f32 %v992, %v1132
    %1134 = vdwg.mxu0
    %v1135 = vxor.u32 %v1060, 2147483648
    %v1136 = vmul.f32 %v1135, 1.442695
    %v1137 = vpow.pop %v1136
    %v1138 = vadd.f32 %v1137, 1.0
    %v1139 = vrcp.pop %v1138
    %v1140 = vmul.f32 1.0, %v1139
    %v1141 = vxor.u32 %v1062, 2147483648
    %v1142 = vmul.f32 %v1141, 1.442695
    %v1143 = vpow.pop %v1142
    %v1144 = vadd.f32 %v1143, 1.0
    %v1145 = vrcp.pop %v1144
    %v1146 = vmul.f32 1.0, %v1145
    %v1147 = vtanh.pop %v1131
    %v1148 = vxor.u32 %v1133, 2147483648
    %v1149 = vmul.f32 %v1148, 1.442695
    %v1150 = vpow.pop %v1149
    %v1151 = vadd.f32 %v1150, 1.0
    %v1152 = vrcp.pop %v1151
    %v1153 = vmul.f32 1.0, %v1152
    %v1154 = vmul.f32 %v1146, 0.0
    %v1155 = vmul.f32 %v1140, %v1147
    %v1156 = vadd.f32 %v1154, %v1155
    %v1157 = vtanh.pop %v1156
    %v1158 = vmul.f32 %v1153, %v1157
    %v1159 = vadd.f32 %v1158, 0.0
    %s1160 = scalar_lea.vmem [#allocation3], 32
    %v1161 = vld [vmem:[%s1160] sm:$0xff]
    %v1162 = vld [vmem:[%s1160 + $0x8] sm:$0xff]
    %v1163 = vld [vmem:[%s1160 + $0x10] sm:$0xff]
    %v1164 = vld [vmem:[%s1160 + $0x18] sm:$0xff]
    %s1165 = scalar_lea.vmem [#allocation3], 192
    %v1166 = vld [vmem:[%s1165] sm:$0xff]
    %v1167 = vld [vmem:[%s1165 + $0x8] sm:$0xff]
    %v1168 = vld [vmem:[%s1165 + $0x10] sm:$0xff]
    %v1169 = vld [vmem:[%s1165 + $0x18] sm:$0xff]
    %v1170 = vsel %vm976, %v1161, %v1166
    %v1171 = vsel %vm977, %v1162, %v1167
    %v1172 = vsel %vm978, %v1163, %v1168
    %v1173 = vsel %vm979, %v1164, %v1169
    %1174 = vmatprep.subr.mxu0 %v860
    %1175 = vmatpush1.msra.mxu0 %v859
    %1176 = vmatprep.subr.mxu0 %v864
    %1177 = vmatpush1.msra.mxu0 %v863
    %1178 = vmatprep.subr.mxu0 %v868
    %1179 = vmatpush1.msra.mxu0 %v867
    %1180 = vmatprep.subr.mxu0 %v872
    %1181 = vmatpush1.msra.mxu0 %v871
    %1182 = vmatprep.subr.mxu0 %v876
    %1183 = vmatpush1.msra.mxu0 %v875
    %1184 = vmatprep.subr.mxu0 %v880
    %1185 = vmatpush1.msra.mxu0 %v879
    %1186 = vmatprep.subr.mxu0 %v884
    %1187 = vmatpush1.msra.mxu0 %v883
    %1188 = vmatprep.subr.mxu0 %v888
    %1189 = vmatpush1.msra.mxu0 %v887
    %1190 = vmatprep.subr.mxu0 %v892
    %1191 = vmatpush1.msra.mxu0 %v891
    %1192 = vmatprep.subr.mxu0 %v896
    %1193 = vmatpush1.msra.mxu0 %v895
    %1194 = vmatprep.subr.mxu0 %v900
    %1195 = vmatpush1.msra.mxu0 %v899
    %1196 = vmatprep.subr.mxu0 %v904
    %1197 = vmatpush1.msra.mxu0 %v903
    %1198 = vmatprep.subr.mxu0 %v908
    %1199 = vmatpush1.msra.mxu0 %v907
    %1200 = vmatprep.subr.mxu0 %v912
    %1201 = vmatpush1.msra.mxu0 %v911
    %1202 = vmatprep.subr.mxu0 %v916
    %1203 = vmatpush1.msra.mxu0 %v915
    %1204 = vmatprep.subr.mxu0 %v920
    %1205 = vmatpush1.msra.mxu0 %v919
    %1206 = vmatprep.subr.mxu0 0.0
    %1207 = vmatpush1.msra.mxu0 0.0
    %1208 = vmatprep.subr.mxu0 0.0
    %1209 = vmatpush1.msra.mxu0 0.0
    %1210 = vmatprep.subr.mxu0 0.0
    %1211 = vmatpush1.msra.mxu0 0.0
    %1212 = vmatprep.subr.mxu0 0.0
    %1213 = vmatpush1.msra.mxu0 0.0
    %1214 = vmatprep.subr.mxu0 0.0
    %1215 = vmatpush1.msra.mxu0 0.0
    %1216 = vmatprep.subr.mxu0 0.0
    %1217 = vmatpush1.msra.mxu0 0.0
    %1218 = vmatprep.subr.mxu0 0.0
    %1219 = vmatpush1.msra.mxu0 0.0
    %1220 = vmatprep.subr.mxu0 0.0
    %1221 = vmatpush1.msra.mxu0 0.0
    %1222 = vmatprep.subr.mxu0 0.0
    %1223 = vmatpush1.msra.mxu0 0.0
    %1224 = vmatprep.subr.mxu0 0.0
    %1225 = vmatpush1.msra.mxu0 0.0
    %1226 = vmatprep.subr.mxu0 0.0
    %1227 = vmatpush1.msra.mxu0 0.0
    %1228 = vmatprep.subr.mxu0 0.0
    %1229 = vmatpush1.msra.mxu0 0.0
    %1230 = vmatprep.subr.mxu0 0.0
    %1231 = vmatpush1.msra.mxu0 0.0
    %1232 = vmatprep.subr.mxu0 0.0
    %1233 = vmatpush1.msra.mxu0 0.0
    %1234 = vmatprep.subr.mxu0 0.0
    %1235 = vmatpush1.msra.mxu0 0.0
    %1236 = vmatprep.subr.mxu0 0.0
    %1237 = vmatpush1.msra.mxu0 0.0
    %1238 = vmatprep.mubr.f32.mxu0 0.0
    %1239 = vmatmul.mubr.f32.gmra.mrb[0].mxu0 %v1158
    %v1240 = vpop.f32.mrb[0].mxu0
    %v1241 = vadd.f32 %v1170, %v1240
    %v1242 = vpop.f32.mrb[0].mxu0
    %v1243 = vadd.f32 %v1171, %v1242
    %1244 = vdwg.mxu0
    %1245 = vmatprep.subr.mxu0 %v862
    %1246 = vmatpush1.msra.mxu0 %v861
    %1247 = vmatprep.subr.mxu0 %v866
    %1248 = vmatpush1.msra.mxu0 %v865
    %1249 = vmatprep.subr.mxu0 %v870
    %1250 = vmatpush1.msra.mxu0 %v869
    %1251 = vmatprep.subr.mxu0 %v874
    %1252 = vmatpush1.msra.mxu0 %v873
    %1253 = vmatprep.subr.mxu0 %v878
    %1254 = vmatpush1.msra.mxu0 %v877
    %1255 = vmatprep.subr.mxu0 %v882
    %1256 = vmatpush1.msra.mxu0 %v881
    %1257 = vmatprep.subr.mxu0 %v886
    %1258 = vmatpush1.msra.mxu0 %v885
    %1259 = vmatprep.subr.mxu0 %v890
    %1260 = vmatpush1.msra.mxu0 %v889
    %1261 = vmatprep.subr.mxu0 %v894
    %1262 = vmatpush1.msra.mxu0 %v893
    %1263 = vmatprep.subr.mxu0 %v898
    %1264 = vmatpush1.msra.mxu0 %v897
    %1265 = vmatprep.subr.mxu0 %v902
    %1266 = vmatpush1.msra.mxu0 %v901
    %1267 = vmatprep.subr.mxu0 %v906
    %1268 = vmatpush1.msra.mxu0 %v905
    %1269 = vmatprep.subr.mxu0 %v910
    %1270 = vmatpush1.msra.mxu0 %v909
    %1271 = vmatprep.subr.mxu0 %v914
    %1272 = vmatpush1.msra.mxu0 %v913
    %1273 = vmatprep.subr.mxu0 %v918
    %1274 = vmatpush1.msra.mxu0 %v917
    %1275 = vmatprep.subr.mxu0 %v922
    %1276 = vmatpush1.msra.mxu0 %v921
    %1277 = vmatprep.subr.mxu0 0.0
    %1278 = vmatpush1.msra.mxu0 0.0
    %1279 = vmatprep.subr.mxu0 0.0
    %1280 = vmatpush1.msra.mxu0 0.0
    %1281 = vmatprep.subr.mxu0 0.0
    %1282 = vmatpush1.msra.mxu0 0.0
    %1283 = vmatprep.subr.mxu0 0.0
    %1284 = vmatpush1.msra.mxu0 0.0
    %1285 = vmatprep.subr.mxu0 0.0
    %1286 = vmatpush1.msra.mxu0 0.0
    %1287 = vmatprep.subr.mxu0 0.0
    %1288 = vmatpush1.msra.mxu0 0.0
    %1289 = vmatprep.subr.mxu0 0.0
    %1290 = vmatpush1.msra.mxu0 0.0
    %1291 = vmatprep.subr.mxu0 0.0
    %1292 = vmatpush1.msra.mxu0 0.0
    %1293 = vmatprep.subr.mxu0 0.0
    %1294 = vmatpush1.msra.mxu0 0.0
    %1295 = vmatprep.subr.mxu0 0.0
    %1296 = vmatpush1.msra.mxu0 0.0
    %1297 = vmatprep.subr.mxu0 0.0
    %1298 = vmatpush1.msra.mxu0 0.0
    %1299 = vmatprep.subr.mxu0 0.0
    %1300 = vmatpush1.msra.mxu0 0.0
    %1301 = vmatprep.subr.mxu0 0.0
    %1302 = vmatpush1.msra.mxu0 0.0
    %1303 = vmatprep.subr.mxu0 0.0
    %1304 = vmatpush1.msra.mxu0 0.0
    %1305 = vmatprep.subr.mxu0 0.0
    %1306 = vmatpush1.msra.mxu0 0.0
    %1307 = vmatprep.subr.mxu0 0.0
    %1308 = vmatpush1.msra.mxu0 0.0
    %1309 = vmatprep.mubr.f32.mxu0 0.0
    %1310 = vmatmul.mubr.f32.gmra.mrb[0].mxu0 %v1158
    %v1311 = vpop.f32.mrb[0].mxu0
    %v1312 = vadd.f32 %v1172, %v1311
    %v1313 = vpop.f32.mrb[0].mxu0
    %v1314 = vadd.f32 %v1173, %v1313
    %1315 = vdwg.mxu0
    %v1316 = vxor.u32 %v1241, 2147483648
    %v1317 = vmul.f32 %v1316, 1.442695
    %v1318 = vpow.pop %v1317
    %v1319 = vadd.f32 %v1318, 1.0
    %v1320 = vrcp.pop %v1319
    %v1321 = vmul.f32 1.0, %v1320
    %v1322 = vxor.u32 %v1243, 2147483648
    %v1323 = vmul.f32 %v1322, 1.442695
    %v1324 = vpow.pop %v1323
    %v1325 = vadd.f32 %v1324, 1.0
    %v1326 = vrcp.pop %v1325
    %v1327 = vmul.f32 1.0, %v1326
    %v1328 = vtanh.pop %v1312
    %v1329 = vxor.u32 %v1314, 2147483648
    %v1330 = vmul.f32 %v1329, 1.442695
    %v1331 = vpow.pop %v1330
    %v1332 = vadd.f32 %v1331, 1.0
    %v1333 = vrcp.pop %v1332
    %v1334 = vmul.f32 1.0, %v1333
    %v1335 = vmul.f32 %v1327, %v1156
    %v1336 = vmul.f32 %v1321, %v1328
    %v1337 = vadd.f32 %v1335, %v1336
    %v1338 = vtanh.pop %v1337
    %v1339 = vmul.f32 %v1334, %v1338
    %v1340 = vadd.f32 %v1159, %v1339
    %v1341 = vmax.f32 %v1158, %v1339
    %s1342 = scalar_lea.vmem [#allocation3], 64
    %v1343 = vld [vmem:[%s1342] sm:$0xff]
    %v1344 = vld [vmem:[%s1342 + $0x8] sm:$0xff]
    %v1345 = vld [vmem:[%s1342 + $0x10] sm:$0xff]
    %v1346 = vld [vmem:[%s1342 + $0x18] sm:$0xff]
    %s1347 = scalar_lea.vmem [#allocation3], 160
    %v1348 = vld [vmem:[%s1347] sm:$0xff]
    %v1349 = vld [vmem:[%s1347 + $0x8] sm:$0xff]
    %v1350 = vld [vmem:[%s1347 + $0x10] sm:$0xff]
    %v1351 = vld [vmem:[%s1347 + $0x18] sm:$0xff]
    %v1352 = vsel %vm976, %v1343, %v1348
    %v1353 = vsel %vm977, %v1344, %v1349
    %v1354 = vsel %vm978, %v1345, %v1350
    %v1355 = vsel %vm979, %v1346, %v1351
    %1356 = vmatprep.subr.mxu0 %v860
    %1357 = vmatpush1.msra.mxu0 %v859
    %1358 = vmatprep.subr.mxu0 %v864
    %1359 = vmatpush1.msra.mxu0 %v863
    %1360 = vmatprep.subr.mxu0 %v868
    %1361 = vmatpush1.msra.mxu0 %v867
    %1362 = vmatprep.subr.mxu0 %v872
    %1363 = vmatpush1.msra.mxu0 %v871
    %1364 = vmatprep.subr.mxu0 %v876
    %1365 = vmatpush1.msra.mxu0 %v875
    %1366 = vmatprep.subr.mxu0 %v880
    %1367 = vmatpush1.msra.mxu0 %v879
    %1368 = vmatprep.subr.mxu0 %v884
    %1369 = vmatpush1.msra.mxu0 %v883
    %1370 = vmatprep.subr.mxu0 %v888
    %1371 = vmatpush1.msra.mxu0 %v887
    %1372 = vmatprep.subr.mxu0 %v892
    %1373 = vmatpush1.msra.mxu0 %v891
    %1374 = vmatprep.subr.mxu0 %v896
    %1375 = vmatpush1.msra.mxu0 %v895
    %1376 = vmatprep.subr.mxu0 %v900
    %1377 = vmatpush1.msra.mxu0 %v899
    %1378 = vmatprep.subr.mxu0 %v904
    %1379 = vmatpush1.msra.mxu0 %v903
    %1380 = vmatprep.subr.mxu0 %v908
    %1381 = vmatpush1.msra.mxu0 %v907
    %1382 = vmatprep.subr.mxu0 %v912
    %1383 = vmatpush1.msra.mxu0 %v911
    %1384 = vmatprep.subr.mxu0 %v916
    %1385 = vmatpush1.msra.mxu0 %v915
    %1386 = vmatprep.subr.mxu0 %v920
    %1387 = vmatpush1.msra.mxu0 %v919
    %1388 = vmatprep.subr.mxu0 0.0
    %1389 = vmatpush1.msra.mxu0 0.0
    %1390 = vmatprep.subr.mxu0 0.0
    %1391 = vmatpush1.msra.mxu0 0.0
    %1392 = vmatprep.subr.mxu0 0.0
    %1393 = vmatpush1.msra.mxu0 0.0
    %1394 = vmatprep.subr.mxu0 0.0
    %1395 = vmatpush1.msra.mxu0 0.0
    %1396 = vmatprep.subr.mxu0 0.0
    %1397 = vmatpush1.msra.mxu0 0.0
    %1398 = vmatprep.subr.mxu0 0.0
    %1399 = vmatpush1.msra.mxu0 0.0
    %1400 = vmatprep.subr.mxu0 0.0
    %1401 = vmatpush1.msra.mxu0 0.0
    %1402 = vmatprep.subr.mxu0 0.0
    %1403 = vmatpush1.msra.mxu0 0.0
    %1404 = vmatprep.subr.mxu0 0.0
    %1405 = vmatpush1.msra.mxu0 0.0
    %1406 = vmatprep.subr.mxu0 0.0
    %1407 = vmatpush1.msra.mxu0 0.0
    %1408 = vmatprep.subr.mxu0 0.0
    %1409 = vmatpush1.msra.mxu0 0.0
    %1410 = vmatprep.subr.mxu0 0.0
    %1411 = vmatpush1.msra.mxu0 0.0
    %1412 = vmatprep.subr.mxu0 0.0
    %1413 = vmatpush1.msra.mxu0 0.0
    %1414 = vmatprep.subr.mxu0 0.0
    %1415 = vmatpush1.msra.mxu0 0.0
    %1416 = vmatprep.subr.mxu0 0.0
    %1417 = vmatpush1.msra.mxu0 0.0
    %1418 = vmatprep.subr.mxu0 0.0
    %1419 = vmatpush1.msra.mxu0 0.0
    %1420 = vmatprep.mubr.f32.mxu0 0.0
    %1421 = vmatmul.mubr.f32.gmra.mrb[0].mxu0 %v1339
    %v1422 = vpop.f32.mrb[0].mxu0
    %v1423 = vadd.f32 %v1352, %v1422
    %v1424 = vpop.f32.mrb[0].mxu0
    %v1425 = vadd.f32 %v1353, %v1424
    %1426 = vdwg.mxu0
    %1427 = vmatprep.subr.mxu0 %v862
    %1428 = vmatpush1.msra.mxu0 %v861
    %1429 = vmatprep.subr.mxu0 %v866
    %1430 = vmatpush1.msra.mxu0 %v865
    %1431 = vmatprep.subr.mxu0 %v870
    %1432 = vmatpush1.msra.mxu0 %v869
    %1433 = vmatprep.subr.mxu0 %v874
    %1434 = vmatpush1.msra.mxu0 %v873
    %1435 = vmatprep.subr.mxu0 %v878
    %1436 = vmatpush1.msra.mxu0 %v877
    %1437 = vmatprep.subr.mxu0 %v882
    %1438 = vmatpush1.msra.mxu0 %v881
    %1439 = vmatprep.subr.mxu0 %v886
    %1440 = vmatpush1.msra.mxu0 %v885
    %1441 = vmatprep.subr.mxu0 %v890
    %1442 = vmatpush1.msra.mxu0 %v889
    %1443 = vmatprep.subr.mxu0 %v894
    %1444 = vmatpush1.msra.mxu0 %v893
    %1445 = vmatprep.subr.mxu0 %v898
    %1446 = vmatpush1.msra.mxu0 %v897
    %1447 = vmatprep.subr.mxu0 %v902
    %1448 = vmatpush1.msra.mxu0 %v901
    %1449 = vmatprep.subr.mxu0 %v906
    %1450 = vmatpush1.msra.mxu0 %v905
    %1451 = vmatprep.subr.mxu0 %v910
    %1452 = vmatpush1.msra.mxu0 %v909
    %1453 = vmatprep.subr.mxu0 %v914
    %1454 = vmatpush1.msra.mxu0 %v913
    %1455 = vmatprep.subr.mxu0 %v918
    %1456 = vmatpush1.msra.mxu0 %v917
    %1457 = vmatprep.subr.mxu0 %v922
    %1458 = vmatpush1.msra.mxu0 %v921
    %1459 = vmatprep.subr.mxu0 0.0
    %1460 = vmatpush1.msra.mxu0 0.0
    %1461 = vmatprep.subr.mxu0 0.0
    %1462 = vmatpush1.msra.mxu0 0.0
    %1463 = vmatprep.subr.mxu0 0.0
    %1464 = vmatpush1.msra.mxu0 0.0
    %1465 = vmatprep.subr.mxu0 0.0
    %1466 = vmatpush1.msra.mxu0 0.0
    %1467 = vmatprep.subr.mxu0 0.0
    %1468 = vmatpush1.msra.mxu0 0.0
    %1469 = vmatprep.subr.mxu0 0.0
    %1470 = vmatpush1.msra.mxu0 0.0
    %1471 = vmatprep.subr.mxu0 0.0
    %1472 = vmatpush1.msra.mxu0 0.0
    %1473 = vmatprep.subr.mxu0 0.0
    %1474 = vmatpush1.msra.mxu0 0.0
    %1475 = vmatprep.subr.mxu0 0.0
    %1476 = vmatpush1.msra.mxu0 0.0
    %1477 = vmatprep.subr.mxu0 0.0
    %1478 = vmatpush1.msra.mxu0 0.0
    %1479 = vmatprep.subr.mxu0 0.0
    %1480 = vmatpush1.msra.mxu0 0.0
    %1481 = vmatprep.subr.mxu0 0.0
    %1482 = vmatpush1.msra.mxu0 0.0
    %1483 = vmatprep.subr.mxu0 0.0
    %1484 = vmatpush1.msra.mxu0 0.0
    %1485 = vmatprep.subr.mxu0 0.0
    %1486 = vmatpush1.msra.mxu0 0.0
    %1487 = vmatprep.subr.mxu0 0.0
    %1488 = vmatpush1.msra.mxu0 0.0
    %1489 = vmatprep.subr.mxu0 0.0
    %1490 = vmatpush1.msra.mxu0 0.0
    %1491 = vmatprep.mubr.f32.mxu0 0.0
    %1492 = vmatmul.mubr.f32.gmra.mrb[0].mxu0 %v1339
    %v1493 = vpop.f32.mrb[0].mxu0
    %v1494 = vadd.f32 %v1354, %v1493
    %v1495 = vpop.f32.mrb[0].mxu0
    %v1496 = vadd.f32 %v1355, %v1495
    %1497 = vdwg.mxu0
    %v1498 = vxor.u32 %v1423, 2147483648
    %v1499 = vmul.f32 %v1498, 1.442695
    %v1500 = vpow.pop %v1499
    %v1501 = vadd.f32 %v1500, 1.0
    %v1502 = vrcp.pop %v1501
    %v1503 = vmul.f32 1.0, %v1502
    %v1504 = vxor.u32 %v1425, 2147483648
    %v1505 = vmul.f32 %v1504, 1.442695
    %v1506 = vpow.pop %v1505
    %v1507 = vadd.f32 %v1506, 1.0
    %v1508 = vrcp.pop %v1507
    %v1509 = vmul.f32 1.0, %v1508
    %v1510 = vtanh.pop %v1494
    %v1511 = vxor.u32 %v1496, 2147483648
    %v1512 = vmul.f32 %v1511, 1.442695
    %v1513 = vpow.pop %v1512
    %v1514 = vadd.f32 %v1513, 1.0
    %v1515 = vrcp.pop %v1514
    %v1516 = vmul.f32 1.0, %v1515
    %v1517 = vmul.f32 %v1509, %v1337
    %v1518 = vmul.f32 %v1503, %v1510
    %v1519 = vadd.f32 %v1517, %v1518
    %v1520 = vtanh.pop %v1519
    %v1521 = vmul.f32 %v1516, %v1520
    %v1522 = vadd.f32 %v1340, %v1521
    %v1523 = vmax.f32 %v1341, %v1521
    %s1524 = scalar_lea.vmem [#allocation3], 96
    %v1525 = vld [vmem:[%s1524] sm:$0xff]
    %v1526 = vld [vmem:[%s1524 + $0x8] sm:$0xff]
    %v1527 = vld [vmem:[%s1524 + $0x10] sm:$0xff]
    %v1528 = vld [vmem:[%s1524 + $0x18] sm:$0xff]
    %s1529 = scalar_lea.vmem [#allocation3], 128
    %v1530 = vld [vmem:[%s1529] sm:$0xff]
    %v1531 = vld [vmem:[%s1529 + $0x8] sm:$0xff]
    %v1532 = vld [vmem:[%s1529 + $0x10] sm:$0xff]
    %v1533 = vld [vmem:[%s1529 + $0x18] sm:$0xff]
    %v1534 = vsel %vm976, %v1525, %v1530
    %v1535 = vsel %vm977, %v1526, %v1531
    %v1536 = vsel %vm978, %v1527, %v1532
    %v1537 = vsel %vm979, %v1528, %v1533
    %1538 = vmatprep.subr.mxu0 %v860
    %1539 = vmatpush1.msra.mxu0 %v859
    %1540 = vmatprep.subr.mxu0 %v864
    %1541 = vmatpush1.msra.mxu0 %v863
    %1542 = vmatprep.subr.mxu0 %v868
    %1543 = vmatpush1.msra.mxu0 %v867
    %1544 = vmatprep.subr.mxu0 %v872
    %1545 = vmatpush1.msra.mxu0 %v871
    %1546 = vmatprep.subr.mxu0 %v876
    %1547 = vmatpush1.msra.mxu0 %v875
    %1548 = vmatprep.subr.mxu0 %v880
    %1549 = vmatpush1.msra.mxu0 %v879
    %1550 = vmatprep.subr.mxu0 %v884
    %1551 = vmatpush1.msra.mxu0 %v883
    %1552 = vmatprep.subr.mxu0 %v888
    %1553 = vmatpush1.msra.mxu0 %v887
    %1554 = vmatprep.subr.mxu0 %v892
    %1555 = vmatpush1.msra.mxu0 %v891
    %1556 = vmatprep.subr.mxu0 %v896
    %1557 = vmatpush1.msra.mxu0 %v895
    %1558 = vmatprep.subr.mxu0 %v900
    %1559 = vmatpush1.msra.mxu0 %v899
    %1560 = vmatprep.subr.mxu0 %v904
    %1561 = vmatpush1.msra.mxu0 %v903
    %1562 = vmatprep.subr.mxu0 %v908
    %1563 = vmatpush1.msra.mxu0 %v907
    %1564 = vmatprep.subr.mxu0 %v912
    %1565 = vmatpush1.msra.mxu0 %v911
    %1566 = vmatprep.subr.mxu0 %v916
    %1567 = vmatpush1.msra.mxu0 %v915
    %1568 = vmatprep.subr.mxu0 %v920
    %1569 = vmatpush1.msra.mxu0 %v919
    %1570 = vmatprep.subr.mxu0 0.0
    %1571 = vmatpush1.msra.mxu0 0.0
    %1572 = vmatprep.subr.mxu0 0.0
    %1573 = vmatpush1.msra.mxu0 0.0
    %1574 = vmatprep.subr.mxu0 0.0
    %1575 = vmatpush1.msra.mxu0 0.0
    %1576 = vmatprep.subr.mxu0 0.0
    %1577 = vmatpush1.msra.mxu0 0.0
    %1578 = vmatprep.subr.mxu0 0.0
    %1579 = vmatpush1.msra.mxu0 0.0
    %1580 = vmatprep.subr.mxu0 0.0
    %1581 = vmatpush1.msra.mxu0 0.0
    %1582 = vmatprep.subr.mxu0 0.0
    %1583 = vmatpush1.msra.mxu0 0.0
    %1584 = vmatprep.subr.mxu0 0.0
    %1585 = vmatpush1.msra.mxu0 0.0
    %1586 = vmatprep.subr.mxu0 0.0
    %1587 = vmatpush1.msra.mxu0 0.0
    %1588 = vmatprep.subr.mxu0 0.0
    %1589 = vmatpush1.msra.mxu0 0.0
    %1590 = vmatprep.subr.mxu0 0.0
    %1591 = vmatpush1.msra.mxu0 0.0
    %1592 = vmatprep.subr.mxu0 0.0
    %1593 = vmatpush1.msra.mxu0 0.0
    %1594 = vmatprep.subr.mxu0 0.0
    %1595 = vmatpush1.msra.mxu0 0.0
    %1596 = vmatprep.subr.mxu0 0.0
    %1597 = vmatpush1.msra.mxu0 0.0
    %1598 = vmatprep.subr.mxu0 0.0
    %1599 = vmatpush1.msra.mxu0 0.0
    %1600 = vmatprep.subr.mxu0 0.0
    %1601 = vmatpush1.msra.mxu0 0.0
    %1602 = vmatprep.mubr.f32.mxu0 0.0
    %1603 = vmatmul.mubr.f32.gmra.mrb[0].mxu0 %v1521
    %v1604 = vpop.f32.mrb[0].mxu0
    %v1605 = vadd.f32 %v1534, %v1604
    %v1606 = vpop.f32.mrb[0].mxu0
    %v1607 = vadd.f32 %v1535, %v1606
    %1608 = vdwg.mxu0
    %1609 = vmatprep.subr.mxu0 %v862
    %1610 = vmatpush1.msra.mxu0 %v861
    %1611 = vmatprep.subr.mxu0 %v866
    %1612 = vmatpush1.msra.mxu0 %v865
    %1613 = vmatprep.subr.mxu0 %v870
    %1614 = vmatpush1.msra.mxu0 %v869
    %1615 = vmatprep.subr.mxu0 %v874
    %1616 = vmatpush1.msra.mxu0 %v873
    %1617 = vmatprep.subr.mxu0 %v878
    %1618 = vmatpush1.msra.mxu0 %v877
    %1619 = vmatprep.subr.mxu0 %v882
    %1620 = vmatpush1.msra.mxu0 %v881
    %1621 = vmatprep.subr.mxu0 %v886
    %1622 = vmatpush1.msra.mxu0 %v885
    %1623 = vmatprep.subr.mxu0 %v890
    %1624 = vmatpush1.msra.mxu0 %v889
    %1625 = vmatprep.subr.mxu0 %v894
    %1626 = vmatpush1.msra.mxu0 %v893
    %1627 = vmatprep.subr.mxu0 %v898
    %1628 = vmatpush1.msra.mxu0 %v897
    %1629 = vmatprep.subr.mxu0 %v902
    %1630 = vmatpush1.msra.mxu0 %v901
    %1631 = vmatprep.subr.mxu0 %v906
    %1632 = vmatpush1.msra.mxu0 %v905
    %1633 = vmatprep.subr.mxu0 %v910
    %1634 = vmatpush1.msra.mxu0 %v909
    %1635 = vmatprep.subr.mxu0 %v914
    %1636 = vmatpush1.msra.mxu0 %v913
    %1637 = vmatprep.subr.mxu0 %v918
    %1638 = vmatpush1.msra.mxu0 %v917
    %1639 = vmatprep.subr.mxu0 %v922
    %1640 = vmatpush1.msra.mxu0 %v921
    %1641 = vmatprep.subr.mxu0 0.0
    %1642 = vmatpush1.msra.mxu0 0.0
    %1643 = vmatprep.subr.mxu0 0.0
    %1644 = vmatpush1.msra.mxu0 0.0
    %1645 = vmatprep.subr.mxu0 0.0
    %1646 = vmatpush1.msra.mxu0 0.0
    %1647 = vmatprep.subr.mxu0 0.0
    %1648 = vmatpush1.msra.mxu0 0.0
    %1649 = vmatprep.subr.mxu0 0.0
    %1650 = vmatpush1.msra.mxu0 0.0
    %1651 = vmatprep.subr.mxu0 0.0
    %1652 = vmatpush1.msra.mxu0 0.0
    %1653 = vmatprep.subr.mxu0 0.0
    %1654 = vmatpush1.msra.mxu0 0.0
    %1655 = vmatprep.subr.mxu0 0.0
    %1656 = vmatpush1.msra.mxu0 0.0
    %1657 = vmatprep.subr.mxu0 0.0
    %1658 = vmatpush1.msra.mxu0 0.0
    %1659 = vmatprep.subr.mxu0 0.0
    %1660 = vmatpush1.msra.mxu0 0.0
    %1661 = vmatprep.subr.mxu0 0.0
    %1662 = vmatpush1.msra.mxu0 0.0
    %1663 = vmatprep.subr.mxu0 0.0
    %1664 = vmatpush1.msra.mxu0 0.0
    %1665 = vmatprep.subr.mxu0 0.0
    %1666 = vmatpush1.msra.mxu0 0.0
    %1667 = vmatprep.subr.mxu0 0.0
    %1668 = vmatpush1.msra.mxu0 0.0
    %1669 = vmatprep.subr.mxu0 0.0
    %1670 = vmatpush1.msra.mxu0 0.0
    %1671 = vmatprep.subr.mxu0 0.0
    %1672 = vmatpush1.msra.mxu0 0.0
    %1673 = vmatprep.mubr.f32.mxu0 0.0
    %1674 = vmatmul.mubr.f32.gmra.mrb[0].mxu0 %v1521
    %v1675 = vpop.f32.mrb[0].mxu0
    %v1676 = vadd.f32 %v1536, %v1675
    %v1677 = vpop.f32.mrb[0].mxu0
    %v1678 = vadd.f32 %v1537, %v1677
    %1679 = vdwg.mxu0
    %v1680 = vxor.u32 %v1605, 2147483648
    %v1681 = vmul.f32 %v1680, 1.442695
    %v1682 = vpow.pop %v1681
    %v1683 = vadd.f32 %v1682, 1.0
    %v1684 = vrcp.pop %v1683
    %v1685 = vmul.f32 1.0, %v1684
    %v1686 = vxor.u32 %v1607, 2147483648
    %v1687 = vmul.f32 %v1686, 1.442695
    %v1688 = vpow.pop %v1687
    %v1689 = vadd.f32 %v1688, 1.0
    %v1690 = vrcp.pop %v1689
    %v1691 = vmul.f32 1.0, %v1690
    %v1692 = vtanh.pop %v1676
    %v1693 = vxor.u32 %v1678, 2147483648
    %v1694 = vmul.f32 %v1693, 1.442695
    %v1695 = vpow.pop %v1694
    %v1696 = vadd.f32 %v1695, 1.0
    %v1697 = vrcp.pop %v1696
    %v1698 = vmul.f32 1.0, %v1697
    %v1699 = vmul.f32 %v1691, %v1519
    %v1700 = vmul.f32 %v1685, %v1692
    %v1701 = vadd.f32 %v1699, %v1700
    %v1702 = vtanh.pop %v1701
    %v1703 = vmul.f32 %v1698, %v1702
    %v1704 = vadd.f32 %v1522, %v1703
    %v1705 = vmax.f32 %v1523, %v1703
    %v1706 = vsel %vm976, %v1530, %v1525
    %v1707 = vsel %vm977, %v1531, %v1526
    %v1708 = vsel %vm978, %v1532, %v1527
    %v1709 = vsel %vm979, %v1533, %v1528
    %1710 = vmatprep.subr.mxu0 %v860
    %1711 = vmatpush1.msra.mxu0 %v859
    %1712 = vmatprep.subr.mxu0 %v864
    %1713 = vmatpush1.msra.mxu0 %v863
    %1714 = vmatprep.subr.mxu0 %v868
    %1715 = vmatpush1.msra.mxu0 %v867
    %1716 = vmatprep.subr.mxu0 %v872
    %1717 = vmatpush1.msra.mxu0 %v871
    %1718 = vmatprep.subr.mxu0 %v876
    %1719 = vmatpush1.msra.mxu0 %v875
    %1720 = vmatprep.subr.mxu0 %v880
    %1721 = vmatpush1.msra.mxu0 %v879
    %1722 = vmatprep.subr.mxu0 %v884
    %1723 = vmatpush1.msra.mxu0 %v883
    %1724 = vmatprep.subr.mxu0 %v888
    %1725 = vmatpush1.msra.mxu0 %v887
    %1726 = vmatprep.subr.mxu0 %v892
    %1727 = vmatpush1.msra.mxu0 %v891
    %1728 = vmatprep.subr.mxu0 %v896
    %1729 = vmatpush1.msra.mxu0 %v895
    %1730 = vmatprep.subr.mxu0 %v900
    %1731 = vmatpush1.msra.mxu0 %v899
    %1732 = vmatprep.subr.mxu0 %v904
    %1733 = vmatpush1.msra.mxu0 %v903
    %1734 = vmatprep.subr.mxu0 %v908
    %1735 = vmatpush1.msra.mxu0 %v907
    %1736 = vmatprep.subr.mxu0 %v912
    %1737 = vmatpush1.msra.mxu0 %v911
    %1738 = vmatprep.subr.mxu0 %v916
    %1739 = vmatpush1.msra.mxu0 %v915
    %1740 = vmatprep.subr.mxu0 %v920
    %1741 = vmatpush1.msra.mxu0 %v919
    %1742 = vmatprep.subr.mxu0 0.0
    %1743 = vmatpush1.msra.mxu0 0.0
    %1744 = vmatprep.subr.mxu0 0.0
    %1745 = vmatpush1.msra.mxu0 0.0
    %1746 = vmatprep.subr.mxu0 0.0
    %1747 = vmatpush1.msra.mxu0 0.0
    %1748 = vmatprep.subr.mxu0 0.0
    %1749 = vmatpush1.msra.mxu0 0.0
    %1750 = vmatprep.subr.mxu0 0.0
    %1751 = vmatpush1.msra.mxu0 0.0
    %1752 = vmatprep.subr.mxu0 0.0
    %1753 = vmatpush1.msra.mxu0 0.0
    %1754 = vmatprep.subr.mxu0 0.0
    %1755 = vmatpush1.msra.mxu0 0.0
    %1756 = vmatprep.subr.mxu0 0.0
    %1757 = vmatpush1.msra.mxu0 0.0
    %1758 = vmatprep.subr.mxu0 0.0
    %1759 = vmatpush1.msra.mxu0 0.0
    %1760 = vmatprep.subr.mxu0 0.0
    %1761 = vmatpush1.msra.mxu0 0.0
    %1762 = vmatprep.subr.mxu0 0.0
    %1763 = vmatpush1.msra.mxu0 0.0
    %1764 = vmatprep.subr.mxu0 0.0
    %1765 = vmatpush1.msra.mxu0 0.0
    %1766 = vmatprep.subr.mxu0 0.0
    %1767 = vmatpush1.msra.mxu0 0.0
    %1768 = vmatprep.subr.mxu0 0.0
    %1769 = vmatpush1.msra.mxu0 0.0
    %1770 = vmatprep.subr.mxu0 0.0
    %1771 = vmatpush1.msra.mxu0 0.0
    %1772 = vmatprep.subr.mxu0 0.0
    %1773 = vmatpush1.msra.mxu0 0.0
    %1774 = vmatprep.mubr.f32.mxu0 0.0
    %1775 = vmatmul.mubr.f32.gmra.mrb[0].mxu0 %v1703
    %v1776 = vpop.f32.mrb[0].mxu0
    %v1777 = vadd.f32 %v1706, %v1776
    %v1778 = vpop.f32.mrb[0].mxu0
    %v1779 = vadd.f32 %v1707, %v1778
    %1780 = vdwg.mxu0
    %1781 = vmatprep.subr.mxu0 %v862
    %1782 = vmatpush1.msra.mxu0 %v861
    %1783 = vmatprep.subr.mxu0 %v866
    %1784 = vmatpush1.msra.mxu0 %v865
    %1785 = vmatprep.subr.mxu0 %v870
    %1786 = vmatpush1.msra.mxu0 %v869
    %1787 = vmatprep.subr.mxu0 %v874
    %1788 = vmatpush1.msra.mxu0 %v873
    %1789 = vmatprep.subr.mxu0 %v878
    %1790 = vmatpush1.msra.mxu0 %v877
    %1791 = vmatprep.subr.mxu0 %v882
    %1792 = vmatpush1.msra.mxu0 %v881
    %1793 = vmatprep.subr.mxu0 %v886
    %1794 = vmatpush1.msra.mxu0 %v885
    %1795 = vmatprep.subr.mxu0 %v890
    %1796 = vmatpush1.msra.mxu0 %v889
    %1797 = vmatprep.subr.mxu0 %v894
    %1798 = vmatpush1.msra.mxu0 %v893
    %1799 = vmatprep.subr.mxu0 %v898
    %1800 = vmatpush1.msra.mxu0 %v897
    %1801 = vmatprep.subr.mxu0 %v902
    %1802 = vmatpush1.msra.mxu0 %v901
    %1803 = vmatprep.subr.mxu0 %v906
    %1804 = vmatpush1.msra.mxu0 %v905
    %1805 = vmatprep.subr.mxu0 %v910
    %1806 = vmatpush1.msra.mxu0 %v909
    %1807 = vmatprep.subr.mxu0 %v914
    %1808 = vmatpush1.msra.mxu0 %v913
    %1809 = vmatprep.subr.mxu0 %v918
    %1810 = vmatpush1.msra.mxu0 %v917
    %1811 = vmatprep.subr.mxu0 %v922
    %1812 = vmatpush1.msra.mxu0 %v921
    %1813 = vmatprep.subr.mxu0 0.0
    %1814 = vmatpush1.msra.mxu0 0.0
    %1815 = vmatprep.subr.mxu0 0.0
    %1816 = vmatpush1.msra.mxu0 0.0
    %1817 = vmatprep.subr.mxu0 0.0
    %1818 = vmatpush1.msra.mxu0 0.0
    %1819 = vmatprep.subr.mxu0 0.0
    %1820 = vmatpush1.msra.mxu0 0.0
    %1821 = vmatprep.subr.mxu0 0.0
    %1822 = vmatpush1.msra.mxu0 0.0
    %1823 = vmatprep.subr.mxu0 0.0
    %1824 = vmatpush1.msra.mxu0 0.0
    %1825 = vmatprep.subr.mxu0 0.0
    %1826 = vmatpush1.msra.mxu0 0.0
    %1827 = vmatprep.subr.mxu0 0.0
    %1828 = vmatpush1.msra.mxu0 0.0
    %1829 = vmatprep.subr.mxu0 0.0
    %1830 = vmatpush1.msra.mxu0 0.0
    %1831 = vmatprep.subr.mxu0 0.0
    %1832 = vmatpush1.msra.mxu0 0.0
    %1833 = vmatprep.subr.mxu0 0.0
    %1834 = vmatpush1.msra.mxu0 0.0
    %1835 = vmatprep.subr.mxu0 0.0
    %1836 = vmatpush1.msra.mxu0 0.0
    %1837 = vmatprep.subr.mxu0 0.0
    %1838 = vmatpush1.msra.mxu0 0.0
    %1839 = vmatprep.subr.mxu0 0.0
    %1840 = vmatpush1.msra.mxu0 0.0
    %1841 = vmatprep.subr.mxu0 0.0
    %1842 = vmatpush1.msra.mxu0 0.0
    %1843 = vmatprep.subr.mxu0 0.0
    %1844 = vmatpush1.msra.mxu0 0.0
    %1845 = vmatprep.mubr.f32.mxu0 0.0
    %1846 = vmatmul.mubr.f32.gmra.mrb[0].mxu0 %v1703
    %v1847 = vpop.f32.mrb[0].mxu0
    %v1848 = vadd.f32 %v1708, %v1847
    %v1849 = vpop.f32.mrb[0].mxu0
    %v1850 = vadd.f32 %v1709, %v1849
    %1851 = vdwg.mxu0
    %v1852 = vxor.u32 %v1777, 2147483648
    %v1853 = vmul.f32 %v1852, 1.442695
    %v1854 = vpow.pop %v1853
    %v1855 = vadd.f32 %v1854, 1.0
    %v1856 = vrcp.pop %v1855
    %v1857 = vmul.f32 1.0, %v1856
    %v1858 = vxor.u32 %v1779, 2147483648
    %v1859 = vmul.f32 %v1858, 1.442695
    %v1860 = vpow.pop %v1859
    %v1861 = vadd.f32 %v1860, 1.0
    %v1862 = vrcp.pop %v1861
    %v1863 = vmul.f32 1.0, %v1862
    %v1864 = vtanh.pop %v1848
    %v1865 = vxor.u32 %v1850, 2147483648
    %v1866 = vmul.f32 %v1865, 1.442695
    %v1867 = vpow.pop %v1866
    %v1868 = vadd.f32 %v1867, 1.0
    %v1869 = vrcp.pop %v1868
    %v1870 = vmul.f32 1.0, %v1869
    %v1871 = vmul.f32 %v1863, %v1701
    %v1872 = vmul.f32 %v1857, %v1864
    %v1873 = vadd.f32 %v1871, %v1872
    %v1874 = vtanh.pop %v1873
    %v1875 = vmul.f32 %v1870, %v1874
    %v1876 = vadd.f32 %v1704, %v1875
    %v1877 = vmax.f32 %v1705, %v1875
    %v1878 = vsel %vm976, %v1348, %v1343
    %v1879 = vsel %vm977, %v1349, %v1344
    %v1880 = vsel %vm978, %v1350, %v1345
    %v1881 = vsel %vm979, %v1351, %v1346
    %1882 = vmatprep.subr.mxu0 %v860
    %1883 = vmatpush1.msra.mxu0 %v859
    %1884 = vmatprep.subr.mxu0 %v864
    %1885 = vmatpush1.msra.mxu0 %v863
    %1886 = vmatprep.subr.mxu0 %v868
    %1887 = vmatpush1.msra.mxu0 %v867
    %1888 = vmatprep.subr.mxu0 %v872
    %1889 = vmatpush1.msra.mxu0 %v871
    %1890 = vmatprep.subr.mxu0 %v876
    %1891 = vmatpush1.msra.mxu0 %v875
    %1892 = vmatprep.subr.mxu0 %v880
    %1893 = vmatpush1.msra.mxu0 %v879
    %1894 = vmatprep.subr.mxu0 %v884
    %1895 = vmatpush1.msra.mxu0 %v883
    %1896 = vmatprep.subr.mxu0 %v888
    %1897 = vmatpush1.msra.mxu0 %v887
    %1898 = vmatprep.subr.mxu0 %v892
    %1899 = vmatpush1.msra.mxu0 %v891
    %1900 = vmatprep.subr.mxu0 %v896
    %1901 = vmatpush1.msra.mxu0 %v895
    %1902 = vmatprep.subr.mxu0 %v900
    %1903 = vmatpush1.msra.mxu0 %v899
    %1904 = vmatprep.subr.mxu0 %v904
    %1905 = vmatpush1.msra.mxu0 %v903
    %1906 = vmatprep.subr.mxu0 %v908
    %1907 = vmatpush1.msra.mxu0 %v907
    %1908 = vmatprep.subr.mxu0 %v912
    %1909 = vmatpush1.msra.mxu0 %v911
    %1910 = vmatprep.subr.mxu0 %v916
    %1911 = vmatpush1.msra.mxu0 %v915
    %1912 = vmatprep.subr.mxu0 %v920
    %1913 = vmatpush1.msra.mxu0 %v919
    %1914 = vmatprep.subr.mxu0 0.0
    %1915 = vmatpush1.msra.mxu0 0.0
    %1916 = vmatprep.subr.mxu0 0.0
    %1917 = vmatpush1.msra.mxu0 0.0
    %1918 = vmatprep.subr.mxu0 0.0
    %1919 = vmatpush1.msra.mxu0 0.0
    %1920 = vmatprep.subr.mxu0 0.0
    %1921 = vmatpush1.msra.mxu0 0.0
    %1922 = vmatprep.subr.mxu0 0.0
    %1923 = vmatpush1.msra.mxu0 0.0
    %1924 = vmatprep.subr.mxu0 0.0
    %1925 = vmatpush1.msra.mxu0 0.0
    %1926 = vmatprep.subr.mxu0 0.0
    %1927 = vmatpush1.msra.mxu0 0.0
    %1928 = vmatprep.subr.mxu0 0.0
    %1929 = vmatpush1.msra.mxu0 0.0
    %1930 = vmatprep.subr.mxu0 0.0
    %1931 = vmatpush1.msra.mxu0 0.0
    %1932 = vmatprep.subr.mxu0 0.0
    %1933 = vmatpush1.msra.mxu0 0.0
    %1934 = vmatprep.subr.mxu0 0.0
    %1935 = vmatpush1.msra.mxu0 0.0
    %1936 = vmatprep.subr.mxu0 0.0
    %1937 = vmatpush1.msra.mxu0 0.0
    %1938 = vmatprep.subr.mxu0 0.0
    %1939 = vmatpush1.msra.mxu0 0.0
    %1940 = vmatprep.subr.mxu0 0.0
    %1941 = vmatpush1.msra.mxu0 0.0
    %1942 = vmatprep.subr.mxu0 0.0
    %1943 = vmatpush1.msra.mxu0 0.0
    %1944 = vmatprep.subr.mxu0 0.0
    %1945 = vmatpush1.msra.mxu0 0.0
    %1946 = vmatprep.mubr.f32.mxu0 0.0
    %1947 = vmatmul.mubr.f32.gmra.mrb[0].mxu0 %v1875
    %v1948 = vpop.f32.mrb[0].mxu0
    %v1949 = vadd.f32 %v1878, %v1948
    %v1950 = vpop.f32.mrb[0].mxu0
    %v1951 = vadd.f32 %v1879, %v1950
    %1952 = vdwg.mxu0
    %1953 = vmatprep.subr.mxu0 %v862
    %1954 = vmatpush1.msra.mxu0 %v861
    %1955 = vmatprep.subr.mxu0 %v866
    %1956 = vmatpush1.msra.mxu0 %v865
    %1957 = vmatprep.subr.mxu0 %v870
    %1958 = vmatpush1.msra.mxu0 %v869
    %1959 = vmatprep.subr.mxu0 %v874
    %1960 = vmatpush1.msra.mxu0 %v873
    %1961 = vmatprep.subr.mxu0 %v878
    %1962 = vmatpush1.msra.mxu0 %v877
    %1963 = vmatprep.subr.mxu0 %v882
    %1964 = vmatpush1.msra.mxu0 %v881
    %1965 = vmatprep.subr.mxu0 %v886
    %1966 = vmatpush1.msra.mxu0 %v885
    %1967 = vmatprep.subr.mxu0 %v890
    %1968 = vmatpush1.msra.mxu0 %v889
    %1969 = vmatprep.subr.mxu0 %v894
    %1970 = vmatpush1.msra.mxu0 %v893
    %1971 = vmatprep.subr.mxu0 %v898
    %1972 = vmatpush1.msra.mxu0 %v897
    %1973 = vmatprep.subr.mxu0 %v902
    %1974 = vmatpush1.msra.mxu0 %v901
    %1975 = vmatprep.subr.mxu0 %v906
    %1976 = vmatpush1.msra.mxu0 %v905
    %1977 = vmatprep.subr.mxu0 %v910
    %1978 = vmatpush1.msra.mxu0 %v909
    %1979 = vmatprep.subr.mxu0 %v914
    %1980 = vmatpush1.msra.mxu0 %v913
    %1981 = vmatprep.subr.mxu0 %v918
    %1982 = vmatpush1.msra.mxu0 %v917
    %1983 = vmatprep.subr.mxu0 %v922
    %1984 = vmatpush1.msra.mxu0 %v921
    %1985 = vmatprep.subr.mxu0 0.0
    %1986 = vmatpush1.msra.mxu0 0.0
    %1987 = vmatprep.subr.mxu0 0.0
    %1988 = vmatpush1.msra.mxu0 0.0
    %1989 = vmatprep.subr.mxu0 0.0
    %1990 = vmatpush1.msra.mxu0 0.0
    %1991 = vmatprep.subr.mxu0 0.0
    %1992 = vmatpush1.msra.mxu0 0.0
    %1993 = vmatprep.subr.mxu0 0.0
    %1994 = vmatpush1.msra.mxu0 0.0
    %1995 = vmatprep.subr.mxu0 0.0
    %1996 = vmatpush1.msra.mxu0 0.0
    %1997 = vmatprep.subr.mxu0 0.0
    %1998 = vmatpush1.msra.mxu0 0.0
    %1999 = vmatprep.subr.mxu0 0.0
    %2000 = vmatpush1.msra.mxu0 0.0
    %2001 = vmatprep.subr.mxu0 0.0
    %2002 = vmatpush1.msra.mxu0 0.0
    %2003 = vmatprep.subr.mxu0 0.0
    %2004 = vmatpush1.msra.mxu0 0.0
    %2005 = vmatprep.subr.mxu0 0.0
    %2006 = vmatpush1.msra.mxu0 0.0
    %2007 = vmatprep.subr.mxu0 0.0
    %2008 = vmatpush1.msra.mxu0 0.0
    %2009 = vmatprep.subr.mxu0 0.0
    %2010 = vmatpush1.msra.mxu0 0.0
    %2011 = vmatprep.subr.mxu0 0.0
    %2012 = vmatpush1.msra.mxu0 0.0
    %2013 = vmatprep.subr.mxu0 0.0
    %2014 = vmatpush1.msra.mxu0 0.0
    %2015 = vmatprep.subr.mxu0 0.0
    %2016 = vmatpush1.msra.mxu0 0.0
    %2017 = vmatprep.mubr.f32.mxu0 0.0
    %2018 = vmatmul.mubr.f32.gmra.mrb[0].mxu0 %v1875
    %v2019 = vpop.f32.mrb[0].mxu0
    %v2020 = vadd.f32 %v1880, %v2019
    %v2021 = vpop.f32.mrb[0].mxu0
    %v2022 = vadd.f32 %v1881, %v2021
    %2023 = vdwg.mxu0
    %v2024 = vxor.u32 %v1949, 2147483648
    %v2025 = vmul.f32 %v2024, 1.442695
    %v2026 = vpow.pop %v2025
    %v2027 = vadd.f32 %v2026, 1.0
    %v2028 = vrcp.pop %v2027
    %v2029 = vmul.f32 1.0, %v2028
    %v2030 = vxor.u32 %v1951, 2147483648
    %v2031 = vmul.f32 %v2030, 1.442695
    %v2032 = vpow.pop %v2031
    %v2033 = vadd.f32 %v2032, 1.0
    %v2034 = vrcp.pop %v2033
    %v2035 = vmul.f32 1.0, %v2034
    %v2036 = vtanh.pop %v2020
    %v2037 = vxor.u32 %v2022, 2147483648
    %v2038 = vmul.f32 %v2037, 1.442695
    %v2039 = vpow.pop %v2038
    %v2040 = vadd.f32 %v2039, 1.0
    %v2041 = vrcp.pop %v2040
    %v2042 = vmul.f32 1.0, %v2041
    %v2043 = vmul.f32 %v2035, %v1873
    %v2044 = vmul.f32 %v2029, %v2036
    %v2045 = vadd.f32 %v2043, %v2044
    %v2046 = vtanh.pop %v2045
    %v2047 = vmul.f32 %v2042, %v2046
    %v2048 = vadd.f32 %v1876, %v2047
    %v2049 = vmax.f32 %v1877, %v2047
    %v2050 = vsel %vm976, %v1166, %v1161
    %v2051 = vsel %vm977, %v1167, %v1162
    %v2052 = vsel %vm978, %v1168, %v1163
    %v2053 = vsel %vm979, %v1169, %v1164
    %2054 = vmatprep.subr.mxu0 %v860
    %2055 = vmatpush1.msra.mxu0 %v859
    %2056 = vmatprep.subr.mxu0 %v864
    %2057 = vmatpush1.msra.mxu0 %v863
    %2058 = vmatprep.subr.mxu0 %v868
    %2059 = vmatpush1.msra.mxu0 %v867
    %2060 = vmatprep.subr.mxu0 %v872
    %2061 = vmatpush1.msra.mxu0 %v871
    %2062 = vmatprep.subr.mxu0 %v876
    %2063 = vmatpush1.msra.mxu0 %v875
    %2064 = vmatprep.subr.mxu0 %v880
    %2065 = vmatpush1.msra.mxu0 %v879
    %2066 = vmatprep.subr.mxu0 %v884
    %2067 = vmatpush1.msra.mxu0 %v883
    %2068 = vmatprep.subr.mxu0 %v888
    %2069 = vmatpush1.msra.mxu0 %v887
    %2070 = vmatprep.subr.mxu0 %v892
    %2071 = vmatpush1.msra.mxu0 %v891
    %2072 = vmatprep.subr.mxu0 %v896
    %2073 = vmatpush1.msra.mxu0 %v895
    %2074 = vmatprep.subr.mxu0 %v900
    %2075 = vmatpush1.msra.mxu0 %v899
    %2076 = vmatprep.subr.mxu0 %v904
    %2077 = vmatpush1.msra.mxu0 %v903
    %2078 = vmatprep.subr.mxu0 %v908
    %2079 = vmatpush1.msra.mxu0 %v907
    %2080 = vmatprep.subr.mxu0 %v912
    %2081 = vmatpush1.msra.mxu0 %v911
    %2082 = vmatprep.subr.mxu0 %v916
    %2083 = vmatpush1.msra.mxu0 %v915
    %2084 = vmatprep.subr.mxu0 %v920
    %2085 = vmatpush1.msra.mxu0 %v919
    %2086 = vmatprep.subr.mxu0 0.0
    %2087 = vmatpush1.msra.mxu0 0.0
    %2088 = vmatprep.subr.mxu0 0.0
    %2089 = vmatpush1.msra.mxu0 0.0
    %2090 = vmatprep.subr.mxu0 0.0
    %2091 = vmatpush1.msra.mxu0 0.0
    %2092 = vmatprep.subr.mxu0 0.0
    %2093 = vmatpush1.msra.mxu0 0.0
    %2094 = vmatprep.subr.mxu0 0.0
    %2095 = vmatpush1.msra.mxu0 0.0
    %2096 = vmatprep.subr.mxu0 0.0
    %2097 = vmatpush1.msra.mxu0 0.0
    %2098 = vmatprep.subr.mxu0 0.0
    %2099 = vmatpush1.msra.mxu0 0.0
    %2100 = vmatprep.subr.mxu0 0.0
    %2101 = vmatpush1.msra.mxu0 0.0
    %2102 = vmatprep.subr.mxu0 0.0
    %2103 = vmatpush1.msra.mxu0 0.0
    %2104 = vmatprep.subr.mxu0 0.0
    %2105 = vmatpush1.msra.mxu0 0.0
    %2106 = vmatprep.subr.mxu0 0.0
    %2107 = vmatpush1.msra.mxu0 0.0
    %2108 = vmatprep.subr.mxu0 0.0
    %2109 = vmatpush1.msra.mxu0 0.0
    %2110 = vmatprep.subr.mxu0 0.0
    %2111 = vmatpush1.msra.mxu0 0.0
    %2112 = vmatprep.subr.mxu0 0.0
    %2113 = vmatpush1.msra.mxu0 0.0
    %2114 = vmatprep.subr.mxu0 0.0
    %2115 = vmatpush1.msra.mxu0 0.0
    %2116 = vmatprep.subr.mxu0 0.0
    %2117 = vmatpush1.msra.mxu0 0.0
    %2118 = vmatprep.mubr.f32.mxu0 0.0
    %2119 = vmatmul.mubr.f32.gmra.mrb[0].mxu0 %v2047
    %v2120 = vpop.f32.mrb[0].mxu0
    %v2121 = vadd.f32 %v2050, %v2120
    %v2122 = vpop.f32.mrb[0].mxu0
    %v2123 = vadd.f32 %v2051, %v2122
    %2124 = vdwg.mxu0
    %2125 = vmatprep.subr.mxu0 %v862
    %2126 = vmatpush1.msra.mxu0 %v861
    %2127 = vmatprep.subr.mxu0 %v866
    %2128 = vmatpush1.msra.mxu0 %v865
    %2129 = vmatprep.subr.mxu0 %v870
    %2130 = vmatpush1.msra.mxu0 %v869
    %2131 = vmatprep.subr.mxu0 %v874
    %2132 = vmatpush1.msra.mxu0 %v873
    %2133 = vmatprep.subr.mxu0 %v878
    %2134 = vmatpush1.msra.mxu0 %v877
    %2135 = vmatprep.subr.mxu0 %v882
    %2136 = vmatpush1.msra.mxu0 %v881
    %2137 = vmatprep.subr.mxu0 %v886
    %2138 = vmatpush1.msra.mxu0 %v885
    %2139 = vmatprep.subr.mxu0 %v890
    %2140 = vmatpush1.msra.mxu0 %v889
    %2141 = vmatprep.subr.mxu0 %v894
    %2142 = vmatpush1.msra.mxu0 %v893
    %2143 = vmatprep.subr.mxu0 %v898
    %2144 = vmatpush1.msra.mxu0 %v897
    %2145 = vmatprep.subr.mxu0 %v902
    %2146 = vmatpush1.msra.mxu0 %v901
    %2147 = vmatprep.subr.mxu0 %v906
    %2148 = vmatpush1.msra.mxu0 %v905
    %2149 = vmatprep.subr.mxu0 %v910
    %2150 = vmatpush1.msra.mxu0 %v909
    %2151 = vmatprep.subr.mxu0 %v914
    %2152 = vmatpush1.msra.mxu0 %v913
    %2153 = vmatprep.subr.mxu0 %v918
    %2154 = vmatpush1.msra.mxu0 %v917
    %2155 = vmatprep.subr.mxu0 %v922
    %2156 = vmatpush1.msra.mxu0 %v921
    %2157 = vmatprep.subr.mxu0 0.0
    %2158 = vmatpush1.msra.mxu0 0.0
    %2159 = vmatprep.subr.mxu0 0.0
    %2160 = vmatpush1.msra.mxu0 0.0
    %2161 = vmatprep.subr.mxu0 0.0
    %2162 = vmatpush1.msra.mxu0 0.0
    %2163 = vmatprep.subr.mxu0 0.0
    %2164 = vmatpush1.msra.mxu0 0.0
    %2165 = vmatprep.subr.mxu0 0.0
    %2166 = vmatpush1.msra.mxu0 0.0
    %2167 = vmatprep.subr.mxu0 0.0
    %2168 = vmatpush1.msra.mxu0 0.0
    %2169 = vmatprep.subr.mxu0 0.0
    %2170 = vmatpush1.msra.mxu0 0.0
    %2171 = vmatprep.subr.mxu0 0.0
    %2172 = vmatpush1.msra.mxu0 0.0
    %2173 = vmatprep.subr.mxu0 0.0
    %2174 = vmatpush1.msra.mxu0 0.0
    %2175 = vmatprep.subr.mxu0 0.0
    %2176 = vmatpush1.msra.mxu0 0.0
    %2177 = vmatprep.subr.mxu0 0.0
    %2178 = vmatpush1.msra.mxu0 0.0
    %2179 = vmatprep.subr.mxu0 0.0
    %2180 = vmatpush1.msra.mxu0 0.0
    %2181 = vmatprep.subr.mxu0 0.0
    %2182 = vmatpush1.msra.mxu0 0.0
    %2183 = vmatprep.subr.mxu0 0.0
    %2184 = vmatpush1.msra.mxu0 0.0
    %2185 = vmatprep.subr.mxu0 0.0
    %2186 = vmatpush1.msra.mxu0 0.0
    %2187 = vmatprep.subr.mxu0 0.0
    %2188 = vmatpush1.msra.mxu0 0.0
    %2189 = vmatprep.mubr.f32.mxu0 0.0
    %2190 = vmatmul.mubr.f32.gmra.mrb[0].mxu0 %v2047
    %v2191 = vpop.f32.mrb[0].mxu0
    %v2192 = vadd.f32 %v2052, %v2191
    %v2193 = vpop.f32.mrb[0].mxu0
    %v2194 = vadd.f32 %v2053, %v2193
    %2195 = vdwg.mxu0
    %v2196 = vxor.u32 %v2121, 2147483648
    %v2197 = vmul.f32 %v2196, 1.442695
    %v2198 = vpow.pop %v2197
    %v2199 = vadd.f32 %v2198, 1.0
    %v2200 = vrcp.pop %v2199
    %v2201 = vmul.f32 1.0, %v2200
    %v2202 = vxor.u32 %v2123, 2147483648
    %v2203 = vmul.f32 %v2202, 1.442695
    %v2204 = vpow.pop %v2203
    %v2205 = vadd.f32 %v2204, 1.0
    %v2206 = vrcp.pop %v2205
    %v2207 = vmul.f32 1.0, %v2206
    %v2208 = vtanh.pop %v2192
    %v2209 = vxor.u32 %v2194, 2147483648
    %v2210 = vmul.f32 %v2209, 1.442695
    %v2211 = vpow.pop %v2210
    %v2212 = vadd.f32 %v2211, 1.0
    %v2213 = vrcp.pop %v2212
    %v2214 = vmul.f32 1.0, %v2213
    %v2215 = vmul.f32 %v2207, %v2045
    %v2216 = vmul.f32 %v2201, %v2208
    %v2217 = vadd.f32 %v2215, %v2216
    %v2218 = vtanh.pop %v2217
    %v2219 = vmul.f32 %v2214, %v2218
    %v2220 = vadd.f32 %v2048, %v2219
    %v2221 = vmax.f32 %v2049, %v2219
    %v2222 = vsel %vm976, %v985, %v980
    %v2223 = vsel %vm977, %v986, %v981
    %v2224 = vsel %vm978, %v987, %v982
    %v2225 = vsel %vm979, %v988, %v983
    %2226 = vmatprep.subr.mxu0 %v860
    %2227 = vmatpush1.msra.mxu0 %v859
    %2228 = vmatprep.subr.mxu0 %v864
    %2229 = vmatpush1.msra.mxu0 %v863
    %2230 = vmatprep.subr.mxu0 %v868
    %2231 = vmatpush1.msra.mxu0 %v867
    %2232 = vmatprep.subr.mxu0 %v872
    %2233 = vmatpush1.msra.mxu0 %v871
    %2234 = vmatprep.subr.mxu0 %v876
    %2235 = vmatpush1.msra.mxu0 %v875
    %2236 = vmatprep.subr.mxu0 %v880
    %2237 = vmatpush1.msra.mxu0 %v879
    %2238 = vmatprep.subr.mxu0 %v884
    %2239 = vmatpush1.msra.mxu0 %v883
    %2240 = vmatprep.subr.mxu0 %v888
    %2241 = vmatpush1.msra.mxu0 %v887
    %2242 = vmatprep.subr.mxu0 %v892
    %2243 = vmatpush1.msra.mxu0 %v891
    %2244 = vmatprep.subr.mxu0 %v896
    %2245 = vmatpush1.msra.mxu0 %v895
    %2246 = vmatprep.subr.mxu0 %v900
    %2247 = vmatpush1.msra.mxu0 %v899
    %2248 = vmatprep.subr.mxu0 %v904
    %2249 = vmatpush1.msra.mxu0 %v903
    %2250 = vmatprep.subr.mxu0 %v908
    %2251 = vmatpush1.msra.mxu0 %v907
    %2252 = vmatprep.subr.mxu0 %v912
    %2253 = vmatpush1.msra.mxu0 %v911
    %2254 = vmatprep.subr.mxu0 %v916
    %2255 = vmatpush1.msra.mxu0 %v915
    %2256 = vmatprep.subr.mxu0 %v920
    %2257 = vmatpush1.msra.mxu0 %v919
    %2258 = vmatprep.subr.mxu0 0.0
    %2259 = vmatpush1.msra.mxu0 0.0
    %2260 = vmatprep.subr.mxu0 0.0
    %2261 = vmatpush1.msra.mxu0 0.0
    %2262 = vmatprep.subr.mxu0 0.0
    %2263 = vmatpush1.msra.mxu0 0.0
    %2264 = vmatprep.subr.mxu0 0.0
    %2265 = vmatpush1.msra.mxu0 0.0
    %2266 = vmatprep.subr.mxu0 0.0
    %2267 = vmatpush1.msra.mxu0 0.0
    %2268 = vmatprep.subr.mxu0 0.0
    %2269 = vmatpush1.msra.mxu0 0.0
    %2270 = vmatprep.subr.mxu0 0.0
    %2271 = vmatpush1.msra.mxu0 0.0
    %2272 = vmatprep.subr.mxu0 0.0
    %2273 = vmatpush1.msra.mxu0 0.0
    %2274 = vmatprep.subr.mxu0 0.0
    %2275 = vmatpush1.msra.mxu0 0.0
    %2276 = vmatprep.subr.mxu0 0.0
    %2277 = vmatpush1.msra.mxu0 0.0
    %2278 = vmatprep.subr.mxu0 0.0
    %2279 = vmatpush1.msra.mxu0 0.0
    %2280 = vmatprep.subr.mxu0 0.0
    %2281 = vmatpush1.msra.mxu0 0.0
    %2282 = vmatprep.subr.mxu0 0.0
    %2283 = vmatpush1.msra.mxu0 0.0
    %2284 = vmatprep.subr.mxu0 0.0
    %2285 = vmatpush1.msra.mxu0 0.0
    %2286 = vmatprep.subr.mxu0 0.0
    %2287 = vmatpush1.msra.mxu0 0.0
    %2288 = vmatprep.subr.mxu0 0.0
    %2289 = vmatpush1.msra.mxu0 0.0
    %2290 = vmatprep.mubr.f32.mxu0 0.0
    %2291 = vmatmul.mubr.f32.gmra.mrb[0].mxu0 %v2219
    %v2292 = vpop.f32.mrb[0].mxu0
    %v2293 = vadd.f32 %v2222, %v2292
    %v2294 = vpop.f32.mrb[0].mxu0
    %v2295 = vadd.f32 %v2223, %v2294
    %2296 = vdwg.mxu0
    %2297 = vmatprep.subr.mxu0 %v862
    %2298 = vmatpush1.msra.mxu0 %v861
    %2299 = vmatprep.subr.mxu0 %v866
    %2300 = vmatpush1.msra.mxu0 %v865
    %2301 = vmatprep.subr.mxu0 %v870
    %2302 = vmatpush1.msra.mxu0 %v869
    %2303 = vmatprep.subr.mxu0 %v874
    %2304 = vmatpush1.msra.mxu0 %v873
    %2305 = vmatprep.subr.mxu0 %v878
    %2306 = vmatpush1.msra.mxu0 %v877
    %2307 = vmatprep.subr.mxu0 %v882
    %2308 = vmatpush1.msra.mxu0 %v881
    %2309 = vmatprep.subr.mxu0 %v886
    %2310 = vmatpush1.msra.mxu0 %v885
    %2311 = vmatprep.subr.mxu0 %v890
    %2312 = vmatpush1.msra.mxu0 %v889
    %2313 = vmatprep.subr.mxu0 %v894
    %2314 = vmatpush1.msra.mxu0 %v893
    %2315 = vmatprep.subr.mxu0 %v898
    %2316 = vmatpush1.msra.mxu0 %v897
    %2317 = vmatprep.subr.mxu0 %v902
    %2318 = vmatpush1.msra.mxu0 %v901
    %2319 = vmatprep.subr.mxu0 %v906
    %2320 = vmatpush1.msra.mxu0 %v905
    %2321 = vmatprep.subr.mxu0 %v910
    %2322 = vmatpush1.msra.mxu0 %v909
    %2323 = vmatprep.subr.mxu0 %v914
    %2324 = vmatpush1.msra.mxu0 %v913
    %2325 = vmatprep.subr.mxu0 %v918
    %2326 = vmatpush1.msra.mxu0 %v917
    %2327 = vmatprep.subr.mxu0 %v922
    %2328 = vmatpush1.msra.mxu0 %v921
    %2329 = vmatprep.subr.mxu0 0.0
    %2330 = vmatpush1.msra.mxu0 0.0
    %2331 = vmatprep.subr.mxu0 0.0
    %2332 = vmatpush1.msra.mxu0 0.0
    %2333 = vmatprep.subr.mxu0 0.0
    %2334 = vmatpush1.msra.mxu0 0.0
    %2335 = vmatprep.subr.mxu0 0.0
    %2336 = vmatpush1.msra.mxu0 0.0
    %2337 = vmatprep.subr.mxu0 0.0
    %2338 = vmatpush1.msra.mxu0 0.0
    %2339 = vmatprep.subr.mxu0 0.0
    %2340 = vmatpush1.msra.mxu0 0.0
    %2341 = vmatprep.subr.mxu0 0.0
    %2342 = vmatpush1.msra.mxu0 0.0
    %2343 = vmatprep.subr.mxu0 0.0
    %2344 = vmatpush1.msra.mxu0 0.0
    %2345 = vmatprep.subr.mxu0 0.0
    %2346 = vmatpush1.msra.mxu0 0.0
    %2347 = vmatprep.subr.mxu0 0.0
    %2348 = vmatpush1.msra.mxu0 0.0
    %2349 = vmatprep.subr.mxu0 0.0
    %2350 = vmatpush1.msra.mxu0 0.0
    %2351 = vmatprep.subr.mxu0 0.0
    %2352 = vmatpush1.msra.mxu0 0.0
    %2353 = vmatprep.subr.mxu0 0.0
    %2354 = vmatpush1.msra.mxu0 0.0
    %2355 = vmatprep.subr.mxu0 0.0
    %2356 = vmatpush1.msra.mxu0 0.0
    %2357 = vmatprep.subr.mxu0 0.0
    %2358 = vmatpush1.msra.mxu0 0.0
    %2359 = vmatprep.subr.mxu0 0.0
    %2360 = vmatpush1.msra.mxu0 0.0
    %2361 = vmatprep.mubr.f32.mxu0 0.0
    %2362 = vmatmul.mubr.f32.gmra.mrb[0].mxu0 %v2219
    %v2363 = vpop.f32.mrb[0].mxu0
    %v2364 = vadd.f32 %v2224, %v2363
    %v2365 = vpop.f32.mrb[0].mxu0
    %v2366 = vadd.f32 %v2225, %v2365
    %2367 = vdwg.mxu0
    %v2368 = vxor.u32 %v2293, 2147483648
    %v2369 = vmul.f32 %v2368, 1.442695
    %v2370 = vpow.pop %v2369
    %v2371 = vadd.f32 %v2370, 1.0
    %v2372 = vrcp.pop %v2371
    %v2373 = vmul.f32 1.0, %v2372
    %v2374 = vxor.u32 %v2295, 2147483648
    %v2375 = vmul.f32 %v2374, 1.442695
    %v2376 = vpow.pop %v2375
    %v2377 = vadd.f32 %v2376, 1.0
    %v2378 = vrcp.pop %v2377
    %v2379 = vmul.f32 1.0, %v2378
    %v2380 = vtanh.pop %v2364
    %v2381 = vxor.u32 %v2366, 2147483648
    %v2382 = vmul.f32 %v2381, 1.442695
    %v2383 = vpow.pop %v2382
    %v2384 = vadd.f32 %v2383, 1.0
    %v2385 = vrcp.pop %v2384
    %v2386 = vmul.f32 1.0, %v2385
    %v2387 = vmul.f32 %v2379, %v2217
    %v2388 = vmul.f32 %v2373, %v2380
    %v2389 = vadd.f32 %v2387, %v2388
    %v2390 = vtanh.pop %v2389
    %v2391 = vmul.f32 %v2386, %v2390
    %v2392 = vadd.f32 %v2220, %v2391
    %v2393 = vmax.f32 %v2221, %v2391
    %v2394 = vmul.f32 %v2392, 0.125
    %v2395 = vld [vmem:[%s5] sm:$0xff]
    %v2396 = vld [vmem:[%s5 + $0x8] sm:$0xff]
    %v2397 = vld [vmem:[%s5 + $0x10] sm:$0xff]
    %v2398 = vld [vmem:[%s5 + $0x18] sm:$0xff]
    %v2399 = vld [vmem:[%s5 + $0x20] sm:$0xff]
    %v2400 = vld [vmem:[%s5 + $0x28] sm:$0xff]
    %v2401 = vld [vmem:[%s5 + $0x30] sm:$0xff]
    %v2402 = vld [vmem:[%s5 + $0x38] sm:$0xff]
    %v2403 = vld [vmem:[%s5 + $0x40] sm:$0xff]
    %v2404 = vld [vmem:[%s5 + $0x48] sm:$0xff]
    %v2405 = vld [vmem:[%s5 + $0x50] sm:$0xff]
    %v2406 = vld [vmem:[%s5 + $0x58] sm:$0xff]
    %v2407 = vld [vmem:[%s5 + $0x60] sm:$0xff]
    %v2408 = vld [vmem:[%s5 + $0x68] sm:$0xff]
    %v2409 = vld [vmem:[%s5 + $0x70] sm:$0xff]
    %v2410 = vld [vmem:[%s5 + $0x78] sm:$0xff]
    %v2411 = vld [vmem:[%s5 + $0x80] sm:$0xff]
    %v2412 = vld [vmem:[%s5 + $0x88] sm:$0xff]
    %v2413 = vld [vmem:[%s5 + $0x90] sm:$0xff]
    %v2414 = vld [vmem:[%s5 + $0x98] sm:$0xff]
    %v2415 = vld [vmem:[%s5 + $0xa0] sm:$0xff]
    %v2416 = vld [vmem:[%s5 + $0xa8] sm:$0xff]
    %v2417 = vld [vmem:[%s5 + $0xb0] sm:$0xff]
    %v2418 = vld [vmem:[%s5 + $0xb8] sm:$0xff]
    %v2419 = vld [vmem:[%s5 + $0xc0] sm:$0xff]
    %v2420 = vld [vmem:[%s5 + $0xc8] sm:$0xff]
    %v2421 = vld [vmem:[%s5 + $0xd0] sm:$0xff]
    %v2422 = vld [vmem:[%s5 + $0xd8] sm:$0xff]
    %v2423 = vld [vmem:[%s5 + $0xe0] sm:$0xff]
    %v2424 = vld [vmem:[%s5 + $0xe8] sm:$0xff]
    %v2425 = vld [vmem:[%s5 + $0xf0] sm:$0xff]
    %v2426 = vld [vmem:[%s5 + $0xf8] sm:$0xff]
    %v2427 = vld [vmem:[#allocation13] sm:$0x1]
    %v2429 = vlaneseq
    %v2430 = vshrl.u32 %v2429, 7
    %v2431 = vsub.s32 0, %v2430
    %v2432 = vrot.slane %v2427, %v2431
    %2434 = vmatprep.subr.mxu0 0.0
    %2435 = vmatpush1.msra.mxu0 %v2395
    %2436 = vmatprep.subr.mxu0 0.0
    %2437 = vmatpush1.msra.mxu0 %v2396
    %2438 = vmatprep.subr.mxu0 0.0
    %2439 = vmatpush1.msra.mxu0 %v2397
    %2440 = vmatprep.subr.mxu0 0.0
    %2441 = vmatpush1.msra.mxu0 %v2398
    %2442 = vmatprep.subr.mxu0 0.0
    %2443 = vmatpush1.msra.mxu0 %v2399
    %2444 = vmatprep.subr.mxu0 0.0
    %2445 = vmatpush1.msra.mxu0 %v2400
    %2446 = vmatprep.subr.mxu0 0.0
    %2447 = vmatpush1.msra.mxu0 %v2401
    %2448 = vmatprep.subr.mxu0 0.0
    %2449 = vmatpush1.msra.mxu0 %v2402
    %2450 = vmatprep.subr.mxu0 0.0
    %2451 = vmatpush1.msra.mxu0 %v2403
    %2452 = vmatprep.subr.mxu0 0.0
    %2453 = vmatpush1.msra.mxu0 %v2404
    %2454 = vmatprep.subr.mxu0 0.0
    %2455 = vmatpush1.msra.mxu0 %v2405
    %2456 = vmatprep.subr.mxu0 0.0
    %2457 = vmatpush1.msra.mxu0 %v2406
    %2458 = vmatprep.subr.mxu0 0.0
    %2459 = vmatpush1.msra.mxu0 %v2407
    %2460 = vmatprep.subr.mxu0 0.0
    %2461 = vmatpush1.msra.mxu0 %v2408
    %2462 = vmatprep.subr.mxu0 0.0
    %2463 = vmatpush1.msra.mxu0 %v2409
    %2464 = vmatprep.subr.mxu0 0.0
    %2465 = vmatpush1.msra.mxu0 %v2410
    %2466 = vmatprep.subr.mxu0 0.0
    %2467 = vmatpush1.msra.mxu0 %v2411
    %2468 = vmatprep.subr.mxu0 0.0
    %2469 = vmatpush1.msra.mxu0 %v2412
    %2470 = vmatprep.subr.mxu0 0.0
    %2471 = vmatpush1.msra.mxu0 %v2413
    %2472 = vmatprep.subr.mxu0 0.0
    %2473 = vmatpush1.msra.mxu0 %v2414
    %2474 = vmatprep.subr.mxu0 0.0
    %2475 = vmatpush1.msra.mxu0 %v2415
    %2476 = vmatprep.subr.mxu0 0.0
    %2477 = vmatpush1.msra.mxu0 %v2416
    %2478 = vmatprep.subr.mxu0 0.0
    %2479 = vmatpush1.msra.mxu0 %v2417
    %2480 = vmatprep.subr.mxu0 0.0
    %2481 = vmatpush1.msra.mxu0 %v2418
    %2482 = vmatprep.subr.mxu0 0.0
    %2483 = vmatpush1.msra.mxu0 %v2419
    %2484 = vmatprep.subr.mxu0 0.0
    %2485 = vmatpush1.msra.mxu0 %v2420
    %2486 = vmatprep.subr.mxu0 0.0
    %2487 = vmatpush1.msra.mxu0 %v2421
    %2488 = vmatprep.subr.mxu0 0.0
    %2489 = vmatpush1.msra.mxu0 %v2422
    %2490 = vmatprep.subr.mxu0 0.0
    %2491 = vmatpush1.msra.mxu0 %v2423
    %2492 = vmatprep.subr.mxu0 0.0
    %2493 = vmatpush1.msra.mxu0 %v2424
    %2494 = vmatprep.subr.mxu0 0.0
    %2495 = vmatpush1.msra.mxu0 %v2425
    %2496 = vmatprep.subr.mxu0 0.0
    %2497 = vmatpush1.msra.mxu0 %v2426
    %2498 = vmatprep.mubr.f32.mxu0 %v2393
    %2499 = vmatmul.mubr.f32.gmra.mrb[0].mxu0 %v2394
    %v2500 = vpop.f32.mrb[0].mxu0
    %v2501 = vadd.f32 %v2432, %v2500
    %v2502 = vpop.f32.mrb[0].mxu0
    %2503 = vdwg.mxu0
    %v2504 = vmax.f32 %v2501, 0.0
    %v2505 = vld [vmem:[#allocation15] sm:$0x1]
    %v2507 = vlaneseq
    %v2508 = vshrl.u32 %v2507, 7
    %v2509 = vsub.s32 0, %v2508
    %v2510 = vrot.slane %v2505, %v2509
    %v2512 = vmul.f32 %v2504, %v2510
    %vm2513 = vcmask 523264
    %v2514 = vsel %vm2513, %v2512, 0.0
    %2515 = vadd.xlane.f32.xlu0 %v2514
    %v2516 = vpop.xlane.xlu0 %2515
    %v2517 = vld [vmem:[#allocation5] sm:$0x1]
    %v2519 = vlaneseq
    %v2520 = vshrl.u32 %v2519, 7
    %v2521 = vsub.s32 0, %v2520
    %v2522 = vrot.slane %v2517, %v2521
    %v2524 = vadd.f32 %v2516, %v2522
    %vm2525 = vcmask 7168
    %2526 = vst.msk [vmem:[%s9] sm:$0xff] %vm2525, %v2524
    // Predicated region
    $region72: #{tpu_custom_call.1} parent=1 // pred_check
      _
    $region73: #{tpu_custom_call.1} parent=1 // pred_check_branch
      %2528 = sbr.rel (0) target = $region75
    $region74: #{tpu_custom_call.1} parent=1 // pred_region
      _
    $region75: #{tpu_custom_call.1} parent=1 // pred_fallthru
      _
    // Predicated region
    $region76: #{tpu_custom_call.1} parent=1 // pred_check
      _
    $region77: #{tpu_custom_call.1} parent=1 // pred_check_branch
      %2530 = sbr.rel (0) target = $region79
    $region78: #{tpu_custom_call.1} parent=1 // pred_region
      _
    $region79: #{tpu_custom_call.1} parent=1 // pred_fallthru
      _
    %2531 = vsyncpa [#allocation7], 1
    %2532 = vsyncpa [#allocation11], 1
    %2533 = vsyncpa [#allocation14], 1
    %2534 = vsyncpa [#allocation8], 1
  %2535 = vsyncmov [#allocation4]
  %s2536 = vpop.sfrf %2535
  %p2537 = scmp.eq.s32.totalorder %s2536, 0
  %p2538 = pneg %p2537
  %2540 = shalt.err (%p2538)

</llo_original>
